<compile_context>
chip_gen: v5e
topology: v5e:2x2
jax: 0.10.0
libtpu: 0.0.40
codegen_flags: <defaults>
</compile_context>

<pallas_src>
import functools

import jax
import jax.numpy as jnp
from jax import lax
from jax.experimental import pallas as pl
from jax.experimental.pallas import tpu as pltpu

BN_EPS = 1e-5
LANES = 128


def _round_up(x, m):
    return (x + m - 1) // m * m


# ------------------------------ Pallas kernels ------------------------------

def _stats_kernel(p_ref, w_ref, st_ref, *, m_valid, tile_m):
    """Pass A: GEMM on the MXU + per-tile BN statistics.

    Writes an (8, Cout_pad) stats block per tile:
      row 0: per-channel sum over valid rows
      row 1: per-channel sum of squared deviations from the tile mean
      row 2: valid-row count (broadcast across channels)
      rows 3-7: zero padding (sublane alignment).
    """
    t = pl.program_id(0)
    y = jnp.dot(p_ref[...], w_ref[...], preferred_element_type=jnp.float32)

    # Mask rows past the true M (zero-padded patch rows).
    rows = t * tile_m + lax.broadcasted_iota(jnp.int32, (tile_m, 1), 0)
    valid = (rows < m_valid).astype(jnp.float32)                 # (tile_m, 1)
    cnt = jnp.minimum(m_valid - t * tile_m, tile_m).astype(jnp.float32)

    s = jnp.sum(y * valid, axis=0, keepdims=True)                # (1, C)
    mu = s / cnt
    d = (y - mu) * valid
    m2 = jnp.sum(d * d, axis=0, keepdims=True)                   # (1, C)

    c = y.shape[1]
    st_ref[...] = jnp.concatenate(
        [s, m2, jnp.full((1, c), cnt, jnp.float32),
         jnp.zeros((5, c), jnp.float32)], axis=0)


def _gemm_bn_relu_kernel(p_ref, w_ref, scale_ref, shift_ref, o_ref):
    """Pass B: GEMM (bf16 in, f32 acc) + BN affine (precomputed scale/shift) + ReLU."""
    y = jnp.dot(p_ref[...], w_ref[...], preferred_element_type=jnp.float32)
    o_ref[...] = jnp.maximum(y * scale_ref[...] + shift_ref[...], 0.0)


# ------------------------------ JAX glue ------------------------------

def _im2col_nhwc(x, kh, kw, stride, pad):
    """x: (N, H, W, C) -> patches (N*OH*OW, KH*KW*C), rows in N,OH,OW order,
    columns ordered (i, j, c) to match w.transpose(2,3,1,0).reshape(K, Cout)."""
    n, h, w, c = x.shape
    if pad:
        x = jnp.pad(x, ((0, 0), (pad, pad), (pad, pad), (0, 0)))
    oh = (h + 2 * pad - kh) // stride + 1
    ow = (w + 2 * pad - kw) // stride + 1
    cols = []
    for i in range(kh):
        for j in range(kw):
            cols.append(x[:, i:i + stride * oh:stride, j:j + stride * ow:stride, :])
    patches = jnp.concatenate(cols, axis=-1)          # (N, OH, OW, KH*KW*C)
    return patches.reshape(n * oh * ow, kh * kw * c), oh, ow


def _bn_scale_shift(stats, gamma_p, beta_p, m_total, cout_pad):
    """Combine per-tile stats (Chan's parallel variance) -> BN scale/shift."""
    t = stats.reshape(-1, 8, cout_pad)
    s = t[:, 0, :]                                    # (T, C)
    m2 = t[:, 1, :]                                   # (T, C)
    cnt = t[:, 2, :1]                                 # (T, 1)
    inv_m = 1.0 / float(m_total)
    mean = jnp.sum(s, axis=0, keepdims=True) * inv_m  # (1, C)
    mu_t = s / cnt
    var = (jnp.sum(m2, axis=0, keepdims=True)
           + jnp.sum(cnt * (mu_t - mean) ** 2, axis=0, keepdims=True)) * inv_m
    inv_std = lax.rsqrt(var + BN_EPS)
    scale = gamma_p * inv_std
    shift = beta_p - mean * scale
    return scale, shift


def _stage(x_nhwc, w, gamma, beta, stride, pad):
    """One Conv -> BN(train) -> ReLU stage on NHWC activations."""
    n = x_nhwc.shape[0]
    cout, cin, kh, kw = w.shape

    # bf16 MXU inputs, f32 accumulation (conv bias intentionally omitted:
    # it cancels exactly under training-mode BatchNorm).
    xq = x_nhwc.astype(jnp.bfloat16)
    patches, oh, ow = _im2col_nhwc(xq, kh, kw, stride, pad)      # (M, K) bf16
    m_rows, k = patches.shape

    k_pad = _round_up(k, 8)
    cout_pad = _round_up(cout, LANES)                 # lane-dense output width
    tile_m = min(256, _round_up(m_rows, 8))
    m_pad = _round_up(m_rows, tile_m)
    num_tiles = m_pad // tile_m

    patches = jnp.pad(patches, ((0, m_pad - m_rows), (0, k_pad - k)))
    w_mat = jnp.transpose(w, (2, 3, 1, 0)).reshape(kh * kw * cin, cout)
    w_mat = jnp.pad(w_mat, ((0, k_pad - k), (0, cout_pad - cout))).astype(jnp.bfloat16)
    gamma_p = jnp.pad(gamma.astype(jnp.float32), (0, cout_pad - cout)).reshape(1, cout_pad)
    beta_p = jnp.pad(beta.astype(jnp.float32), (0, cout_pad - cout)).reshape(1, cout_pad)

    cparams = pltpu.CompilerParams(
        dimension_semantics=("parallel",),
        vmem_limit_bytes=32 * 1024 * 1024)

    p_spec = pl.BlockSpec((tile_m, k_pad), lambda m: (m, 0))
    w_spec = pl.BlockSpec((k_pad, cout_pad), lambda m: (0, 0))
    vec_spec = pl.BlockSpec((1, cout_pad), lambda m: (0, 0))

    # Pass A: per-tile BN statistics.
    stats = pl.pallas_call(
        functools.partial(_stats_kernel, m_valid=m_rows, tile_m=tile_m),
        grid=(num_tiles,),
        in_specs=[p_spec, w_spec],
        out_specs=pl.BlockSpec((8, cout_pad), lambda m: (m, 0)),
        out_shape=jax.ShapeDtypeStruct((num_tiles * 8, cout_pad), jnp.float32),
        compiler_params=cparams,
    )(patches, w_mat)

    scale, shift = _bn_scale_shift(stats, gamma_p, beta_p, m_rows, cout_pad)

    # Pass B: fused GEMM + normalize/affine + ReLU, lane-dense stores.
    out = pl.pallas_call(
        _gemm_bn_relu_kernel,
        grid=(num_tiles,),
        in_specs=[p_spec, w_spec, vec_spec, vec_spec],
        out_specs=pl.BlockSpec((tile_m, cout_pad), lambda m: (m, 0)),
        out_shape=jax.ShapeDtypeStruct((m_pad, cout_pad), jnp.float32),
        compiler_params=cparams,
    )(patches, w_mat, scale, shift)

    return out[:m_rows, :cout].reshape(n, oh, ow, cout)          # NHWC


def downsample_forward(x_nchw, params):
    # Layout conversion + reflection pad are pure data movement -> XLA glue.
    x = jnp.transpose(x_nchw, (0, 2, 3, 1))                      # NCHW -> NHWC once
    x = jnp.pad(x, ((0, 0), (3, 3), (3, 3), (0, 0)), mode="reflect")
    x = _stage(x, params["w1"], params["g1"], params["be1"], stride=1, pad=0)
    x = _stage(x, params["w2"], params["g2"], params["be2"], stride=2, pad=1)
    x = _stage(x, params["w3"], params["g3"], params["be3"], stride=2, pad=1)
    return jnp.transpose(x, (0, 3, 1, 2))                        # NHWC -> NCHW once


# ------------------------------ reference (plain JAX) ------------------------------
# The reference quantizes each stage's conv inputs (activations + weights) to
# bf16 exactly like the kernel path (f32 accumulation via HIGHEST precision),
# keeps the conv bias (it cancels under training-mode BN), and uses the
# numerically-stable E[(y-mean)^2] variance.

def _ref_stage(x_nhwc, w, b, gamma, beta, stride, pad):
    xq = x_nhwc.astype(jnp.bfloat16).astype(jnp.float32)
    wq = jnp.transpose(w.astype(jnp.bfloat16).astype(jnp.float32), (2, 3, 1, 0))  # HWIO
    y = lax.conv_general_dilated(
        xq, wq, (stride, stride), [(pad, pad), (pad, pad)],
        dimension_numbers=("NHWC", "HWIO", "NHWC"),
        precision=lax.Precision.HIGHEST)
    y = y + b.reshape(1, 1, 1, -1)
    mean = jnp.mean(y, axis=(0, 1, 2), keepdims=True)
    var = jnp.mean((y - mean) ** 2, axis=(0, 1, 2), keepdims=True)
    y = (y - mean) * lax.rsqrt(var + BN_EPS)
    y = y * gamma.reshape(1, 1, 1, -1) + beta.reshape(1, 1, 1, -1)
    return jnp.maximum(y, 0.0)


def ref_forward(x_nchw, p):
    x = jnp.transpose(x_nchw, (0, 2, 3, 1))
    x = jnp.pad(x, ((0, 0), (3, 3), (3, 3), (0, 0)), mode="reflect")
    x = _ref_stage(x, p["w1"], p["b1"], p["g1"], p["be1"], 1, 0)
    x = _ref_stage(x, p["w2"], p["b2"], p["g2"], p["be2"], 2, 1)
    x = _ref_stage(x, p["w3"], p["b3"], p["g3"], p["be3"], 2, 1)
    return jnp.transpose(x, (0, 3, 1, 2))


# ------------------------------ params ------------------------------

def init_params(key, in_channel, sc_channel):
    def conv_init(k, cout, cin, kh, kw):
        kw_, kb_ = jax.random.split(k)
        bound = 1.0 / jnp.sqrt(cin * kh * kw)
        w = jax.random.uniform(kw_, (cout, cin, kh, kw), jnp.float32, -bound, bound)
        b = jax.random.uniform(kb_, (cout,), jnp.float32, -bound, bound)
        return w, b

    k1, k2, k3, kg = jax.random.split(key, 4)
    c1, c2, c3 = sc_channel, sc_channel * 2, sc_channel * 4
    w1, b1 = conv_init(k1, c1, in_channel, 7, 7)
    w2, b2 = conv_init(k2, c2, c1, 3, 3)
    w3, b3 = conv_init(k3, c3, c2, 3, 3)
    # Non-trivial BN affine params to exercise the scale/shift path.
    g1k, g2k, g3k, be1k, be2k, be3k = jax.random.split(kg, 6)
    return dict(
        w1=w1, b1=b1,
        g1=jax.random.uniform(g1k, (c1,), jnp.float32, 0.5, 1.5),
        be1=jax.random.uniform(be1k, (c1,), jnp.float32, -0.5, 0.5),
        w2=w2, b2=b2,
        g2=jax.random.uniform(g2k, (c2,), jnp.float32, 0.5, 1.5),
        be2=jax.random.uniform(be2k, (c2,), jnp.float32, -0.5, 0.5),
        w3=w3, b3=b3,
        g3=jax.random.uniform(g3k, (c3,), jnp.float32, 0.5, 1.5),
        be3=jax.random.uniform(be3k, (c3,), jnp.float32, -0.5, 0.5),
    )


# ------------------------------ main ------------------------------

if __name__ == "__main__":
    key = jax.random.PRNGKey(0)
    k_x, k_p = jax.random.split(key)

    in_channel, sc_channel = 4, 8
    x = jax.random.normal(k_x, (2, in_channel, 16, 16), jnp.float32)  # NCHW
    params = init_params(k_p, in_channel, sc_channel)

    fwd = jax.jit(downsample_forward)
    out = jax.block_until_ready(fwd(x, params))
    assert out.shape == (2, sc_channel * 4, 4, 4), out.shape

    ref = jax.block_until_ready(ref_forward(x, params))
    max_err = float(jnp.max(jnp.abs(out - ref)))
    # bf16 MXU inputs (both paths quantize identically); tolerance covers
    # accumulation-order and bf16-rounding-boundary differences.
    assert jnp.allclose(out, ref, rtol=5e-3, atol=5e-3), max_err

    print("KERNEL_OK")
</pallas_src>

<mosaic_0001>
module attributes {stable_mosaic.version = 11 : i64} {
  func.func @_gemm_bn_relu_kernel(%arg0: i32, %arg1: memref<256x200xbf16, #tpu.memory_space<vmem>>, %arg2: memref<200x128xbf16, #tpu.memory_space<vmem>>, %arg3: memref<1x128xf32, #tpu.memory_space<vmem>>, %arg4: memref<1x128xf32, #tpu.memory_space<vmem>>, %arg5: memref<256x128xf32, #tpu.memory_space<vmem>>) attributes {dimension_semantics = [#tpu.dimension_semantics<parallel>], iteration_bounds = array<i64: 2>, scalar_prefetch = 0 : i64, scratch_operands = 0 : i64, tpu.core_type = #tpu.core_type<tc>, window_params = [{transform_indices = @transform_0, window_bounds = array<i64: 256, 200>}, {pipeline_mode = #tpu.pipeline_mode<synchronous>, transform_indices = @transform_1, window_bounds = array<i64: 200, 128>}, {pipeline_mode = #tpu.pipeline_mode<synchronous>, transform_indices = @transform_2, window_bounds = array<i64: 1, 128>}, {pipeline_mode = #tpu.pipeline_mode<synchronous>, transform_indices = @transform_3, window_bounds = array<i64: 1, 128>}, {transform_indices = @transform_4, window_bounds = array<i64: 256, 128>}]} {
    %c0 = arith.constant 0 : index
    %c0_0 = arith.constant 0 : index
    %0 = vector.load %arg1[%c0, %c0_0] : memref<256x200xbf16, #tpu.memory_space<vmem>>, vector<256x200xbf16>
    %c0_1 = arith.constant 0 : index
    %c0_2 = arith.constant 0 : index
    %1 = vector.load %arg2[%c0_1, %c0_2] : memref<200x128xbf16, #tpu.memory_space<vmem>>, vector<200x128xbf16>
    %cst = arith.constant dense<0.000000e+00> : vector<256x128xf32>
    %2 = tpu.matmul %0, %1, %cst {dimension_numbers = #tpu.dot_dimension_numbers<[1], [0], [0], [1], [0, 0, 1, 1], [], []>} : vector<256x200xbf16>, vector<200x128xbf16>, vector<256x128xf32> -> vector<256x128xf32>
    %c0_3 = arith.constant 0 : index
    %c0_4 = arith.constant 0 : index
    %3 = vector.load %arg3[%c0_3, %c0_4] : memref<1x128xf32, #tpu.memory_space<vmem>>, vector<1x128xf32>
    %4 = vector.broadcast %3 : vector<1x128xf32> to vector<256x128xf32>
    %5 = arith.mulf %2, %4 : vector<256x128xf32>
    %c0_5 = arith.constant 0 : index
    %c0_6 = arith.constant 0 : index
    %6 = vector.load %arg4[%c0_5, %c0_6] : memref<1x128xf32, #tpu.memory_space<vmem>>, vector<1x128xf32>
    %7 = vector.broadcast %6 : vector<1x128xf32> to vector<256x128xf32>
    %8 = arith.addf %5, %7 : vector<256x128xf32>
    %cst_7 = arith.constant 0.000000e+00 : f32
    %9 = vector.broadcast %cst_7 : f32 to vector<256x128xf32>
    %10 = arith.maximumf %8, %9 : vector<256x128xf32>
    %c0_8 = arith.constant 0 : index
    %c0_9 = arith.constant 0 : index
    %11 = vector.load %arg5[%c0_8, %c0_9] : memref<256x128xf32, #tpu.memory_space<vmem>>, vector<256x128xf32>
    tpu.vector_store %arg5[%c0_8, %c0_9], %10 {strides = array<i32>} : memref<256x128xf32, #tpu.memory_space<vmem>>, vector<256x128xf32>,
    return
  }
  func.func @transform_0(%arg0: i32) -> (i32, i32) {
    %c0_i32 = arith.constant 0 : i32
    %c0_i32_0 = arith.constant 0 : i32
    return %arg0, %c0_i32 : i32, i32
  }
  func.func @transform_1(%arg0: i32) -> (i32, i32) {
    %c0_i32 = arith.constant 0 : i32
    %c0_i32_0 = arith.constant 0 : i32
    %c0_i32_1 = arith.constant 0 : i32
    return %c0_i32, %c0_i32_0 : i32, i32
  }
  func.func @transform_2(%arg0: i32) -> (i32, i32) {
    %c0_i32 = arith.constant 0 : i32
    %c0_i32_0 = arith.constant 0 : i32
    %c0_i32_1 = arith.constant 0 : i32
    return %c0_i32, %c0_i32_0 : i32, i32
  }
  func.func @transform_3(%arg0: i32) -> (i32, i32) {
    %c0_i32 = arith.constant 0 : i32
    %c0_i32_0 = arith.constant 0 : i32
    %c0_i32_1 = arith.constant 0 : i32
    return %c0_i32, %c0_i32_0 : i32, i32
  }
  func.func @transform_4(%arg0: i32) -> (i32, i32) {
    %c0_i32 = arith.constant 0 : i32
    %c0_i32_0 = arith.constant 0 : i32
    return %arg0, %c0_i32 : i32, i32
  }
}

module attributes {stable_mosaic.version = 11 : i64} {
  func.func @_stats_kernel(%arg0: i32, %arg1: memref<256x200xbf16, #tpu.memory_space<vmem>>, %arg2: memref<200x128xbf16, #tpu.memory_space<vmem>>, %arg3: memref<8x128xf32, #tpu.memory_space<vmem>>) attributes {dimension_semantics = [#tpu.dimension_semantics<parallel>], iteration_bounds = array<i64: 2>, scalar_prefetch = 0 : i64, scratch_operands = 0 : i64, tpu.core_type = #tpu.core_type<tc>, window_params = [{transform_indices = @transform_0, window_bounds = array<i64: 256, 200>}, {pipeline_mode = #tpu.pipeline_mode<synchronous>, transform_indices = @transform_1, window_bounds = array<i64: 200, 128>}, {transform_indices = @transform_2, window_bounds = array<i64: 8, 128>}]} {
    %c0 = arith.constant 0 : index
    %c0_0 = arith.constant 0 : index
    %0 = vector.load %arg1[%c0, %c0_0] : memref<256x200xbf16, #tpu.memory_space<vmem>>, vector<256x200xbf16>
    %c0_1 = arith.constant 0 : index
    %c0_2 = arith.constant 0 : index
    %1 = vector.load %arg2[%c0_1, %c0_2] : memref<200x128xbf16, #tpu.memory_space<vmem>>, vector<200x128xbf16>
    %cst = arith.constant dense<0.000000e+00> : vector<256x128xf32>
    %2 = tpu.matmul %0, %1, %cst {dimension_numbers = #tpu.dot_dimension_numbers<[1], [0], [0], [1], [0, 0, 1, 1], [], []>} : vector<256x200xbf16>, vector<200x128xbf16>, vector<256x128xf32> -> vector<256x128xf32>
    %c256_i32 = arith.constant 256 : i32
    %3 = arith.muli %arg0, %c256_i32 : i32
    %4 = tpu.iota {dimensions = array<i32: 0>} : vector<256x1xi32>
    %5 = vector.broadcast %3 : i32 to vector<256x1xi32>
    %6 = arith.addi %5, %4 : vector<256x1xi32>
    %c512_i32 = arith.constant 512 : i32
    %7 = vector.broadcast %c512_i32 : i32 to vector<256x1xi32>
    %8 = arith.cmpi slt, %6, %7 : vector<256x1xi32>
    %9 = arith.extui %8 : vector<256x1xi1> to vector<256x1xi32>
    %10 = arith.sitofp %9 : vector<256x1xi32> to vector<256x1xf32>
    %c256_i32_3 = arith.constant 256 : i32
    %11 = arith.muli %arg0, %c256_i32_3 : i32
    %c512_i32_4 = arith.constant 512 : i32
    %12 = arith.subi %c512_i32_4, %11 : i32
    %c256_i32_5 = arith.constant 256 : i32
    %13 = arith.minsi %12, %c256_i32_5 : i32
    %14 = arith.sitofp %13 : i32 to f32
    %15 = vector.broadcast %10 : vector<256x1xf32> to vector<256x128xf32>
    %16 = arith.mulf %2, %15 : vector<256x128xf32>
    %cst_6 = arith.constant dense<0.000000e+00> : vector<128xf32>
    %17 = vector.multi_reduction <add>, %16, %cst_6 [0] : vector<256x128xf32> to vector<128xf32>
    %18 = vector.shape_cast %17 : vector<128xf32> to vector<1x128xf32>
    %19 = vector.broadcast %14 : f32 to vector<1x128xf32>
    %20 = arith.divf %18, %19 : vector<1x128xf32>
    %21 = vector.broadcast %20 : vector<1x128xf32> to vector<256x128xf32>
    %22 = arith.subf %2, %21 : vector<256x128xf32>
    %23 = vector.broadcast %10 : vector<256x1xf32> to vector<256x128xf32>
    %24 = arith.mulf %22, %23 : vector<256x128xf32>
    %25 = arith.mulf %24, %24 : vector<256x128xf32>
    %cst_7 = arith.constant dense<0.000000e+00> : vector<128xf32>
    %26 = vector.multi_reduction <add>, %25, %cst_7 [0] : vector<256x128xf32> to vector<128xf32>
    %27 = vector.shape_cast %26 : vector<128xf32> to vector<1x128xf32>
    %28 = vector.broadcast %14 : f32 to vector<1x128xf32>
    %cst_8 = arith.constant 0.000000e+00 : f32
    %29 = vector.broadcast %cst_8 : f32 to vector<5x128xf32>
    %30 = tpu.concatenate %18, %27, %28, %29 in 0 : vector<1x128xf32>, vector<1x128xf32>, vector<1x128xf32>, vector<5x128xf32> -> vector<8x128xf32>
    %c0_9 = arith.constant 0 : index
    %c0_10 = arith.constant 0 : index
    %31 = vector.load %arg3[%c0_9, %c0_10] : memref<8x128xf32, #tpu.memory_space<vmem>>, vector<8x128xf32>
    tpu.vector_store %arg3[%c0_9, %c0_10], %30 {strides = array<i32>} : memref<8x128xf32, #tpu.memory_space<vmem>>, vector<8x128xf32>,
    return
  }
  func.func @transform_0(%arg0: i32) -> (i32, i32) {
    %c0_i32 = arith.constant 0 : i32
    %c0_i32_0 = arith.constant 0 : i32
    return %arg0, %c0_i32 : i32, i32
  }
  func.func @transform_1(%arg0: i32) -> (i32, i32) {
    %c0_i32 = arith.constant 0 : i32
    %c0_i32_0 = arith.constant 0 : i32
    %c0_i32_1 = arith.constant 0 : i32
    return %c0_i32, %c0_i32_0 : i32, i32
  }
  func.func @transform_2(%arg0: i32) -> (i32, i32) {
    %c0_i32 = arith.constant 0 : i32
    %c0_i32_0 = arith.constant 0 : i32
    return %arg0, %c0_i32 : i32, i32
  }
}

module attributes {stable_mosaic.version = 11 : i64} {
  func.func @_stats_kernel(%arg0: i32, %arg1: memref<128x72xbf16, #tpu.memory_space<vmem>>, %arg2: memref<72x128xbf16, #tpu.memory_space<vmem>>, %arg3: memref<8x128xf32, #tpu.memory_space<vmem>>) attributes {dimension_semantics = [#tpu.dimension_semantics<parallel>], iteration_bounds = array<i64: 1>, scalar_prefetch = 0 : i64, scratch_operands = 0 : i64, tpu.core_type = #tpu.core_type<tc>, window_params = [{transform_indices = @transform_0, window_bounds = array<i64: 128, 72>}, {pipeline_mode = #tpu.pipeline_mode<synchronous>, transform_indices = @transform_1, window_bounds = array<i64: 72, 128>}, {transform_indices = @transform_2, window_bounds = array<i64: 8, 128>}]} {
    %c0 = arith.constant 0 : index
    %c0_0 = arith.constant 0 : index
    %0 = vector.load %arg1[%c0, %c0_0] : memref<128x72xbf16, #tpu.memory_space<vmem>>, vector<128x72xbf16>
    %c0_1 = arith.constant 0 : index
    %c0_2 = arith.constant 0 : index
    %1 = vector.load %arg2[%c0_1, %c0_2] : memref<72x128xbf16, #tpu.memory_space<vmem>>, vector<72x128xbf16>
    %cst = arith.constant dense<0.000000e+00> : vector<128x128xf32>
    %2 = tpu.matmul %0, %1, %cst {dimension_numbers = #tpu.dot_dimension_numbers<[1], [0], [0], [1], [0, 0, 1, 1], [], []>} : vector<128x72xbf16>, vector<72x128xbf16>, vector<128x128xf32> -> vector<128x128xf32>
    %c128_i32 = arith.constant 128 : i32
    %3 = arith.muli %arg0, %c128_i32 : i32
    %4 = tpu.iota {dimensions = array<i32: 0>} : vector<128x1xi32>
    %5 = vector.broadcast %3 : i32 to vector<128x1xi32>
    %6 = arith.addi %5, %4 : vector<128x1xi32>
    %c128_i32_3 = arith.constant 128 : i32
    %7 = vector.broadcast %c128_i32_3 : i32 to vector<128x1xi32>
    %8 = arith.cmpi slt, %6, %7 : vector<128x1xi32>
    %9 = arith.extui %8 : vector<128x1xi1> to vector<128x1xi32>
    %10 = arith.sitofp %9 : vector<128x1xi32> to vector<128x1xf32>
    %c128_i32_4 = arith.constant 128 : i32
    %11 = arith.muli %arg0, %c128_i32_4 : i32
    %c128_i32_5 = arith.constant 128 : i32
    %12 = arith.subi %c128_i32_5, %11 : i32
    %c128_i32_6 = arith.constant 128 : i32
    %13 = arith.minsi %12, %c128_i32_6 : i32
    %14 = arith.sitofp %13 : i32 to f32
    %15 = vector.broadcast %10 : vector<128x1xf32> to vector<128x128xf32>
    %16 = arith.mulf %2, %15 : vector<128x128xf32>
    %cst_7 = arith.constant dense<0.000000e+00> : vector<128xf32>
    %17 = vector.multi_reduction <add>, %16, %cst_7 [0] : vector<128x128xf32> to vector<128xf32>
    %18 = vector.shape_cast %17 : vector<128xf32> to vector<1x128xf32>
    %19 = vector.broadcast %14 : f32 to vector<1x128xf32>
    %20 = arith.divf %18, %19 : vector<1x128xf32>
    %21 = vector.broadcast %20 : vector<1x128xf32> to vector<128x128xf32>
    %22 = arith.subf %2, %21 : vector<128x128xf32>
    %23 = vector.broadcast %10 : vector<128x1xf32> to vector<128x128xf32>
    %24 = arith.mulf %22, %23 : vector<128x128xf32>
    %25 = arith.mulf %24, %24 : vector<128x128xf32>
    %cst_8 = arith.constant dense<0.000000e+00> : vector<128xf32>
    %26 = vector.multi_reduction <add>, %25, %cst_8 [0] : vector<128x128xf32> to vector<128xf32>
    %27 = vector.shape_cast %26 : vector<128xf32> to vector<1x128xf32>
    %28 = vector.broadcast %14 : f32 to vector<1x128xf32>
    %cst_9 = arith.constant 0.000000e+00 : f32
    %29 = vector.broadcast %cst_9 : f32 to vector<5x128xf32>
    %30 = tpu.concatenate %18, %27, %28, %29 in 0 : vector<1x128xf32>, vector<1x128xf32>, vector<1x128xf32>, vector<5x128xf32> -> vector<8x128xf32>
    %c0_10 = arith.constant 0 : index
    %c0_11 = arith.constant 0 : index
    %31 = vector.load %arg3[%c0_10, %c0_11] : memref<8x128xf32, #tpu.memory_space<vmem>>, vector<8x128xf32>
    tpu.vector_store %arg3[%c0_10, %c0_11], %30 {strides = array<i32>} : memref<8x128xf32, #tpu.memory_space<vmem>>, vector<8x128xf32>,
    return
  }
  func.func @transform_0(%arg0: i32) -> (i32, i32) {
    %c0_i32 = arith.constant 0 : i32
    %c0_i32_0 = arith.constant 0 : i32
    return %arg0, %c0_i32 : i32, i32
  }
  func.func @transform_1(%arg0: i32) -> (i32, i32) {
    %c0_i32 = arith.constant 0 : i32
    %c0_i32_0 = arith.constant 0 : i32
    %c0_i32_1 = arith.constant 0 : i32
    return %c0_i32, %c0_i32_0 : i32, i32
  }
  func.func @transform_2(%arg0: i32) -> (i32, i32) {
    %c0_i32 = arith.constant 0 : i32
    %c0_i32_0 = arith.constant 0 : i32
    return %arg0, %c0_i32 : i32, i32
  }
}

module attributes {stable_mosaic.version = 11 : i64} {
  func.func @_gemm_bn_relu_kernel(%arg0: i32, %arg1: memref<128x72xbf16, #tpu.memory_space<vmem>>, %arg2: memref<72x128xbf16, #tpu.memory_space<vmem>>, %arg3: memref<1x128xf32, #tpu.memory_space<vmem>>, %arg4: memref<1x128xf32, #tpu.memory_space<vmem>>, %arg5: memref<128x128xf32, #tpu.memory_space<vmem>>) attributes {dimension_semantics = [#tpu.dimension_semantics<parallel>], iteration_bounds = array<i64: 1>, scalar_prefetch = 0 : i64, scratch_operands = 0 : i64, tpu.core_type = #tpu.core_type<tc>, window_params = [{transform_indices = @transform_0, window_bounds = array<i64: 128, 72>}, {pipeline_mode = #tpu.pipeline_mode<synchronous>, transform_indices = @transform_1, window_bounds = array<i64: 72, 128>}, {pipeline_mode = #tpu.pipeline_mode<synchronous>, transform_indices = @transform_2, window_bounds = array<i64: 1, 128>}, {pipeline_mode = #tpu.pipeline_mode<synchronous>, transform_indices = @transform_3, window_bounds = array<i64: 1, 128>}, {transform_indices = @transform_4, window_bounds = array<i64: 128, 128>}]} {
    %c0 = arith.constant 0 : index
    %c0_0 = arith.constant 0 : index
    %0 = vector.load %arg1[%c0, %c0_0] : memref<128x72xbf16, #tpu.memory_space<vmem>>, vector<128x72xbf16>
    %c0_1 = arith.constant 0 : index
    %c0_2 = arith.constant 0 : index
    %1 = vector.load %arg2[%c0_1, %c0_2] : memref<72x128xbf16, #tpu.memory_space<vmem>>, vector<72x128xbf16>
    %cst = arith.constant dense<0.000000e+00> : vector<128x128xf32>
    %2 = tpu.matmul %0, %1, %cst {dimension_numbers = #tpu.dot_dimension_numbers<[1], [0], [0], [1], [0, 0, 1, 1], [], []>} : vector<128x72xbf16>, vector<72x128xbf16>, vector<128x128xf32> -> vector<128x128xf32>
    %c0_3 = arith.constant 0 : index
    %c0_4 = arith.constant 0 : index
    %3 = vector.load %arg3[%c0_3, %c0_4] : memref<1x128xf32, #tpu.memory_space<vmem>>, vector<1x128xf32>
    %4 = vector.broadcast %3 : vector<1x128xf32> to vector<128x128xf32>
    %5 = arith.mulf %2, %4 : vector<128x128xf32>
    %c0_5 = arith.constant 0 : index
    %c0_6 = arith.constant 0 : index
    %6 = vector.load %arg4[%c0_5, %c0_6] : memref<1x128xf32, #tpu.memory_space<vmem>>, vector<1x128xf32>
    %7 = vector.broadcast %6 : vector<1x128xf32> to vector<128x128xf32>
    %8 = arith.addf %5, %7 : vector<128x128xf32>
    %cst_7 = arith.constant 0.000000e+00 : f32
    %9 = vector.broadcast %cst_7 : f32 to vector<128x128xf32>
    %10 = arith.maximumf %8, %9 : vector<128x128xf32>
    %c0_8 = arith.constant 0 : index
    %c0_9 = arith.constant 0 : index
    %11 = vector.load %arg5[%c0_8, %c0_9] : memref<128x128xf32, #tpu.memory_space<vmem>>, vector<128x128xf32>
    tpu.vector_store %arg5[%c0_8, %c0_9], %10 {strides = array<i32>} : memref<128x128xf32, #tpu.memory_space<vmem>>, vector<128x128xf32>,
    return
  }
  func.func @transform_0(%arg0: i32) -> (i32, i32) {
    %c0_i32 = arith.constant 0 : i32
    %c0_i32_0 = arith.constant 0 : i32
    return %arg0, %c0_i32 : i32, i32
  }
  func.func @transform_1(%arg0: i32) -> (i32, i32) {
    %c0_i32 = arith.constant 0 : i32
    %c0_i32_0 = arith.constant 0 : i32
    %c0_i32_1 = arith.constant 0 : i32
    return %c0_i32, %c0_i32_0 : i32, i32
  }
  func.func @transform_2(%arg0: i32) -> (i32, i32) {
    %c0_i32 = arith.constant 0 : i32
    %c0_i32_0 = arith.constant 0 : i32
    %c0_i32_1 = arith.constant 0 : i32
    return %c0_i32, %c0_i32_0 : i32, i32
  }
  func.func @transform_3(%arg0: i32) -> (i32, i32) {
    %c0_i32 = arith.constant 0 : i32
    %c0_i32_0 = arith.constant 0 : i32
    %c0_i32_1 = arith.constant 0 : i32
    return %c0_i32, %c0_i32_0 : i32, i32
  }
  func.func @transform_4(%arg0: i32) -> (i32, i32) {
    %c0_i32 = arith.constant 0 : i32
    %c0_i32_0 = arith.constant 0 : i32
    return %arg0, %c0_i32 : i32, i32
  }
}

module attributes {stable_mosaic.version = 11 : i64} {
  func.func @_stats_kernel(%arg0: i32, %arg1: memref<32x144xbf16, #tpu.memory_space<vmem>>, %arg2: memref<144x128xbf16, #tpu.memory_space<vmem>>, %arg3: memref<8x128xf32, #tpu.memory_space<vmem>>) attributes {dimension_semantics = [#tpu.dimension_semantics<parallel>], iteration_bounds = array<i64: 1>, scalar_prefetch = 0 : i64, scratch_operands = 0 : i64, tpu.core_type = #tpu.core_type<tc>, window_params = [{transform_indices = @transform_0, window_bounds = array<i64: 32, 144>}, {pipeline_mode = #tpu.pipeline_mode<synchronous>, transform_indices = @transform_1, window_bounds = array<i64: 144, 128>}, {transform_indices = @transform_2, window_bounds = array<i64: 8, 128>}]} {
    %c0 = arith.constant 0 : index
    %c0_0 = arith.constant 0 : index
    %0 = vector.load %arg1[%c0, %c0_0] : memref<32x144xbf16, #tpu.memory_space<vmem>>, vector<32x144xbf16>
    %c0_1 = arith.constant 0 : index
    %c0_2 = arith.constant 0 : index
    %1 = vector.load %arg2[%c0_1, %c0_2] : memref<144x128xbf16, #tpu.memory_space<vmem>>, vector<144x128xbf16>
    %cst = arith.constant dense<0.000000e+00> : vector<32x128xf32>
    %2 = tpu.matmul %0, %1, %cst {dimension_numbers = #tpu.dot_dimension_numbers<[1], [0], [0], [1], [0, 0, 1, 1], [], []>} : vector<32x144xbf16>, vector<144x128xbf16>, vector<32x128xf32> -> vector<32x128xf32>
    %c32_i32 = arith.constant 32 : i32
    %3 = arith.muli %arg0, %c32_i32 : i32
    %4 = tpu.iota {dimensions = array<i32: 0>} : vector<32x1xi32>
    %5 = vector.broadcast %3 : i32 to vector<32x1xi32>
    %6 = arith.addi %5, %4 : vector<32x1xi32>
    %c32_i32_3 = arith.constant 32 : i32
    %7 = vector.broadcast %c32_i32_3 : i32 to vector<32x1xi32>
    %8 = arith.cmpi slt, %6, %7 : vector<32x1xi32>
    %9 = arith.extui %8 : vector<32x1xi1> to vector<32x1xi32>
    %10 = arith.sitofp %9 : vector<32x1xi32> to vector<32x1xf32>
    %c32_i32_4 = arith.constant 32 : i32
    %11 = arith.muli %arg0, %c32_i32_4 : i32
    %c32_i32_5 = arith.constant 32 : i32
    %12 = arith.subi %c32_i32_5, %11 : i32
    %c32_i32_6 = arith.constant 32 : i32
    %13 = arith.minsi %12, %c32_i32_6 : i32
    %14 = arith.sitofp %13 : i32 to f32
    %15 = vector.broadcast %10 : vector<32x1xf32> to vector<32x128xf32>
    %16 = arith.mulf %2, %15 : vector<32x128xf32>
    %cst_7 = arith.constant dense<0.000000e+00> : vector<128xf32>
    %17 = vector.multi_reduction <add>, %16, %cst_7 [0] : vector<32x128xf32> to vector<128xf32>
    %18 = vector.shape_cast %17 : vector<128xf32> to vector<1x128xf32>
    %19 = vector.broadcast %14 : f32 to vector<1x128xf32>
    %20 = arith.divf %18, %19 : vector<1x128xf32>
    %21 = vector.broadcast %20 : vector<1x128xf32> to vector<32x128xf32>
    %22 = arith.subf %2, %21 : vector<32x128xf32>
    %23 = vector.broadcast %10 : vector<32x1xf32> to vector<32x128xf32>
    %24 = arith.mulf %22, %23 : vector<32x128xf32>
    %25 = arith.mulf %24, %24 : vector<32x128xf32>
    %cst_8 = arith.constant dense<0.000000e+00> : vector<128xf32>
    %26 = vector.multi_reduction <add>, %25, %cst_8 [0] : vector<32x128xf32> to vector<128xf32>
    %27 = vector.shape_cast %26 : vector<128xf32> to vector<1x128xf32>
    %28 = vector.broadcast %14 : f32 to vector<1x128xf32>
    %cst_9 = arith.constant 0.000000e+00 : f32
    %29 = vector.broadcast %cst_9 : f32 to vector<5x128xf32>
    %30 = tpu.concatenate %18, %27, %28, %29 in 0 : vector<1x128xf32>, vector<1x128xf32>, vector<1x128xf32>, vector<5x128xf32> -> vector<8x128xf32>
    %c0_10 = arith.constant 0 : index
    %c0_11 = arith.constant 0 : index
    %31 = vector.load %arg3[%c0_10, %c0_11] : memref<8x128xf32, #tpu.memory_space<vmem>>, vector<8x128xf32>
    tpu.vector_store %arg3[%c0_10, %c0_11], %30 {strides = array<i32>} : memref<8x128xf32, #tpu.memory_space<vmem>>, vector<8x128xf32>,
    return
  }
  func.func @transform_0(%arg0: i32) -> (i32, i32) {
    %c0_i32 = arith.constant 0 : i32
    %c0_i32_0 = arith.constant 0 : i32
    return %arg0, %c0_i32 : i32, i32
  }
  func.func @transform_1(%arg0: i32) -> (i32, i32) {
    %c0_i32 = arith.constant 0 : i32
    %c0_i32_0 = arith.constant 0 : i32
    %c0_i32_1 = arith.constant 0 : i32
    return %c0_i32, %c0_i32_0 : i32, i32
  }
  func.func @transform_2(%arg0: i32) -> (i32, i32) {
    %c0_i32 = arith.constant 0 : i32
    %c0_i32_0 = arith.constant 0 : i32
    return %arg0, %c0_i32 : i32, i32
  }
}

module attributes {stable_mosaic.version = 11 : i64} {
  func.func @_gemm_bn_relu_kernel(%arg0: i32, %arg1: memref<32x144xbf16, #tpu.memory_space<vmem>>, %arg2: memref<144x128xbf16, #tpu.memory_space<vmem>>, %arg3: memref<1x128xf32, #tpu.memory_space<vmem>>, %arg4: memref<1x128xf32, #tpu.memory_space<vmem>>, %arg5: memref<32x128xf32, #tpu.memory_space<vmem>>) attributes {dimension_semantics = [#tpu.dimension_semantics<parallel>], iteration_bounds = array<i64: 1>, scalar_prefetch = 0 : i64, scratch_operands = 0 : i64, tpu.core_type = #tpu.core_type<tc>, window_params = [{transform_indices = @transform_0, window_bounds = array<i64: 32, 144>}, {pipeline_mode = #tpu.pipeline_mode<synchronous>, transform_indices = @transform_1, window_bounds = array<i64: 144, 128>}, {pipeline_mode = #tpu.pipeline_mode<synchronous>, transform_indices = @transform_2, window_bounds = array<i64: 1, 128>}, {pipeline_mode = #tpu.pipeline_mode<synchronous>, transform_indices = @transform_3, window_bounds = array<i64: 1, 128>}, {transform_indices = @transform_4, window_bounds = array<i64: 32, 128>}]} {
    %c0 = arith.constant 0 : index
    %c0_0 = arith.constant 0 : index
    %0 = vector.load %arg1[%c0, %c0_0] : memref<32x144xbf16, #tpu.memory_space<vmem>>, vector<32x144xbf16>
    %c0_1 = arith.constant 0 : index
    %c0_2 = arith.constant 0 : index
    %1 = vector.load %arg2[%c0_1, %c0_2] : memref<144x128xbf16, #tpu.memory_space<vmem>>, vector<144x128xbf16>
    %cst = arith.constant dense<0.000000e+00> : vector<32x128xf32>
    %2 = tpu.matmul %0, %1, %cst {dimension_numbers = #tpu.dot_dimension_numbers<[1], [0], [0], [1], [0, 0, 1, 1], [], []>} : vector<32x144xbf16>, vector<144x128xbf16>, vector<32x128xf32> -> vector<32x128xf32>
    %c0_3 = arith.constant 0 : index
    %c0_4 = arith.constant 0 : index
    %3 = vector.load %arg3[%c0_3, %c0_4] : memref<1x128xf32, #tpu.memory_space<vmem>>, vector<1x128xf32>
    %4 = vector.broadcast %3 : vector<1x128xf32> to vector<32x128xf32>
    %5 = arith.mulf %2, %4 : vector<32x128xf32>
    %c0_5 = arith.constant 0 : index
    %c0_6 = arith.constant 0 : index
    %6 = vector.load %arg4[%c0_5, %c0_6] : memref<1x128xf32, #tpu.memory_space<vmem>>, vector<1x128xf32>
    %7 = vector.broadcast %6 : vector<1x128xf32> to vector<32x128xf32>
    %8 = arith.addf %5, %7 : vector<32x128xf32>
    %cst_7 = arith.constant 0.000000e+00 : f32
    %9 = vector.broadcast %cst_7 : f32 to vector<32x128xf32>
    %10 = arith.maximumf %8, %9 : vector<32x128xf32>
    %c0_8 = arith.constant 0 : index
    %c0_9 = arith.constant 0 : index
    %11 = vector.load %arg5[%c0_8, %c0_9] : memref<32x128xf32, #tpu.memory_space<vmem>>, vector<32x128xf32>
    tpu.vector_store %arg5[%c0_8, %c0_9], %10 {strides = array<i32>} : memref<32x128xf32, #tpu.memory_space<vmem>>, vector<32x128xf32>,
    return
  }
  func.func @transform_0(%arg0: i32) -> (i32, i32) {
    %c0_i32 = arith.constant 0 : i32
    %c0_i32_0 = arith.constant 0 : i32
    return %arg0, %c0_i32 : i32, i32
  }
  func.func @transform_1(%arg0: i32) -> (i32, i32) {
    %c0_i32 = arith.constant 0 : i32
    %c0_i32_0 = arith.constant 0 : i32
    %c0_i32_1 = arith.constant 0 : i32
    return %c0_i32, %c0_i32_0 : i32, i32
  }
  func.func @transform_2(%arg0: i32) -> (i32, i32) {
    %c0_i32 = arith.constant 0 : i32
    %c0_i32_0 = arith.constant 0 : i32
    %c0_i32_1 = arith.constant 0 : i32
    return %c0_i32, %c0_i32_0 : i32, i32
  }
  func.func @transform_3(%arg0: i32) -> (i32, i32) {
    %c0_i32 = arith.constant 0 : i32
    %c0_i32_0 = arith.constant 0 : i32
    %c0_i32_1 = arith.constant 0 : i32
    return %c0_i32, %c0_i32_0 : i32, i32
  }
  func.func @transform_4(%arg0: i32) -> (i32, i32) {
    %c0_i32 = arith.constant 0 : i32
    %c0_i32_0 = arith.constant 0 : i32
    return %arg0, %c0_i32 : i32, i32
  }
}

</mosaic_0001>

<llo_original>
// kernel: downsample_forward.6
$region0: #{downsample_forward.6}
  #allocation0 [shape = 'u32[]', space=smem, size = 0x4, offset = 0x4, fixed_abs, tag = 'smem constant byte address 0x4 - core index']
  #allocation1 [shape = 'u32[72,128]{1,0:T(1,128)}', space=vmem, size = 0x9000, scoped, tag = 'internal scratch']
  %s0 = inlined_call_operand.vmem [shape: bf16[512,200], index: 0, kind: input, shape index: {}]
  %s1 = inlined_call_operand.vmem [shape: bf16[200,128], index: 1, kind: input, shape index: {}]
  %s2 = inlined_call_operand.vmem [shape: f32[16,128], index: 2, kind: output, shape index: {}]
  %s3 = sld [smem:[#allocation0]]
  $region41: #{downsample_forward.6} parent=0
    _
  %s5 = ssub.s32 1, %s3
  %s6 = scalar_select 0, %s5, %s3
  loop: start=0, step=1, limit=4
  $region2: #{downsample_forward.6} parent=0 // loop_pre_header
    _
  $region3: #{downsample_forward.6} parent=0 // loop_header
    %s8 = sphi 0, %s12
    %p9 = scmp.ge.s32.totalorder %s8, 4
    %s18 = sphi 0, %s20
    %s21 = sphi 0, %s18
    %s22 = sphi 0, %s21
    %s38 = sphi 0, %s22
    %s42 = sphi 0, %s42
    %s44 = sphi 0, %s42
    %s45 = sphi 0, %s44
    %s59 = sphi 0, %s45
    %s65 = sphi 0, %s67
    %s68 = sphi 0, %s65
    %s69 = sphi 0, %s68
    %s85 = sphi 0, %s69
  $region4: #{downsample_forward.6} parent=0 // loop_header_branch
    %11 = sbr.rel (%p9) target = $region8
  $region5: #{downsample_forward.6} parent=0 // loop_body
    %s13 = ssub.s32 %s8, 1
    %s14 = ssub.s32 %s8, 2
    %s15 = sadd.s32 %s8, 1
    %s16 = ssub.s32 %s8, %s15
    %p17 = scmp.eq.s32.totalorder %s16, 0
    %s19 = sadd.s32 %s18, 1
    %s20 = scalar_select %p17, %s18, %s19
    %p23 = pneg %p17
    %p24 = scmp.eq.s32.totalorder %s8, 1
    %p25 = por %p23, %p24
    %p26 = scmp.ne.s32.totalorder %s18, %s21
    %p27 = scmp.eq.s32.totalorder %s8, 0
    %p28 = por %p26, %p27
    %p29 = scmp.ne.s32.totalorder %s18, %s21
    %p30 = scmp.eq.s32.totalorder %s13, 1
    %p31 = por %p29, %p30
    %p32 = scmp.ne.s32.totalorder %s21, %s22
    %p33 = scmp.eq.s32.totalorder %s13, 0
    %p34 = por %p32, %p33
    %p35 = scmp.ne.s32.totalorder %s21, %s22
    %p36 = scmp.eq.s32.totalorder %s14, 1
    %p37 = por %p35, %p36
    %p39 = scmp.ne.s32.totalorder %s22, %s38
    %p40 = scmp.eq.s32.totalorder %s14, 0
    %p41 = por %p39, %p40
    %s43 = sadd.s32 %s42, 1
    %p46 = scmp.eq.s32.totalorder %s8, 1
    %p47 = scmp.ne.s32.totalorder %s42, %s44
    %p48 = scmp.eq.s32.totalorder %s8, 0
    %p49 = por %p47, %p48
    %p50 = scmp.ne.s32.totalorder %s42, %s44
    %p51 = scmp.eq.s32.totalorder %s13, 1
    %p52 = por %p50, %p51
    %p53 = scmp.ne.s32.totalorder %s44, %s45
    %p54 = scmp.eq.s32.totalorder %s13, 0
    %p55 = por %p53, %p54
    %p56 = scmp.ne.s32.totalorder %s44, %s45
    %p57 = scmp.eq.s32.totalorder %s14, 1
    %p58 = por %p56, %p57
    %p60 = scmp.ne.s32.totalorder %s45, %s59
    %p61 = scmp.eq.s32.totalorder %s14, 0
    %p62 = por %p60, %p61
    %s63 = ssub.s32 %s8, %s15
    %p64 = scmp.eq.s32.totalorder %s63, 0
    %s66 = sadd.s32 %s65, 1
    %s67 = scalar_select %p64, %s65, %s66
    %p70 = pneg %p64
    %p71 = scmp.eq.s32.totalorder %s8, 1
    %p72 = por %p70, %p71
    %p73 = scmp.ne.s32.totalorder %s65, %s68
    %p74 = scmp.eq.s32.totalorder %s8, 0
    %p75 = por %p73, %p74
    %p76 = scmp.ne.s32.totalorder %s65, %s68
    %p77 = scmp.eq.s32.totalorder %s13, 1
    %p78 = por %p76, %p77
    %p79 = scmp.ne.s32.totalorder %s68, %s69
    %p80 = scmp.eq.s32.totalorder %s13, 0
    %p81 = por %p79, %p80
    %p82 = scmp.ne.s32.totalorder %s68, %s69
    %p83 = scmp.eq.s32.totalorder %s14, 1
    %p84 = por %p82, %p83
    %p86 = scmp.ne.s32.totalorder %s69, %s85
    %p87 = scmp.eq.s32.totalorder %s14, 0
    %p88 = por %p86, %p87
    %p89 = scmp.le.s32.totalorder 1, %s8
    %p90 = scmp.lt.s32.totalorder %s8, 3
    %p91 = pnand %p89, %p90
    %p92 = pneg %p91
    // Predicated region
    $region9: #{downsample_forward.6} parent=5 // pred_check
      _
    $region10: #{downsample_forward.6} parent=5 // pred_check_branch
      %94 = sbr.rel (%p91) target = $region12
    $region11: #{downsample_forward.6} parent=5 // pred_region
      %s95 = ssub.s32 %s8, 1
      // Predicated region
      $region13: #{downsample_forward.6} parent=11 // pred_check
        %p96 = pneg %p55
      $region14: #{downsample_forward.6} parent=11 // pred_check_branch
        %98 = sbr.rel (%p96) target = $region16
      $region15: #{downsample_forward.6} parent=11 // pred_region
        _
      $region16: #{downsample_forward.6} parent=11 // pred_fallthru
        _
    $region12: #{downsample_forward.6} parent=5 // pred_fallthru
      _
    %p99 = scmp.lt.s32.totalorder %s8, 2
    // Predicated region
    $region17: #{downsample_forward.6} parent=5 // pred_check
      %p100 = pneg %p99
    $region18: #{downsample_forward.6} parent=5 // pred_check_branch
      %102 = sbr.rel (%p100) target = $region20
    $region19: #{downsample_forward.6} parent=5 // pred_region
      // Predicated region
      $region21: #{downsample_forward.6} parent=19 // pred_check
        %p103 = pneg %p28
      $region22: #{downsample_forward.6} parent=19 // pred_check_branch
        %105 = sbr.rel (%p103) target = $region24
      $region23: #{downsample_forward.6} parent=19 // pred_region
        %s106 = smul.u32 32, %s8
        %p107 = scmp.lt.s32.totalorder %s106, 63
        %s108 = scalar_select %p107, %s106, 63
        %s109 = smul.addr %s108, 2
        %s110 = smul.addr %s109, 4
        %s111 = scalar_lea.vmem %s0, %s110
        %s112 = smul.u32 32, %s8
      $region24: #{downsample_forward.6} parent=19 // pred_fallthru
        _
    $region20: #{downsample_forward.6} parent=5 // pred_fallthru
      _
    %p113 = scmp.le.s32.totalorder 1, %s8
    %p114 = scmp.lt.s32.totalorder %s8, 3
    %p115 = pnand %p113, %p114
    %p116 = pneg %p115
    // Predicated region
    $region25: #{downsample_forward.6} parent=5 // pred_check
      _
    $region26: #{downsample_forward.6} parent=5 // pred_check_branch
      %118 = sbr.rel (%p115) target = $region28
    $region27: #{downsample_forward.6} parent=5 // pred_region
      %s119 = ssub.s32 %s8, 1
      %s120 = smul.u32 32, %s13
      %p121 = scmp.lt.s32.totalorder %s120, 63
      %s122 = scalar_select %p121, %s120, 63
      %s123 = smul.addr %s122, 2
      %s124 = smul.addr %s123, 4
      %s125 = scalar_lea.vmem %s0, %s124
      %p126 = pneg %p34
      %p127 = pneg %p31
      %p128 = pneg %p55
      %p129 = pneg %p52
      %p130 = pneg %p81
      %p131 = pneg %p78
      %p132 = scmp.lt.s32.totalorder %s13, 1
      %s133 = scalar_select %p132, %s13, 1
      %s134 = smul.addr %s133, 8
      %s135 = scalar_lea.vmem %s2, %s134
      %s136 = smul.u32 32, %s13
      %p137 = scmp.lt.s32.totalorder %s136, 63
      %s138 = scalar_select %p137, %s136, 63
      %s139 = smul.addr %s138, 2
      %s140 = smul.addr %s139, 4
      %s141 = scalar_lea.vmem %s0, %s140
      %s142 = smul.u32 32, %s13
      %p143 = scmp.lt.s32.totalorder %s13, 1
      %s144 = scalar_select %p143, %s13, 1
      %s145 = smul.addr %s144, 8
      %s146 = scalar_lea.vmem %s2, %s145
      %v148 = vld [vmem:[%s141] sm:$0xff]
      %v149 = vld [vmem:[%s141 + $0x8] sm:$0xff]
      %v150 = vld [vmem:[%s141 + $0x10] sm:$0xff]
      %v151 = vld [vmem:[%s141 + $0x18] sm:$0xff]
      %v152 = vld [vmem:[%s141 + $0x20] sm:$0xff]
      %v153 = vld [vmem:[%s141 + $0x28] sm:$0xff]
      %v154 = vld [vmem:[%s141 + $0x30] sm:$0xff]
      %v155 = vld [vmem:[%s141 + $0x38] sm:$0xff]
      %v156 = vld [vmem:[%s141 + $0x40] sm:$0xff]
      %v157 = vld [vmem:[%s141 + $0x48] sm:$0xff]
      %v158 = vld [vmem:[%s141 + $0x50] sm:$0xff]
      %v159 = vld [vmem:[%s141 + $0x58] sm:$0xff]
      %v160 = vld [vmem:[%s141 + $0x60] sm:$0xff]
      %v161 = vld [vmem:[%s141 + $0x68] sm:$0xff]
      %v162 = vld [vmem:[%s141 + $0x70] sm:$0xff]
      %v163 = vld [vmem:[%s141 + $0x78] sm:$0xff]
      %v164 = vld [vmem:[%s141 + $0x80] sm:$0xff]
      %v165 = vld [vmem:[%s141 + $0x88] sm:$0xff]
      %v166 = vld [vmem:[%s141 + $0x90] sm:$0xff]
      %v167 = vld [vmem:[%s141 + $0x98] sm:$0xff]
      %v168 = vld [vmem:[%s141 + $0xa0] sm:$0xff]
      %v169 = vld [vmem:[%s141 + $0xa8] sm:$0xff]
      %v170 = vld [vmem:[%s141 + $0xb0] sm:$0xff]
      %v171 = vld [vmem:[%s141 + $0xb8] sm:$0xff]
      %v172 = vld [vmem:[%s141 + $0xc0] sm:$0xff]
      %v173 = vld [vmem:[%s141 + $0xc8] sm:$0xff]
      %v174 = vld [vmem:[%s141 + $0xd0] sm:$0xff]
      %v175 = vld [vmem:[%s141 + $0xd8] sm:$0xff]
      %v176 = vld [vmem:[%s141 + $0xe0] sm:$0xff]
      %v177 = vld [vmem:[%s141 + $0xe8] sm:$0xff]
      %v178 = vld [vmem:[%s141 + $0xf0] sm:$0xff]
      %v179 = vld [vmem:[%s141 + $0xf8] sm:$0xff]
      %v180 = vld [vmem:[%s1] sm:$0xf]
      %v181 = vld [vmem:[%s1 + $0x4] sm:$0xf]
      %v182 = vld [vmem:[%s1 + $0x8] sm:$0xf]
      %v183 = vld [vmem:[%s1 + $0xc] sm:$0xf]
      %v184 = vld [vmem:[%s1 + $0x10] sm:$0xf]
      %v185 = vld [vmem:[%s1 + $0x14] sm:$0xf]
      %v186 = vld [vmem:[%s1 + $0x18] sm:$0xf]
      %v187 = vld [vmem:[%s1 + $0x1c] sm:$0xf]
      %v188 = vld [vmem:[%s1 + $0x20] sm:$0xf]
      %v189 = vld [vmem:[%s1 + $0x24] sm:$0xf]
      %v190 = vld [vmem:[%s1 + $0x28] sm:$0xf]
      %v191 = vld [vmem:[%s1 + $0x2c] sm:$0xf]
      %v192 = vld [vmem:[%s1 + $0x30] sm:$0xf]
      %v193 = vld [vmem:[%s1 + $0x34] sm:$0xf]
      %v194 = vld [vmem:[%s1 + $0x38] sm:$0xf]
      %v195 = vld [vmem:[%s1 + $0x3c] sm:$0xf]
      %v196 = vld [vmem:[%s1 + $0x40] sm:$0xf]
      %v197 = vld [vmem:[%s1 + $0x44] sm:$0xf]
      %v198 = vld [vmem:[%s1 + $0x48] sm:$0xf]
      %v199 = vld [vmem:[%s1 + $0x4c] sm:$0xf]
      %v200 = vld [vmem:[%s1 + $0x50] sm:$0xf]
      %v201 = vld [vmem:[%s1 + $0x54] sm:$0xf]
      %v202 = vld [vmem:[%s1 + $0x58] sm:$0xf]
      %v203 = vld [vmem:[%s1 + $0x5c] sm:$0xf]
      %v204 = vld [vmem:[%s1 + $0x60] sm:$0xf]
      %v237 = vunpack.c.l.b16 %v148
      %v238 = vunpack.c.h.b16 %v148
      %v239 = vunpack.c.l.b16 %v149
      %v240 = vunpack.c.h.b16 %v149
      %v241 = vunpack.c.l.b16 %v150
      %v242 = vunpack.c.h.b16 %v150
      %v243 = vunpack.c.l.b16 %v151
      %v244 = vunpack.c.h.b16 %v151
      %v245 = vunpack.c.l.b16 %v152
      %v246 = vunpack.c.h.b16 %v152
      %v247 = vunpack.c.l.b16 %v153
      %v248 = vunpack.c.h.b16 %v153
      %v249 = vunpack.c.l.b16 %v154
      %v250 = vunpack.c.h.b16 %v154
      %v251 = vunpack.c.l.b16 %v155
      %v252 = vunpack.c.h.b16 %v155
      %v253 = vunpack.c.l.b16 %v156
      %v254 = vunpack.c.h.b16 %v156
      %v255 = vunpack.c.l.b16 %v157
      %v256 = vunpack.c.h.b16 %v157
      %v257 = vunpack.c.l.b16 %v158
      %v258 = vunpack.c.h.b16 %v158
      %v259 = vunpack.c.l.b16 %v159
      %v260 = vunpack.c.h.b16 %v159
      %v261 = vunpack.c.l.b16 %v160
      %v262 = vunpack.c.h.b16 %v160
      %v263 = vunpack.c.l.b16 %v161
      %v264 = vunpack.c.h.b16 %v161
      %v265 = vunpack.c.l.b16 %v162
      %v266 = vunpack.c.h.b16 %v162
      %v267 = vunpack.c.l.b16 %v163
      %v268 = vunpack.c.h.b16 %v163
      %v269 = vunpack.c.l.b16 %v164
      %v270 = vunpack.c.h.b16 %v164
      %v271 = vunpack.c.l.b16 %v165
      %v272 = vunpack.c.h.b16 %v165
      %v273 = vunpack.c.l.b16 %v166
      %v274 = vunpack.c.h.b16 %v166
      %v275 = vunpack.c.l.b16 %v167
      %v276 = vunpack.c.h.b16 %v167
      %v277 = vunpack.c.l.b16 %v168
      %v278 = vunpack.c.h.b16 %v168
      %v279 = vunpack.c.l.b16 %v169
      %v280 = vunpack.c.h.b16 %v169
      %v281 = vunpack.c.l.b16 %v170
      %v282 = vunpack.c.h.b16 %v170
      %v283 = vunpack.c.l.b16 %v171
      %v284 = vunpack.c.h.b16 %v171
      %v285 = vunpack.c.l.b16 %v172
      %v286 = vunpack.c.h.b16 %v172
      %v287 = vunpack.c.l.b16 %v173
      %v288 = vunpack.c.h.b16 %v173
      %v289 = vunpack.c.l.b16 %v174
      %v290 = vunpack.c.h.b16 %v174
      %v291 = vunpack.c.l.b16 %v175
      %v292 = vunpack.c.h.b16 %v175
      %v293 = vunpack.c.l.b16 %v176
      %v294 = vunpack.c.h.b16 %v176
      %v295 = vunpack.c.l.b16 %v177
      %v296 = vunpack.c.h.b16 %v177
      %v297 = vunpack.c.l.b16 %v178
      %v298 = vunpack.c.h.b16 %v178
      %v299 = vunpack.c.l.b16 %v179
      %v300 = vunpack.c.h.b16 %v179
      %v301 = vpack.c.b16 %v239, %v237
      %v302 = vpack.c.b16 %v240, %v238
      %v303 = vpack.c.b16 %v243, %v241
      %v304 = vpack.c.b16 %v244, %v242
      %v305 = vpack.c.b16 %v247, %v245
      %v306 = vpack.c.b16 %v248, %v246
      %v307 = vpack.c.b16 %v251, %v249
      %v308 = vpack.c.b16 %v252, %v250
      %v309 = vpack.c.b16 %v255, %v253
      %v310 = vpack.c.b16 %v256, %v254
      %v311 = vpack.c.b16 %v259, %v257
      %v312 = vpack.c.b16 %v260, %v258
      %v313 = vpack.c.b16 %v263, %v261
      %v314 = vpack.c.b16 %v264, %v262
      %v315 = vpack.c.b16 %v267, %v265
      %v316 = vpack.c.b16 %v268, %v266
      %v317 = vpack.c.b16 %v271, %v269
      %v318 = vpack.c.b16 %v272, %v270
      %v319 = vpack.c.b16 %v275, %v273
      %v320 = vpack.c.b16 %v276, %v274
      %v321 = vpack.c.b16 %v279, %v277
      %v322 = vpack.c.b16 %v280, %v278
      %v323 = vpack.c.b16 %v283, %v281
      %v324 = vpack.c.b16 %v284, %v282
      %v325 = vpack.c.b16 %v287, %v285
      %v326 = vpack.c.b16 %v288, %v286
      %v327 = vpack.c.b16 %v291, %v289
      %v328 = vpack.c.b16 %v292, %v290
      %v329 = vpack.c.b16 %v295, %v293
      %v330 = vpack.c.b16 %v296, %v294
      %v331 = vpack.c.b16 %v299, %v297
      %v332 = vpack.c.b16 %v300, %v298
      %v374 = vunpack.c.l.b16 %v180
      %v375 = vunpack.c.l.b16 %v181
      %v376 = vunpack.c.l.b16 %v182
      %v377 = vunpack.c.l.b16 %v183
      %v378 = vunpack.c.l.b16 %v184
      %v379 = vunpack.c.l.b16 %v185
      %v380 = vunpack.c.l.b16 %v186
      %v381 = vunpack.c.l.b16 %v187
      %v382 = vunpack.c.l.b16 %v188
      %v383 = vunpack.c.l.b16 %v189
      %v384 = vunpack.c.l.b16 %v190
      %v385 = vunpack.c.l.b16 %v191
      %v386 = vunpack.c.l.b16 %v192
      %v387 = vunpack.c.l.b16 %v193
      %v388 = vunpack.c.l.b16 %v194
      %v389 = vunpack.c.l.b16 %v195
      %v390 = vunpack.c.l.b16 %v196
      %v391 = vunpack.c.l.b16 %v197
      %v392 = vunpack.c.l.b16 %v198
      %v393 = vunpack.c.l.b16 %v199
      %v394 = vunpack.c.l.b16 %v200
      %v395 = vunpack.c.l.b16 %v201
      %v396 = vunpack.c.l.b16 %v202
      %v397 = vunpack.c.l.b16 %v203
      %v398 = vunpack.c.l.b16 %v204
      %v399 = vpack.c.b16 %v375, %v374
      %v400 = vpack.c.b16 %v377, %v376
      %v401 = vpack.c.b16 %v379, %v378
      %v402 = vpack.c.b16 %v381, %v380
      %v403 = vpack.c.b16 %v383, %v382
      %v404 = vpack.c.b16 %v385, %v384
      %v405 = vpack.c.b16 %v387, %v386
      %v406 = vpack.c.b16 %v389, %v388
      %v407 = vpack.c.b16 %v391, %v390
      %v408 = vpack.c.b16 %v393, %v392
      %v409 = vpack.c.b16 %v395, %v394
      %v410 = vpack.c.b16 %v397, %v396
      %v411 = vpack.c.b16 %v398, %v398
      %vm424 = vcmask 588800
      %v426 = vsel %vm424, %v302, 0
      %v429 = vsel %vm424, %v304, 0
      %v432 = vsel %vm424, %v306, 0
      %v435 = vsel %vm424, %v308, 0
      %v438 = vsel %vm424, %v310, 0
      %v441 = vsel %vm424, %v312, 0
      %v444 = vsel %vm424, %v314, 0
      %v447 = vsel %vm424, %v316, 0
      %v450 = vsel %vm424, %v318, 0
      %v453 = vsel %vm424, %v320, 0
      %v456 = vsel %vm424, %v322, 0
      %v459 = vsel %vm424, %v324, 0
      %v462 = vsel %vm424, %v326, 0
      %v465 = vsel %vm424, %v328, 0
      %v468 = vsel %vm424, %v330, 0
      %v471 = vsel %vm424, %v332, 0
      %vm473 = vcmask 1043456
      %v475 = vsel %vm473, %v411, 0
      %477 = vmatpush.bf16.msra.mxu0 %v406
      %478 = vmatpush.bf16.msra.mxu0 %v405
      %479 = vmatpush.bf16.msra.mxu0 %v404
      %480 = vmatpush.bf16.msra.mxu0 %v403
      %481 = vmatpush.bf16.msra.mxu0 %v402
      %482 = vmatpush.bf16.msra.mxu0 %v401
      %483 = vmatpush.bf16.msra.mxu0 %v400
      %484 = vmatpush.bf16.msra.mxu0 %v399
      %485 = vmatmul.bf16.gmra.mxu0 %v301
      %v486 = vpop.f32.mrf.mxu0
      %v487 = vadd.f32 0.0, %v486
      %v488 = vpop.f32.mrf.mxu0
      %v489 = vadd.f32 0.0, %v488
      %490 = vmatmul.bf16.gmra.mxu0 %v303
      %v491 = vpop.f32.mrf.mxu0
      %v492 = vadd.f32 0.0, %v491
      %v493 = vpop.f32.mrf.mxu0
      %v494 = vadd.f32 0.0, %v493
      %495 = vmatmul.bf16.gmra.mxu0 %v305
      %v496 = vpop.f32.mrf.mxu0
      %v497 = vadd.f32 0.0, %v496
      %v498 = vpop.f32.mrf.mxu0
      %v499 = vadd.f32 0.0, %v498
      %500 = vmatmul.bf16.gmra.mxu0 %v307
      %v501 = vpop.f32.mrf.mxu0
      %v502 = vadd.f32 0.0, %v501
      %v503 = vpop.f32.mrf.mxu0
      %v504 = vadd.f32 0.0, %v503
      %505 = vmatmul.bf16.gmra.mxu0 %v309
      %v506 = vpop.f32.mrf.mxu0
      %v507 = vadd.f32 0.0, %v506
      %v508 = vpop.f32.mrf.mxu0
      %v509 = vadd.f32 0.0, %v508
      %510 = vmatmul.bf16.gmra.mxu0 %v311
      %v511 = vpop.f32.mrf.mxu0
      %v512 = vadd.f32 0.0, %v511
      %v513 = vpop.f32.mrf.mxu0
      %v514 = vadd.f32 0.0, %v513
      %515 = vmatmul.bf16.gmra.mxu0 %v313
      %v516 = vpop.f32.mrf.mxu0
      %v517 = vadd.f32 0.0, %v516
      %v518 = vpop.f32.mrf.mxu0
      %v519 = vadd.f32 0.0, %v518
      %520 = vmatmul.bf16.gmra.mxu0 %v315
      %v521 = vpop.f32.mrf.mxu0
      %v522 = vadd.f32 0.0, %v521
      %v523 = vpop.f32.mrf.mxu0
      %v524 = vadd.f32 0.0, %v523
      %525 = vmatmul.bf16.gmra.mxu0 %v317
      %v526 = vpop.f32.mrf.mxu0
      %v527 = vadd.f32 0.0, %v526
      %v528 = vpop.f32.mrf.mxu0
      %v529 = vadd.f32 0.0, %v528
      %530 = vmatmul.bf16.gmra.mxu0 %v319
      %v531 = vpop.f32.mrf.mxu0
      %v532 = vadd.f32 0.0, %v531
      %v533 = vpop.f32.mrf.mxu0
      %v534 = vadd.f32 0.0, %v533
      %535 = vmatmul.bf16.gmra.mxu0 %v321
      %v536 = vpop.f32.mrf.mxu0
      %v537 = vadd.f32 0.0, %v536
      %v538 = vpop.f32.mrf.mxu0
      %v539 = vadd.f32 0.0, %v538
      %540 = vmatmul.bf16.gmra.mxu0 %v323
      %v541 = vpop.f32.mrf.mxu0
      %v542 = vadd.f32 0.0, %v541
      %v543 = vpop.f32.mrf.mxu0
      %v544 = vadd.f32 0.0, %v543
      %545 = vmatmul.bf16.gmra.mxu0 %v325
      %v546 = vpop.f32.mrf.mxu0
      %v547 = vadd.f32 0.0, %v546
      %v548 = vpop.f32.mrf.mxu0
      %v549 = vadd.f32 0.0, %v548
      %550 = vmatmul.bf16.gmra.mxu0 %v327
      %v551 = vpop.f32.mrf.mxu0
      %v552 = vadd.f32 0.0, %v551
      %v553 = vpop.f32.mrf.mxu0
      %v554 = vadd.f32 0.0, %v553
      %555 = vmatmul.bf16.gmra.mxu0 %v329
      %v556 = vpop.f32.mrf.mxu0
      %v557 = vadd.f32 0.0, %v556
      %v558 = vpop.f32.mrf.mxu0
      %v559 = vadd.f32 0.0, %v558
      %560 = vmatmul.bf16.gmra.mxu0 %v331
      %v561 = vpop.f32.mrf.mxu0
      %v562 = vadd.f32 0.0, %v561
      %v563 = vpop.f32.mrf.mxu0
      %v564 = vadd.f32 0.0, %v563
      %565 = vdwg.mxu0
      %566 = vmatpush.bf16.msra.mxu0 0
      %567 = vmatpush.bf16.msra.mxu0 0
      %568 = vmatpush.bf16.msra.mxu0 0
      %569 = vmatpush.bf16.msra.mxu0 %v475
      %570 = vmatpush.bf16.msra.mxu0 %v410
      %571 = vmatpush.bf16.msra.mxu0 %v409
      %572 = vmatpush.bf16.msra.mxu0 %v408
      %573 = vmatpush.bf16.msra.mxu0 %v407
      %574 = vmatmul.bf16.gmra.mxu0 %v426
      %v575 = vpop.f32.mrf.mxu0
      %v576 = vadd.f32 %v487, %v575
      %v577 = vpop.f32.mrf.mxu0
      %v578 = vadd.f32 %v489, %v577
      %579 = vmatmul.bf16.gmra.mxu0 %v429
      %v580 = vpop.f32.mrf.mxu0
      %v581 = vadd.f32 %v492, %v580
      %v582 = vpop.f32.mrf.mxu0
      %v583 = vadd.f32 %v494, %v582
      %584 = vmatmul.bf16.gmra.mxu0 %v432
      %v585 = vpop.f32.mrf.mxu0
      %v586 = vadd.f32 %v497, %v585
      %v587 = vpop.f32.mrf.mxu0
      %v588 = vadd.f32 %v499, %v587
      %589 = vmatmul.bf16.gmra.mxu0 %v435
      %v590 = vpop.f32.mrf.mxu0
      %v591 = vadd.f32 %v502, %v590
      %v592 = vpop.f32.mrf.mxu0
      %v593 = vadd.f32 %v504, %v592
      %594 = vmatmul.bf16.gmra.mxu0 %v438
      %v595 = vpop.f32.mrf.mxu0
      %v596 = vadd.f32 %v507, %v595
      %v597 = vpop.f32.mrf.mxu0
      %v598 = vadd.f32 %v509, %v597
      %599 = vmatmul.bf16.gmra.mxu0 %v441
      %v600 = vpop.f32.mrf.mxu0
      %v601 = vadd.f32 %v512, %v600
      %v602 = vpop.f32.mrf.mxu0
      %v603 = vadd.f32 %v514, %v602
      %604 = vmatmul.bf16.gmra.mxu0 %v444
      %v605 = vpop.f32.mrf.mxu0
      %v606 = vadd.f32 %v517, %v605
      %v607 = vpop.f32.mrf.mxu0
      %v608 = vadd.f32 %v519, %v607
      %609 = vmatmul.bf16.gmra.mxu0 %v447
      %v610 = vpop.f32.mrf.mxu0
      %v611 = vadd.f32 %v522, %v610
      %v612 = vpop.f32.mrf.mxu0
      %v613 = vadd.f32 %v524, %v612
      %614 = vmatmul.bf16.gmra.mxu0 %v450
      %v615 = vpop.f32.mrf.mxu0
      %v616 = vadd.f32 %v527, %v615
      %v617 = vpop.f32.mrf.mxu0
      %v618 = vadd.f32 %v529, %v617
      %619 = vmatmul.bf16.gmra.mxu0 %v453
      %v620 = vpop.f32.mrf.mxu0
      %v621 = vadd.f32 %v532, %v620
      %v622 = vpop.f32.mrf.mxu0
      %v623 = vadd.f32 %v534, %v622
      %624 = vmatmul.bf16.gmra.mxu0 %v456
      %v625 = vpop.f32.mrf.mxu0
      %v626 = vadd.f32 %v537, %v625
      %v627 = vpop.f32.mrf.mxu0
      %v628 = vadd.f32 %v539, %v627
      %629 = vmatmul.bf16.gmra.mxu0 %v459
      %v630 = vpop.f32.mrf.mxu0
      %v631 = vadd.f32 %v542, %v630
      %v632 = vpop.f32.mrf.mxu0
      %v633 = vadd.f32 %v544, %v632
      %634 = vmatmul.bf16.gmra.mxu0 %v462
      %v635 = vpop.f32.mrf.mxu0
      %v636 = vadd.f32 %v547, %v635
      %v637 = vpop.f32.mrf.mxu0
      %v638 = vadd.f32 %v549, %v637
      %639 = vmatmul.bf16.gmra.mxu0 %v465
      %v640 = vpop.f32.mrf.mxu0
      %v641 = vadd.f32 %v552, %v640
      %v642 = vpop.f32.mrf.mxu0
      %v643 = vadd.f32 %v554, %v642
      %644 = vmatmul.bf16.gmra.mxu0 %v468
      %v645 = vpop.f32.mrf.mxu0
      %v646 = vadd.f32 %v557, %v645
      %v647 = vpop.f32.mrf.mxu0
      %v648 = vadd.f32 %v559, %v647
      %649 = vmatmul.bf16.gmra.mxu0 %v471
      %v650 = vpop.f32.mrf.mxu0
      %v651 = vadd.f32 %v562, %v650
      %v652 = vpop.f32.mrf.mxu0
      %v653 = vadd.f32 %v564, %v652
      %654 = vdwg.mxu0
      %s655 = smul.u32 %s13, 256
      %v656 = vlaneseq
      %v657 = vshrl.u32 %v656, 7
      %v658 = vadd.s32 %v657, 8
      %v659 = vadd.s32 %v657, 16
      %v660 = vadd.s32 %v657, 24
      %v661 = vadd.s32 %v657, 32
      %v662 = vadd.s32 %v657, 40
      %v663 = vadd.s32 %v657, 48
      %v664 = vadd.s32 %v657, 56
      %v665 = vadd.s32 %v657, 64
      %v666 = vadd.s32 %v657, 72
      %v667 = vadd.s32 %v657, 80
      %v668 = vadd.s32 %v657, 88
      %v669 = vadd.s32 %v657, 96
      %v670 = vadd.s32 %v657, 104
      %v671 = vadd.s32 %v657, 112
      %v672 = vadd.s32 %v657, 120
      %v673 = vadd.s32 %v657, 128
      %v674 = vadd.s32 %v657, 136
      %v675 = vadd.s32 %v657, 144
      %v676 = vadd.s32 %v657, 152
      %v677 = vadd.s32 %v657, 160
      %v678 = vadd.s32 %v657, 168
      %v679 = vadd.s32 %v657, 176
      %v680 = vadd.s32 %v657, 184
      %v681 = vadd.s32 %v657, 192
      %v682 = vadd.s32 %v657, 200
      %v683 = vadd.s32 %v657, 208
      %v684 = vadd.s32 %v657, 216
      %v685 = vadd.s32 %v657, 224
      %v686 = vadd.s32 %v657, 232
      %v687 = vadd.s32 %v657, 240
      %v688 = vadd.s32 %v657, 248
      %v689 = vstv %s655
      %v690 = vadd.s32 %v689, %v657
      %v691 = vadd.s32 %v689, %v658
      %v692 = vadd.s32 %v689, %v659
      %v693 = vadd.s32 %v689, %v660
      %v694 = vadd.s32 %v689, %v661
      %v695 = vadd.s32 %v689, %v662
      %v696 = vadd.s32 %v689, %v663
      %v697 = vadd.s32 %v689, %v664
      %v698 = vadd.s32 %v689, %v665
      %v699 = vadd.s32 %v689, %v666
      %v700 = vadd.s32 %v689, %v667
      %v701 = vadd.s32 %v689, %v668
      %v702 = vadd.s32 %v689, %v669
      %v703 = vadd.s32 %v689, %v670
      %v704 = vadd.s32 %v689, %v671
      %v705 = vadd.s32 %v689, %v672
      %v706 = vadd.s32 %v689, %v673
      %v707 = vadd.s32 %v689, %v674
      %v708 = vadd.s32 %v689, %v675
      %v709 = vadd.s32 %v689, %v676
      %v710 = vadd.s32 %v689, %v677
      %v711 = vadd.s32 %v689, %v678
      %v712 = vadd.s32 %v689, %v679
      %v713 = vadd.s32 %v689, %v680
      %v714 = vadd.s32 %v689, %v681
      %v715 = vadd.s32 %v689, %v682
      %v716 = vadd.s32 %v689, %v683
      %v717 = vadd.s32 %v689, %v684
      %v718 = vadd.s32 %v689, %v685
      %v719 = vadd.s32 %v689, %v686
      %v720 = vadd.s32 %v689, %v687
      %v721 = vadd.s32 %v689, %v688
      %vm722 = vcmp.lt.s32.totalorder %v690, 512
      %vm723 = vcmp.lt.s32.totalorder %v691, 512
      %vm724 = vcmp.lt.s32.totalorder %v692, 512
      %vm725 = vcmp.lt.s32.totalorder %v693, 512
      %vm726 = vcmp.lt.s32.totalorder %v694, 512
      %vm727 = vcmp.lt.s32.totalorder %v695, 512
      %vm728 = vcmp.lt.s32.totalorder %v696, 512
      %vm729 = vcmp.lt.s32.totalorder %v697, 512
      %vm730 = vcmp.lt.s32.totalorder %v698, 512
      %vm731 = vcmp.lt.s32.totalorder %v699, 512
      %vm732 = vcmp.lt.s32.totalorder %v700, 512
      %vm733 = vcmp.lt.s32.totalorder %v701, 512
      %vm734 = vcmp.lt.s32.totalorder %v702, 512
      %vm735 = vcmp.lt.s32.totalorder %v703, 512
      %vm736 = vcmp.lt.s32.totalorder %v704, 512
      %vm737 = vcmp.lt.s32.totalorder %v705, 512
      %vm738 = vcmp.lt.s32.totalorder %v706, 512
      %vm739 = vcmp.lt.s32.totalorder %v707, 512
      %vm740 = vcmp.lt.s32.totalorder %v708, 512
      %vm741 = vcmp.lt.s32.totalorder %v709, 512
      %vm742 = vcmp.lt.s32.totalorder %v710, 512
      %vm743 = vcmp.lt.s32.totalorder %v711, 512
      %vm744 = vcmp.lt.s32.totalorder %v712, 512
      %vm745 = vcmp.lt.s32.totalorder %v713, 512
      %vm746 = vcmp.lt.s32.totalorder %v714, 512
      %vm747 = vcmp.lt.s32.totalorder %v715, 512
      %vm748 = vcmp.lt.s32.totalorder %v716, 512
      %vm749 = vcmp.lt.s32.totalorder %v717, 512
      %vm750 = vcmp.lt.s32.totalorder %v718, 512
      %vm751 = vcmp.lt.s32.totalorder %v719, 512
      %vm752 = vcmp.lt.s32.totalorder %v720, 512
      %vm753 = vcmp.lt.s32.totalorder %v721, 512
      %v754 = vsel %vm722, 1, 0
      %v755 = vsel %vm723, 1, 0
      %v756 = vsel %vm724, 1, 0
      %v757 = vsel %vm725, 1, 0
      %v758 = vsel %vm726, 1, 0
      %v759 = vsel %vm727, 1, 0
      %v760 = vsel %vm728, 1, 0
      %v761 = vsel %vm729, 1, 0
      %v762 = vsel %vm730, 1, 0
      %v763 = vsel %vm731, 1, 0
      %v764 = vsel %vm732, 1, 0
      %v765 = vsel %vm733, 1, 0
      %v766 = vsel %vm734, 1, 0
      %v767 = vsel %vm735, 1, 0
      %v768 = vsel %vm736, 1, 0
      %v769 = vsel %vm737, 1, 0
      %v770 = vsel %vm738, 1, 0
      %v771 = vsel %vm739, 1, 0
      %v772 = vsel %vm740, 1, 0
      %v773 = vsel %vm741, 1, 0
      %v774 = vsel %vm742, 1, 0
      %v775 = vsel %vm743, 1, 0
      %v776 = vsel %vm744, 1, 0
      %v777 = vsel %vm745, 1, 0
      %v778 = vsel %vm746, 1, 0
      %v779 = vsel %vm747, 1, 0
      %v780 = vsel %vm748, 1, 0
      %v781 = vsel %vm749, 1, 0
      %v782 = vsel %vm750, 1, 0
      %v783 = vsel %vm751, 1, 0
      %v784 = vsel %vm752, 1, 0
      %v785 = vsel %vm753, 1, 0
      %v786 = vcvt.s32.f32 %v754
      %v787 = vcvt.s32.f32 %v755
      %v788 = vcvt.s32.f32 %v756
      %v789 = vcvt.s32.f32 %v757
      %v790 = vcvt.s32.f32 %v758
      %v791 = vcvt.s32.f32 %v759
      %v792 = vcvt.s32.f32 %v760
      %v793 = vcvt.s32.f32 %v761
      %v794 = vcvt.s32.f32 %v762
      %v795 = vcvt.s32.f32 %v763
      %v796 = vcvt.s32.f32 %v764
      %v797 = vcvt.s32.f32 %v765
      %v798 = vcvt.s32.f32 %v766
      %v799 = vcvt.s32.f32 %v767
      %v800 = vcvt.s32.f32 %v768
      %v801 = vcvt.s32.f32 %v769
      %v802 = vcvt.s32.f32 %v770
      %v803 = vcvt.s32.f32 %v771
      %v804 = vcvt.s32.f32 %v772
      %v805 = vcvt.s32.f32 %v773
      %v806 = vcvt.s32.f32 %v774
      %v807 = vcvt.s32.f32 %v775
      %v808 = vcvt.s32.f32 %v776
      %v809 = vcvt.s32.f32 %v777
      %v810 = vcvt.s32.f32 %v778
      %v811 = vcvt.s32.f32 %v779
      %v812 = vcvt.s32.f32 %v780
      %v813 = vcvt.s32.f32 %v781
      %v814 = vcvt.s32.f32 %v782
      %v815 = vcvt.s32.f32 %v783
      %v816 = vcvt.s32.f32 %v784
      %v817 = vcvt.s32.f32 %v785
      %s818 = ssub.s32 512, %s655
      %p819 = scmp.lt.s32.totalorder %s818, 256
      %s820 = scalar_select %p819, %s818, 256
      %s821 = scvt.s32.f32 %s820
      %v822 = vmul.f32 %v576, %v786
      %v823 = vmul.f32 %v578, %v787
      %v824 = vmul.f32 %v581, %v788
      %v825 = vmul.f32 %v583, %v789
      %v826 = vmul.f32 %v586, %v790
      %v827 = vmul.f32 %v588, %v791
      %v828 = vmul.f32 %v591, %v792
      %v829 = vmul.f32 %v593, %v793
      %v830 = vmul.f32 %v596, %v794
      %v831 = vmul.f32 %v598, %v795
      %v832 = vmul.f32 %v601, %v796
      %v833 = vmul.f32 %v603, %v797
      %v834 = vmul.f32 %v606, %v798
      %v835 = vmul.f32 %v608, %v799
      %v836 = vmul.f32 %v611, %v800
      %v837 = vmul.f32 %v613, %v801
      %v838 = vmul.f32 %v616, %v802
      %v839 = vmul.f32 %v618, %v803
      %v840 = vmul.f32 %v621, %v804
      %v841 = vmul.f32 %v623, %v805
      %v842 = vmul.f32 %v626, %v806
      %v843 = vmul.f32 %v628, %v807
      %v844 = vmul.f32 %v631, %v808
      %v845 = vmul.f32 %v633, %v809
      %v846 = vmul.f32 %v636, %v810
      %v847 = vmul.f32 %v638, %v811
      %v848 = vmul.f32 %v641, %v812
      %v849 = vmul.f32 %v643, %v813
      %v850 = vmul.f32 %v646, %v814
      %v851 = vmul.f32 %v648, %v815
      %v852 = vmul.f32 %v651, %v816
      %v853 = vmul.f32 %v653, %v817
      %v854 = vadd.f32 %v822, %v823
      %v855 = vadd.f32 %v854, %v824
      %v856 = vadd.f32 %v855, %v825
      %v857 = vadd.f32 %v856, %v826
      %v858 = vadd.f32 %v857, %v827
      %v859 = vadd.f32 %v858, %v828
      %v860 = vadd.f32 %v859, %v829
      %v861 = vadd.f32 %v860, %v830
      %v862 = vadd.f32 %v861, %v831
      %v863 = vadd.f32 %v862, %v832
      %v864 = vadd.f32 %v863, %v833
      %v865 = vadd.f32 %v864, %v834
      %v866 = vadd.f32 %v865, %v835
      %v867 = vadd.f32 %v866, %v836
      %v868 = vadd.f32 %v867, %v837
      %v869 = vadd.f32 %v868, %v838
      %v870 = vadd.f32 %v869, %v839
      %v871 = vadd.f32 %v870, %v840
      %v872 = vadd.f32 %v871, %v841
      %v873 = vadd.f32 %v872, %v842
      %v874 = vadd.f32 %v873, %v843
      %v875 = vadd.f32 %v874, %v844
      %v876 = vadd.f32 %v875, %v845
      %v877 = vadd.f32 %v876, %v846
      %v878 = vadd.f32 %v877, %v847
      %v879 = vadd.f32 %v878, %v848
      %v880 = vadd.f32 %v879, %v849
      %v881 = vadd.f32 %v880, %v850
      %v882 = vadd.f32 %v881, %v851
      %v883 = vadd.f32 %v882, %v852
      %v884 = vadd.f32 %v883, %v853
      %v885 = vrot.slane %v884, 4
      %v886 = vadd.f32 %v884, %v885
      %v887 = vrot.slane %v886, 2
      %v888 = vadd.f32 %v886, %v887
      %v889 = vrot.slane %v888, 1
      %v890 = vadd.f32 %v888, %v889
      %v891 = vstv %s821
      %v892 = vrcp.pop %v891
      %v893 = vmul.f32 %v891, %v892
      %v894 = vsub.f32 1.0, %v893
      %v895 = vmul.f32 %v892, %v894
      %v896 = vadd.f32 %v892, %v895
      %vm897 = vweird.f32 %v891
      %vm898 = vweird.f32 %v892
      %vm899 = vmor %vm897, %vm898
      %v900 = vsel %vm899, %v892, %v896
      %v901 = vand.u32 2147483647, %v891
      %vm902 = vcmp.eq.f32.partialorder %v901, 8.507059e+37
      %v903 = vand.u32 %v891, 2147483648
      %v904 = vor.u32 1.1754944e-38, %v903
      %v905 = vsel %vm902, %v904, %v900
      %v906 = vmul.f32 %v890, %v905
      %v907 = vsub.f32 %v576, %v906
      %v908 = vsub.f32 %v578, %v906
      %v909 = vsub.f32 %v581, %v906
      %v910 = vsub.f32 %v583, %v906
      %v911 = vsub.f32 %v586, %v906
      %v912 = vsub.f32 %v588, %v906
      %v913 = vsub.f32 %v591, %v906
      %v914 = vsub.f32 %v593, %v906
      %v915 = vsub.f32 %v596, %v906
      %v916 = vsub.f32 %v598, %v906
      %v917 = vsub.f32 %v601, %v906
      %v918 = vsub.f32 %v603, %v906
      %v919 = vsub.f32 %v606, %v906
      %v920 = vsub.f32 %v608, %v906
      %v921 = vsub.f32 %v611, %v906
      %v922 = vsub.f32 %v613, %v906
      %v923 = vsub.f32 %v616, %v906
      %v924 = vsub.f32 %v618, %v906
      %v925 = vsub.f32 %v621, %v906
      %v926 = vsub.f32 %v623, %v906
      %v927 = vsub.f32 %v626, %v906
      %v928 = vsub.f32 %v628, %v906
      %v929 = vsub.f32 %v631, %v906
      %v930 = vsub.f32 %v633, %v906
      %v931 = vsub.f32 %v636, %v906
      %v932 = vsub.f32 %v638, %v906
      %v933 = vsub.f32 %v641, %v906
      %v934 = vsub.f32 %v643, %v906
      %v935 = vsub.f32 %v646, %v906
      %v936 = vsub.f32 %v648, %v906
      %v937 = vsub.f32 %v651, %v906
      %v938 = vsub.f32 %v653, %v906
      %v939 = vmul.f32 %v907, %v786
      %v940 = vmul.f32 %v908, %v787
      %v941 = vmul.f32 %v909, %v788
      %v942 = vmul.f32 %v910, %v789
      %v943 = vmul.f32 %v911, %v790
      %v944 = vmul.f32 %v912, %v791
      %v945 = vmul.f32 %v913, %v792
      %v946 = vmul.f32 %v914, %v793
      %v947 = vmul.f32 %v915, %v794
      %v948 = vmul.f32 %v916, %v795
      %v949 = vmul.f32 %v917, %v796
      %v950 = vmul.f32 %v918, %v797
      %v951 = vmul.f32 %v919, %v798
      %v952 = vmul.f32 %v920, %v799
      %v953 = vmul.f32 %v921, %v800
      %v954 = vmul.f32 %v922, %v801
      %v955 = vmul.f32 %v923, %v802
      %v956 = vmul.f32 %v924, %v803
      %v957 = vmul.f32 %v925, %v804
      %v958 = vmul.f32 %v926, %v805
      %v959 = vmul.f32 %v927, %v806
      %v960 = vmul.f32 %v928, %v807
      %v961 = vmul.f32 %v929, %v808
      %v962 = vmul.f32 %v930, %v809
      %v963 = vmul.f32 %v931, %v810
      %v964 = vmul.f32 %v932, %v811
      %v965 = vmul.f32 %v933, %v812
      %v966 = vmul.f32 %v934, %v813
      %v967 = vmul.f32 %v935, %v814
      %v968 = vmul.f32 %v936, %v815
      %v969 = vmul.f32 %v937, %v816
      %v970 = vmul.f32 %v938, %v817
      %v971 = vmul.f32 %v939, %v939
      %v972 = vmul.f32 %v940, %v940
      %v973 = vmul.f32 %v941, %v941
      %v974 = vmul.f32 %v942, %v942
      %v975 = vmul.f32 %v943, %v943
      %v976 = vmul.f32 %v944, %v944
      %v977 = vmul.f32 %v945, %v945
      %v978 = vmul.f32 %v946, %v946
      %v979 = vmul.f32 %v947, %v947
      %v980 = vmul.f32 %v948, %v948
      %v981 = vmul.f32 %v949, %v949
      %v982 = vmul.f32 %v950, %v950
      %v983 = vmul.f32 %v951, %v951
      %v984 = vmul.f32 %v952, %v952
      %v985 = vmul.f32 %v953, %v953
      %v986 = vmul.f32 %v954, %v954
      %v987 = vmul.f32 %v955, %v955
      %v988 = vmul.f32 %v956, %v956
      %v989 = vmul.f32 %v957, %v957
      %v990 = vmul.f32 %v958, %v958
      %v991 = vmul.f32 %v959, %v959
      %v992 = vmul.f32 %v960, %v960
      %v993 = vmul.f32 %v961, %v961
      %v994 = vmul.f32 %v962, %v962
      %v995 = vmul.f32 %v963, %v963
      %v996 = vmul.f32 %v964, %v964
      %v997 = vmul.f32 %v965, %v965
      %v998 = vmul.f32 %v966, %v966
      %v999 = vmul.f32 %v967, %v967
      %v1000 = vmul.f32 %v968, %v968
      %v1001 = vmul.f32 %v969, %v969
      %v1002 = vmul.f32 %v970, %v970
      %v1003 = vadd.f32 %v971, %v972
      %v1004 = vadd.f32 %v1003, %v973
      %v1005 = vadd.f32 %v1004, %v974
      %v1006 = vadd.f32 %v1005, %v975
      %v1007 = vadd.f32 %v1006, %v976
      %v1008 = vadd.f32 %v1007, %v977
      %v1009 = vadd.f32 %v1008, %v978
      %v1010 = vadd.f32 %v1009, %v979
      %v1011 = vadd.f32 %v1010, %v980
      %v1012 = vadd.f32 %v1011, %v981
      %v1013 = vadd.f32 %v1012, %v982
      %v1014 = vadd.f32 %v1013, %v983
      %v1015 = vadd.f32 %v1014, %v984
      %v1016 = vadd.f32 %v1015, %v985
      %v1017 = vadd.f32 %v1016, %v986
      %v1018 = vadd.f32 %v1017, %v987
      %v1019 = vadd.f32 %v1018, %v988
      %v1020 = vadd.f32 %v1019, %v989
      %v1021 = vadd.f32 %v1020, %v990
      %v1022 = vadd.f32 %v1021, %v991
      %v1023 = vadd.f32 %v1022, %v992
      %v1024 = vadd.f32 %v1023, %v993
      %v1025 = vadd.f32 %v1024, %v994
      %v1026 = vadd.f32 %v1025, %v995
      %v1027 = vadd.f32 %v1026, %v996
      %v1028 = vadd.f32 %v1027, %v997
      %v1029 = vadd.f32 %v1028, %v998
      %v1030 = vadd.f32 %v1029, %v999
      %v1031 = vadd.f32 %v1030, %v1000
      %v1032 = vadd.f32 %v1031, %v1001
      %v1033 = vadd.f32 %v1032, %v1002
      %v1034 = vrot.slane %v1033, 4
      %v1035 = vadd.f32 %v1033, %v1034
      %v1036 = vrot.slane %v1035, 2
      %v1037 = vadd.f32 %v1035, %v1036
      %v1038 = vrot.slane %v1037, 1
      %v1039 = vadd.f32 %v1037, %v1038
      %vm1040 = vcmask 1040384
      %v1041 = vsel %vm1040, %v890, %v1039
      %vm1042 = vcmask 1041408
      %v1043 = vsel %vm1042, %v1041, %v891
      %vm1044 = vcmask 1042432
      %v1045 = vsel %vm1044, %v1043, 0.0
      %1046 = vst [vmem:[%s146] sm:$0xff] %v1045
      %p1047 = scmp.lt.s32.totalorder %s13, 1
      %s1048 = scalar_select %p1047, %s13, 1
      %s1049 = smul.addr %s1048, 8
      %s1050 = scalar_lea.vmem %s2, %s1049
      // Predicated region
      $region29: #{downsample_forward.6} parent=27 // pred_check
        %p1051 = pneg %p78
      $region30: #{downsample_forward.6} parent=27 // pred_check_branch
        %1053 = sbr.rel (%p1051) target = $region32
      $region31: #{downsample_forward.6} parent=27 // pred_region
        _
      $region32: #{downsample_forward.6} parent=27 // pred_fallthru
        _
    $region28: #{downsample_forward.6} parent=5 // pred_fallthru
      _
    %p1054 = scmp.le.s32.totalorder 2, %s8
    // Predicated region
    $region33: #{downsample_forward.6} parent=5 // pred_check
      %p1055 = pneg %p1054
    $region34: #{downsample_forward.6} parent=5 // pred_check_branch
      %1057 = sbr.rel (%p1055) target = $region36
    $region35: #{downsample_forward.6} parent=5 // pred_region
      %s1058 = ssub.s32 %s8, 2
      // Predicated region
      $region37: #{downsample_forward.6} parent=35 // pred_check
        %p1059 = pneg %p84
      $region38: #{downsample_forward.6} parent=35 // pred_check_branch
        %1061 = sbr.rel (%p1059) target = $region40
      $region39: #{downsample_forward.6} parent=35 // pred_region
        %p1062 = scmp.lt.s32.totalorder %s14, 1
        %s1063 = scalar_select %p1062, %s14, 1
        %s1064 = smul.addr %s1063, 8
        %s1065 = scalar_lea.vmem %s2, %s1064
      $region40: #{downsample_forward.6} parent=35 // pred_fallthru
        _
    $region36: #{downsample_forward.6} parent=5 // pred_fallthru
      _
  $region6: #{downsample_forward.6} parent=0 // loop_footer
    %s12 = sadd.s32 1, %s8
  $region7: #{downsample_forward.6} parent=0 // loop_footer_branch
    %7 = sbr.rel target = $region3
  $region8: #{downsample_forward.6} parent=0 // loop_exit
    _

// kernel: downsample_forward.7
$region0: #{downsample_forward.7}
  #allocation0 [shape = 'u32[]', space=smem, size = 0x4, offset = 0x4, fixed_abs, tag = 'smem constant byte address 0x4 - core index']
  #allocation1 [shape = 'u32[72,128]{1,0:T(1,128)}', space=vmem, size = 0x9000, scoped, tag = 'internal scratch']
  %s0 = inlined_call_operand.vmem [shape: bf16[512,200], index: 0, kind: input, shape index: {}]
  %s1 = inlined_call_operand.vmem [shape: bf16[200,128], index: 1, kind: input, shape index: {}]
  %s2 = inlined_call_operand.vmem [shape: f32[1,128], index: 2, kind: input, shape index: {}]
  %s3 = inlined_call_operand.vmem [shape: f32[1,128], index: 3, kind: input, shape index: {}]
  %s4 = inlined_call_operand.vmem [shape: f32[512,128], index: 4, kind: output, shape index: {}]
  %s5 = sld [smem:[#allocation0]]
  $region49: #{downsample_forward.7} parent=0
    _
  %s7 = ssub.s32 1, %s5
  %s8 = scalar_select 0, %s7, %s5
  loop: start=0, step=1, limit=4
  $region2: #{downsample_forward.7} parent=0 // loop_pre_header
    _
  $region3: #{downsample_forward.7} parent=0 // loop_header
    %s10 = sphi 0, %s14
    %p11 = scmp.ge.s32.totalorder %s10, 4
    %s20 = sphi 0, %s22
    %s23 = sphi 0, %s20
    %s24 = sphi 0, %s23
    %s40 = sphi 0, %s24
    %s44 = sphi 0, %s44
    %s46 = sphi 0, %s44
    %s47 = sphi 0, %s46
    %s61 = sphi 0, %s47
    %s65 = sphi 0, %s65
    %s67 = sphi 0, %s65
    %s68 = sphi 0, %s67
    %s82 = sphi 0, %s68
    %s86 = sphi 0, %s86
    %s88 = sphi 0, %s86
    %s89 = sphi 0, %s88
    %s103 = sphi 0, %s89
    %s109 = sphi 0, %s111
    %s112 = sphi 0, %s109
    %s113 = sphi 0, %s112
    %s129 = sphi 0, %s113
  $region4: #{downsample_forward.7} parent=0 // loop_header_branch
    %13 = sbr.rel (%p11) target = $region8
  $region5: #{downsample_forward.7} parent=0 // loop_body
    %s15 = ssub.s32 %s10, 1
    %s16 = ssub.s32 %s10, 2
    %s17 = sadd.s32 %s10, 1
    %s18 = ssub.s32 %s10, %s17
    %p19 = scmp.eq.s32.totalorder %s18, 0
    %s21 = sadd.s32 %s20, 1
    %s22 = scalar_select %p19, %s20, %s21
    %p25 = pneg %p19
    %p26 = scmp.eq.s32.totalorder %s10, 1
    %p27 = por %p25, %p26
    %p28 = scmp.ne.s32.totalorder %s20, %s23
    %p29 = scmp.eq.s32.totalorder %s10, 0
    %p30 = por %p28, %p29
    %p31 = scmp.ne.s32.totalorder %s20, %s23
    %p32 = scmp.eq.s32.totalorder %s15, 1
    %p33 = por %p31, %p32
    %p34 = scmp.ne.s32.totalorder %s23, %s24
    %p35 = scmp.eq.s32.totalorder %s15, 0
    %p36 = por %p34, %p35
    %p37 = scmp.ne.s32.totalorder %s23, %s24
    %p38 = scmp.eq.s32.totalorder %s16, 1
    %p39 = por %p37, %p38
    %p41 = scmp.ne.s32.totalorder %s24, %s40
    %p42 = scmp.eq.s32.totalorder %s16, 0
    %p43 = por %p41, %p42
    %s45 = sadd.s32 %s44, 1
    %p48 = scmp.eq.s32.totalorder %s10, 1
    %p49 = scmp.ne.s32.totalorder %s44, %s46
    %p50 = scmp.eq.s32.totalorder %s10, 0
    %p51 = por %p49, %p50
    %p52 = scmp.ne.s32.totalorder %s44, %s46
    %p53 = scmp.eq.s32.totalorder %s15, 1
    %p54 = por %p52, %p53
    %p55 = scmp.ne.s32.totalorder %s46, %s47
    %p56 = scmp.eq.s32.totalorder %s15, 0
    %p57 = por %p55, %p56
    %p58 = scmp.ne.s32.totalorder %s46, %s47
    %p59 = scmp.eq.s32.totalorder %s16, 1
    %p60 = por %p58, %p59
    %p62 = scmp.ne.s32.totalorder %s47, %s61
    %p63 = scmp.eq.s32.totalorder %s16, 0
    %p64 = por %p62, %p63
    %s66 = sadd.s32 %s65, 1
    %p69 = scmp.eq.s32.totalorder %s10, 1
    %p70 = scmp.ne.s32.totalorder %s65, %s67
    %p71 = scmp.eq.s32.totalorder %s10, 0
    %p72 = por %p70, %p71
    %p73 = scmp.ne.s32.totalorder %s65, %s67
    %p74 = scmp.eq.s32.totalorder %s15, 1
    %p75 = por %p73, %p74
    %p76 = scmp.ne.s32.totalorder %s67, %s68
    %p77 = scmp.eq.s32.totalorder %s15, 0
    %p78 = por %p76, %p77
    %p79 = scmp.ne.s32.totalorder %s67, %s68
    %p80 = scmp.eq.s32.totalorder %s16, 1
    %p81 = por %p79, %p80
    %p83 = scmp.ne.s32.totalorder %s68, %s82
    %p84 = scmp.eq.s32.totalorder %s16, 0
    %p85 = por %p83, %p84
    %s87 = sadd.s32 %s86, 1
    %p90 = scmp.eq.s32.totalorder %s10, 1
    %p91 = scmp.ne.s32.totalorder %s86, %s88
    %p92 = scmp.eq.s32.totalorder %s10, 0
    %p93 = por %p91, %p92
    %p94 = scmp.ne.s32.totalorder %s86, %s88
    %p95 = scmp.eq.s32.totalorder %s15, 1
    %p96 = por %p94, %p95
    %p97 = scmp.ne.s32.totalorder %s88, %s89
    %p98 = scmp.eq.s32.totalorder %s15, 0
    %p99 = por %p97, %p98
    %p100 = scmp.ne.s32.totalorder %s88, %s89
    %p101 = scmp.eq.s32.totalorder %s16, 1
    %p102 = por %p100, %p101
    %p104 = scmp.ne.s32.totalorder %s89, %s103
    %p105 = scmp.eq.s32.totalorder %s16, 0
    %p106 = por %p104, %p105
    %s107 = ssub.s32 %s10, %s17
    %p108 = scmp.eq.s32.totalorder %s107, 0
    %s110 = sadd.s32 %s109, 1
    %s111 = scalar_select %p108, %s109, %s110
    %p114 = pneg %p108
    %p115 = scmp.eq.s32.totalorder %s10, 1
    %p116 = por %p114, %p115
    %p117 = scmp.ne.s32.totalorder %s109, %s112
    %p118 = scmp.eq.s32.totalorder %s10, 0
    %p119 = por %p117, %p118
    %p120 = scmp.ne.s32.totalorder %s109, %s112
    %p121 = scmp.eq.s32.totalorder %s15, 1
    %p122 = por %p120, %p121
    %p123 = scmp.ne.s32.totalorder %s112, %s113
    %p124 = scmp.eq.s32.totalorder %s15, 0
    %p125 = por %p123, %p124
    %p126 = scmp.ne.s32.totalorder %s112, %s113
    %p127 = scmp.eq.s32.totalorder %s16, 1
    %p128 = por %p126, %p127
    %p130 = scmp.ne.s32.totalorder %s113, %s129
    %p131 = scmp.eq.s32.totalorder %s16, 0
    %p132 = por %p130, %p131
    %p133 = scmp.le.s32.totalorder 1, %s10
    %p134 = scmp.lt.s32.totalorder %s10, 3
    %p135 = pnand %p133, %p134
    %p136 = pneg %p135
    // Predicated region
    $region9: #{downsample_forward.7} parent=5 // pred_check
      _
    $region10: #{downsample_forward.7} parent=5 // pred_check_branch
      %138 = sbr.rel (%p135) target = $region12
    $region11: #{downsample_forward.7} parent=5 // pred_region
      %s139 = ssub.s32 %s10, 1
      // Predicated region
      $region13: #{downsample_forward.7} parent=11 // pred_check
        %p140 = pneg %p57
      $region14: #{downsample_forward.7} parent=11 // pred_check_branch
        %142 = sbr.rel (%p140) target = $region16
      $region15: #{downsample_forward.7} parent=11 // pred_region
        _
      $region16: #{downsample_forward.7} parent=11 // pred_fallthru
        _
      // Predicated region
      $region17: #{downsample_forward.7} parent=11 // pred_check
        %p143 = pneg %p78
      $region18: #{downsample_forward.7} parent=11 // pred_check_branch
        %145 = sbr.rel (%p143) target = $region20
      $region19: #{downsample_forward.7} parent=11 // pred_region
        _
      $region20: #{downsample_forward.7} parent=11 // pred_fallthru
        _
      // Predicated region
      $region21: #{downsample_forward.7} parent=11 // pred_check
        %p146 = pneg %p99
      $region22: #{downsample_forward.7} parent=11 // pred_check_branch
        %148 = sbr.rel (%p146) target = $region24
      $region23: #{downsample_forward.7} parent=11 // pred_region
        _
      $region24: #{downsample_forward.7} parent=11 // pred_fallthru
        _
    $region12: #{downsample_forward.7} parent=5 // pred_fallthru
      _
    %p149 = scmp.lt.s32.totalorder %s10, 2
    // Predicated region
    $region25: #{downsample_forward.7} parent=5 // pred_check
      %p150 = pneg %p149
    $region26: #{downsample_forward.7} parent=5 // pred_check_branch
      %152 = sbr.rel (%p150) target = $region28
    $region27: #{downsample_forward.7} parent=5 // pred_region
      // Predicated region
      $region29: #{downsample_forward.7} parent=27 // pred_check
        %p153 = pneg %p30
      $region30: #{downsample_forward.7} parent=27 // pred_check_branch
        %155 = sbr.rel (%p153) target = $region32
      $region31: #{downsample_forward.7} parent=27 // pred_region
        %s156 = smul.u32 32, %s10
        %p157 = scmp.lt.s32.totalorder %s156, 63
        %s158 = scalar_select %p157, %s156, 63
        %s159 = smul.addr %s158, 2
        %s160 = smul.addr %s159, 4
        %s161 = scalar_lea.vmem %s0, %s160
        %s162 = smul.u32 32, %s10
      $region32: #{downsample_forward.7} parent=27 // pred_fallthru
        _
    $region28: #{downsample_forward.7} parent=5 // pred_fallthru
      _
    %p163 = scmp.le.s32.totalorder 1, %s10
    %p164 = scmp.lt.s32.totalorder %s10, 3
    %p165 = pnand %p163, %p164
    %p166 = pneg %p165
    // Predicated region
    $region33: #{downsample_forward.7} parent=5 // pred_check
      _
    $region34: #{downsample_forward.7} parent=5 // pred_check_branch
      %168 = sbr.rel (%p165) target = $region36
    $region35: #{downsample_forward.7} parent=5 // pred_region
      %s169 = ssub.s32 %s10, 1
      %s170 = smul.u32 32, %s15
      %p171 = scmp.lt.s32.totalorder %s170, 63
      %s172 = scalar_select %p171, %s170, 63
      %s173 = smul.addr %s172, 2
      %s174 = smul.addr %s173, 4
      %s175 = scalar_lea.vmem %s0, %s174
      %p176 = pneg %p36
      %p177 = pneg %p33
      %p178 = pneg %p57
      %p179 = pneg %p54
      %p180 = pneg %p78
      %p181 = pneg %p75
      %p182 = pneg %p99
      %p183 = pneg %p96
      %p184 = pneg %p125
      %p185 = pneg %p122
      %s186 = smul.u32 32, %s15
      %p187 = scmp.lt.s32.totalorder %s186, 63
      %s188 = scalar_select %p187, %s186, 63
      %s189 = smul.addr %s188, 8
      %s190 = scalar_lea.vmem %s4, %s189
      %s191 = smul.u32 32, %s15
      %p192 = scmp.lt.s32.totalorder %s191, 63
      %s193 = scalar_select %p192, %s191, 63
      %s194 = smul.addr %s193, 2
      %s195 = smul.addr %s194, 4
      %s196 = scalar_lea.vmem %s0, %s195
      %s197 = smul.u32 32, %s15
      %s198 = smul.u32 32, %s15
      %p199 = scmp.lt.s32.totalorder %s198, 63
      %s200 = scalar_select %p199, %s198, 63
      %s201 = smul.addr %s200, 8
      %s202 = scalar_lea.vmem %s4, %s201
      %s203 = smul.u32 32, %s15
      %v205 = vld [vmem:[%s196] sm:$0xff]
      %v206 = vld [vmem:[%s196 + $0x8] sm:$0xff]
      %v207 = vld [vmem:[%s196 + $0x10] sm:$0xff]
      %v208 = vld [vmem:[%s196 + $0x18] sm:$0xff]
      %v209 = vld [vmem:[%s196 + $0x20] sm:$0xff]
      %v210 = vld [vmem:[%s196 + $0x28] sm:$0xff]
      %v211 = vld [vmem:[%s196 + $0x30] sm:$0xff]
      %v212 = vld [vmem:[%s196 + $0x38] sm:$0xff]
      %v213 = vld [vmem:[%s196 + $0x40] sm:$0xff]
      %v214 = vld [vmem:[%s196 + $0x48] sm:$0xff]
      %v215 = vld [vmem:[%s196 + $0x50] sm:$0xff]
      %v216 = vld [vmem:[%s196 + $0x58] sm:$0xff]
      %v217 = vld [vmem:[%s196 + $0x60] sm:$0xff]
      %v218 = vld [vmem:[%s196 + $0x68] sm:$0xff]
      %v219 = vld [vmem:[%s196 + $0x70] sm:$0xff]
      %v220 = vld [vmem:[%s196 + $0x78] sm:$0xff]
      %v221 = vld [vmem:[%s196 + $0x80] sm:$0xff]
      %v222 = vld [vmem:[%s196 + $0x88] sm:$0xff]
      %v223 = vld [vmem:[%s196 + $0x90] sm:$0xff]
      %v224 = vld [vmem:[%s196 + $0x98] sm:$0xff]
      %v225 = vld [vmem:[%s196 + $0xa0] sm:$0xff]
      %v226 = vld [vmem:[%s196 + $0xa8] sm:$0xff]
      %v227 = vld [vmem:[%s196 + $0xb0] sm:$0xff]
      %v228 = vld [vmem:[%s196 + $0xb8] sm:$0xff]
      %v229 = vld [vmem:[%s196 + $0xc0] sm:$0xff]
      %v230 = vld [vmem:[%s196 + $0xc8] sm:$0xff]
      %v231 = vld [vmem:[%s196 + $0xd0] sm:$0xff]
      %v232 = vld [vmem:[%s196 + $0xd8] sm:$0xff]
      %v233 = vld [vmem:[%s196 + $0xe0] sm:$0xff]
      %v234 = vld [vmem:[%s196 + $0xe8] sm:$0xff]
      %v235 = vld [vmem:[%s196 + $0xf0] sm:$0xff]
      %v236 = vld [vmem:[%s196 + $0xf8] sm:$0xff]
      %v237 = vld [vmem:[%s1] sm:$0xf]
      %v238 = vld [vmem:[%s1 + $0x4] sm:$0xf]
      %v239 = vld [vmem:[%s1 + $0x8] sm:$0xf]
      %v240 = vld [vmem:[%s1 + $0xc] sm:$0xf]
      %v241 = vld [vmem:[%s1 + $0x10] sm:$0xf]
      %v242 = vld [vmem:[%s1 + $0x14] sm:$0xf]
      %v243 = vld [vmem:[%s1 + $0x18] sm:$0xf]
      %v244 = vld [vmem:[%s1 + $0x1c] sm:$0xf]
      %v245 = vld [vmem:[%s1 + $0x20] sm:$0xf]
      %v246 = vld [vmem:[%s1 + $0x24] sm:$0xf]
      %v247 = vld [vmem:[%s1 + $0x28] sm:$0xf]
      %v248 = vld [vmem:[%s1 + $0x2c] sm:$0xf]
      %v249 = vld [vmem:[%s1 + $0x30] sm:$0xf]
      %v250 = vld [vmem:[%s1 + $0x34] sm:$0xf]
      %v251 = vld [vmem:[%s1 + $0x38] sm:$0xf]
      %v252 = vld [vmem:[%s1 + $0x3c] sm:$0xf]
      %v253 = vld [vmem:[%s1 + $0x40] sm:$0xf]
      %v254 = vld [vmem:[%s1 + $0x44] sm:$0xf]
      %v255 = vld [vmem:[%s1 + $0x48] sm:$0xf]
      %v256 = vld [vmem:[%s1 + $0x4c] sm:$0xf]
      %v257 = vld [vmem:[%s1 + $0x50] sm:$0xf]
      %v258 = vld [vmem:[%s1 + $0x54] sm:$0xf]
      %v259 = vld [vmem:[%s1 + $0x58] sm:$0xf]
      %v260 = vld [vmem:[%s1 + $0x5c] sm:$0xf]
      %v261 = vld [vmem:[%s1 + $0x60] sm:$0xf]
      %v294 = vunpack.c.l.b16 %v205
      %v295 = vunpack.c.h.b16 %v205
      %v296 = vunpack.c.l.b16 %v206
      %v297 = vunpack.c.h.b16 %v206
      %v298 = vunpack.c.l.b16 %v207
      %v299 = vunpack.c.h.b16 %v207
      %v300 = vunpack.c.l.b16 %v208
      %v301 = vunpack.c.h.b16 %v208
      %v302 = vunpack.c.l.b16 %v209
      %v303 = vunpack.c.h.b16 %v209
      %v304 = vunpack.c.l.b16 %v210
      %v305 = vunpack.c.h.b16 %v210
      %v306 = vunpack.c.l.b16 %v211
      %v307 = vunpack.c.h.b16 %v211
      %v308 = vunpack.c.l.b16 %v212
      %v309 = vunpack.c.h.b16 %v212
      %v310 = vunpack.c.l.b16 %v213
      %v311 = vunpack.c.h.b16 %v213
      %v312 = vunpack.c.l.b16 %v214
      %v313 = vunpack.c.h.b16 %v214
      %v314 = vunpack.c.l.b16 %v215
      %v315 = vunpack.c.h.b16 %v215
      %v316 = vunpack.c.l.b16 %v216
      %v317 = vunpack.c.h.b16 %v216
      %v318 = vunpack.c.l.b16 %v217
      %v319 = vunpack.c.h.b16 %v217
      %v320 = vunpack.c.l.b16 %v218
      %v321 = vunpack.c.h.b16 %v218
      %v322 = vunpack.c.l.b16 %v219
      %v323 = vunpack.c.h.b16 %v219
      %v324 = vunpack.c.l.b16 %v220
      %v325 = vunpack.c.h.b16 %v220
      %v326 = vunpack.c.l.b16 %v221
      %v327 = vunpack.c.h.b16 %v221
      %v328 = vunpack.c.l.b16 %v222
      %v329 = vunpack.c.h.b16 %v222
      %v330 = vunpack.c.l.b16 %v223
      %v331 = vunpack.c.h.b16 %v223
      %v332 = vunpack.c.l.b16 %v224
      %v333 = vunpack.c.h.b16 %v224
      %v334 = vunpack.c.l.b16 %v225
      %v335 = vunpack.c.h.b16 %v225
      %v336 = vunpack.c.l.b16 %v226
      %v337 = vunpack.c.h.b16 %v226
      %v338 = vunpack.c.l.b16 %v227
      %v339 = vunpack.c.h.b16 %v227
      %v340 = vunpack.c.l.b16 %v228
      %v341 = vunpack.c.h.b16 %v228
      %v342 = vunpack.c.l.b16 %v229
      %v343 = vunpack.c.h.b16 %v229
      %v344 = vunpack.c.l.b16 %v230
      %v345 = vunpack.c.h.b16 %v230
      %v346 = vunpack.c.l.b16 %v231
      %v347 = vunpack.c.h.b16 %v231
      %v348 = vunpack.c.l.b16 %v232
      %v349 = vunpack.c.h.b16 %v232
      %v350 = vunpack.c.l.b16 %v233
      %v351 = vunpack.c.h.b16 %v233
      %v352 = vunpack.c.l.b16 %v234
      %v353 = vunpack.c.h.b16 %v234
      %v354 = vunpack.c.l.b16 %v235
      %v355 = vunpack.c.h.b16 %v235
      %v356 = vunpack.c.l.b16 %v236
      %v357 = vunpack.c.h.b16 %v236
      %v358 = vpack.c.b16 %v296, %v294
      %v359 = vpack.c.b16 %v297, %v295
      %v360 = vpack.c.b16 %v300, %v298
      %v361 = vpack.c.b16 %v301, %v299
      %v362 = vpack.c.b16 %v304, %v302
      %v363 = vpack.c.b16 %v305, %v303
      %v364 = vpack.c.b16 %v308, %v306
      %v365 = vpack.c.b16 %v309, %v307
      %v366 = vpack.c.b16 %v312, %v310
      %v367 = vpack.c.b16 %v313, %v311
      %v368 = vpack.c.b16 %v316, %v314
      %v369 = vpack.c.b16 %v317, %v315
      %v370 = vpack.c.b16 %v320, %v318
      %v371 = vpack.c.b16 %v321, %v319
      %v372 = vpack.c.b16 %v324, %v322
      %v373 = vpack.c.b16 %v325, %v323
      %v374 = vpack.c.b16 %v328, %v326
      %v375 = vpack.c.b16 %v329, %v327
      %v376 = vpack.c.b16 %v332, %v330
      %v377 = vpack.c.b16 %v333, %v331
      %v378 = vpack.c.b16 %v336, %v334
      %v379 = vpack.c.b16 %v337, %v335
      %v380 = vpack.c.b16 %v340, %v338
      %v381 = vpack.c.b16 %v341, %v339
      %v382 = vpack.c.b16 %v344, %v342
      %v383 = vpack.c.b16 %v345, %v343
      %v384 = vpack.c.b16 %v348, %v346
      %v385 = vpack.c.b16 %v349, %v347
      %v386 = vpack.c.b16 %v352, %v350
      %v387 = vpack.c.b16 %v353, %v351
      %v388 = vpack.c.b16 %v356, %v354
      %v389 = vpack.c.b16 %v357, %v355
      %v431 = vunpack.c.l.b16 %v237
      %v432 = vunpack.c.l.b16 %v238
      %v433 = vunpack.c.l.b16 %v239
      %v434 = vunpack.c.l.b16 %v240
      %v435 = vunpack.c.l.b16 %v241
      %v436 = vunpack.c.l.b16 %v242
      %v437 = vunpack.c.l.b16 %v243
      %v438 = vunpack.c.l.b16 %v244
      %v439 = vunpack.c.l.b16 %v245
      %v440 = vunpack.c.l.b16 %v246
      %v441 = vunpack.c.l.b16 %v247
      %v442 = vunpack.c.l.b16 %v248
      %v443 = vunpack.c.l.b16 %v249
      %v444 = vunpack.c.l.b16 %v250
      %v445 = vunpack.c.l.b16 %v251
      %v446 = vunpack.c.l.b16 %v252
      %v447 = vunpack.c.l.b16 %v253
      %v448 = vunpack.c.l.b16 %v254
      %v449 = vunpack.c.l.b16 %v255
      %v450 = vunpack.c.l.b16 %v256
      %v451 = vunpack.c.l.b16 %v257
      %v452 = vunpack.c.l.b16 %v258
      %v453 = vunpack.c.l.b16 %v259
      %v454 = vunpack.c.l.b16 %v260
      %v455 = vunpack.c.l.b16 %v261
      %v456 = vpack.c.b16 %v432, %v431
      %v457 = vpack.c.b16 %v434, %v433
      %v458 = vpack.c.b16 %v436, %v435
      %v459 = vpack.c.b16 %v438, %v437
      %v460 = vpack.c.b16 %v440, %v439
      %v461 = vpack.c.b16 %v442, %v441
      %v462 = vpack.c.b16 %v444, %v443
      %v463 = vpack.c.b16 %v446, %v445
      %v464 = vpack.c.b16 %v448, %v447
      %v465 = vpack.c.b16 %v450, %v449
      %v466 = vpack.c.b16 %v452, %v451
      %v467 = vpack.c.b16 %v454, %v453
      %v468 = vpack.c.b16 %v455, %v455
      %vm481 = vcmask 588800
      %v483 = vsel %vm481, %v359, 0
      %v486 = vsel %vm481, %v361, 0
      %v489 = vsel %vm481, %v363, 0
      %v492 = vsel %vm481, %v365, 0
      %v495 = vsel %vm481, %v367, 0
      %v498 = vsel %vm481, %v369, 0
      %v501 = vsel %vm481, %v371, 0
      %v504 = vsel %vm481, %v373, 0
      %v507 = vsel %vm481, %v375, 0
      %v510 = vsel %vm481, %v377, 0
      %v513 = vsel %vm481, %v379, 0
      %v516 = vsel %vm481, %v381, 0
      %v519 = vsel %vm481, %v383, 0
      %v522 = vsel %vm481, %v385, 0
      %v525 = vsel %vm481, %v387, 0
      %v528 = vsel %vm481, %v389, 0
      %vm530 = vcmask 1043456
      %v532 = vsel %vm530, %v468, 0
      %534 = vmatpush.bf16.msra.mxu0 %v463
      %535 = vmatpush.bf16.msra.mxu0 %v462
      %536 = vmatpush.bf16.msra.mxu0 %v461
      %537 = vmatpush.bf16.msra.mxu0 %v460
      %538 = vmatpush.bf16.msra.mxu0 %v459
      %539 = vmatpush.bf16.msra.mxu0 %v458
      %540 = vmatpush.bf16.msra.mxu0 %v457
      %541 = vmatpush.bf16.msra.mxu0 %v456
      %542 = vmatmul.bf16.gmra.mxu0 %v358
      %v543 = vpop.f32.mrf.mxu0
      %v544 = vadd.f32 0.0, %v543
      %v545 = vpop.f32.mrf.mxu0
      %v546 = vadd.f32 0.0, %v545
      %547 = vmatmul.bf16.gmra.mxu0 %v360
      %v548 = vpop.f32.mrf.mxu0
      %v549 = vadd.f32 0.0, %v548
      %v550 = vpop.f32.mrf.mxu0
      %v551 = vadd.f32 0.0, %v550
      %552 = vmatmul.bf16.gmra.mxu0 %v362
      %v553 = vpop.f32.mrf.mxu0
      %v554 = vadd.f32 0.0, %v553
      %v555 = vpop.f32.mrf.mxu0
      %v556 = vadd.f32 0.0, %v555
      %557 = vmatmul.bf16.gmra.mxu0 %v364
      %v558 = vpop.f32.mrf.mxu0
      %v559 = vadd.f32 0.0, %v558
      %v560 = vpop.f32.mrf.mxu0
      %v561 = vadd.f32 0.0, %v560
      %562 = vmatmul.bf16.gmra.mxu0 %v366
      %v563 = vpop.f32.mrf.mxu0
      %v564 = vadd.f32 0.0, %v563
      %v565 = vpop.f32.mrf.mxu0
      %v566 = vadd.f32 0.0, %v565
      %567 = vmatmul.bf16.gmra.mxu0 %v368
      %v568 = vpop.f32.mrf.mxu0
      %v569 = vadd.f32 0.0, %v568
      %v570 = vpop.f32.mrf.mxu0
      %v571 = vadd.f32 0.0, %v570
      %572 = vmatmul.bf16.gmra.mxu0 %v370
      %v573 = vpop.f32.mrf.mxu0
      %v574 = vadd.f32 0.0, %v573
      %v575 = vpop.f32.mrf.mxu0
      %v576 = vadd.f32 0.0, %v575
      %577 = vmatmul.bf16.gmra.mxu0 %v372
      %v578 = vpop.f32.mrf.mxu0
      %v579 = vadd.f32 0.0, %v578
      %v580 = vpop.f32.mrf.mxu0
      %v581 = vadd.f32 0.0, %v580
      %582 = vmatmul.bf16.gmra.mxu0 %v374
      %v583 = vpop.f32.mrf.mxu0
      %v584 = vadd.f32 0.0, %v583
      %v585 = vpop.f32.mrf.mxu0
      %v586 = vadd.f32 0.0, %v585
      %587 = vmatmul.bf16.gmra.mxu0 %v376
      %v588 = vpop.f32.mrf.mxu0
      %v589 = vadd.f32 0.0, %v588
      %v590 = vpop.f32.mrf.mxu0
      %v591 = vadd.f32 0.0, %v590
      %592 = vmatmul.bf16.gmra.mxu0 %v378
      %v593 = vpop.f32.mrf.mxu0
      %v594 = vadd.f32 0.0, %v593
      %v595 = vpop.f32.mrf.mxu0
      %v596 = vadd.f32 0.0, %v595
      %597 = vmatmul.bf16.gmra.mxu0 %v380
      %v598 = vpop.f32.mrf.mxu0
      %v599 = vadd.f32 0.0, %v598
      %v600 = vpop.f32.mrf.mxu0
      %v601 = vadd.f32 0.0, %v600
      %602 = vmatmul.bf16.gmra.mxu0 %v382
      %v603 = vpop.f32.mrf.mxu0
      %v604 = vadd.f32 0.0, %v603
      %v605 = vpop.f32.mrf.mxu0
      %v606 = vadd.f32 0.0, %v605
      %607 = vmatmul.bf16.gmra.mxu0 %v384
      %v608 = vpop.f32.mrf.mxu0
      %v609 = vadd.f32 0.0, %v608
      %v610 = vpop.f32.mrf.mxu0
      %v611 = vadd.f32 0.0, %v610
      %612 = vmatmul.bf16.gmra.mxu0 %v386
      %v613 = vpop.f32.mrf.mxu0
      %v614 = vadd.f32 0.0, %v613
      %v615 = vpop.f32.mrf.mxu0
      %v616 = vadd.f32 0.0, %v615
      %617 = vmatmul.bf16.gmra.mxu0 %v388
      %v618 = vpop.f32.mrf.mxu0
      %v619 = vadd.f32 0.0, %v618
      %v620 = vpop.f32.mrf.mxu0
      %v621 = vadd.f32 0.0, %v620
      %622 = vdwg.mxu0
      %623 = vmatpush.bf16.msra.mxu0 0
      %624 = vmatpush.bf16.msra.mxu0 0
      %625 = vmatpush.bf16.msra.mxu0 0
      %626 = vmatpush.bf16.msra.mxu0 %v532
      %627 = vmatpush.bf16.msra.mxu0 %v467
      %628 = vmatpush.bf16.msra.mxu0 %v466
      %629 = vmatpush.bf16.msra.mxu0 %v465
      %630 = vmatpush.bf16.msra.mxu0 %v464
      %631 = vmatmul.bf16.gmra.mxu0 %v483
      %v632 = vpop.f32.mrf.mxu0
      %v633 = vadd.f32 %v544, %v632
      %v634 = vpop.f32.mrf.mxu0
      %v635 = vadd.f32 %v546, %v634
      %636 = vmatmul.bf16.gmra.mxu0 %v486
      %v637 = vpop.f32.mrf.mxu0
      %v638 = vadd.f32 %v549, %v637
      %v639 = vpop.f32.mrf.mxu0
      %v640 = vadd.f32 %v551, %v639
      %641 = vmatmul.bf16.gmra.mxu0 %v489
      %v642 = vpop.f32.mrf.mxu0
      %v643 = vadd.f32 %v554, %v642
      %v644 = vpop.f32.mrf.mxu0
      %v645 = vadd.f32 %v556, %v644
      %646 = vmatmul.bf16.gmra.mxu0 %v492
      %v647 = vpop.f32.mrf.mxu0
      %v648 = vadd.f32 %v559, %v647
      %v649 = vpop.f32.mrf.mxu0
      %v650 = vadd.f32 %v561, %v649
      %651 = vmatmul.bf16.gmra.mxu0 %v495
      %v652 = vpop.f32.mrf.mxu0
      %v653 = vadd.f32 %v564, %v652
      %v654 = vpop.f32.mrf.mxu0
      %v655 = vadd.f32 %v566, %v654
      %656 = vmatmul.bf16.gmra.mxu0 %v498
      %v657 = vpop.f32.mrf.mxu0
      %v658 = vadd.f32 %v569, %v657
      %v659 = vpop.f32.mrf.mxu0
      %v660 = vadd.f32 %v571, %v659
      %661 = vmatmul.bf16.gmra.mxu0 %v501
      %v662 = vpop.f32.mrf.mxu0
      %v663 = vadd.f32 %v574, %v662
      %v664 = vpop.f32.mrf.mxu0
      %v665 = vadd.f32 %v576, %v664
      %666 = vmatmul.bf16.gmra.mxu0 %v504
      %v667 = vpop.f32.mrf.mxu0
      %v668 = vadd.f32 %v579, %v667
      %v669 = vpop.f32.mrf.mxu0
      %v670 = vadd.f32 %v581, %v669
      %671 = vmatmul.bf16.gmra.mxu0 %v507
      %v672 = vpop.f32.mrf.mxu0
      %v673 = vadd.f32 %v584, %v672
      %v674 = vpop.f32.mrf.mxu0
      %v675 = vadd.f32 %v586, %v674
      %676 = vmatmul.bf16.gmra.mxu0 %v510
      %v677 = vpop.f32.mrf.mxu0
      %v678 = vadd.f32 %v589, %v677
      %v679 = vpop.f32.mrf.mxu0
      %v680 = vadd.f32 %v591, %v679
      %681 = vmatmul.bf16.gmra.mxu0 %v513
      %v682 = vpop.f32.mrf.mxu0
      %v683 = vadd.f32 %v594, %v682
      %v684 = vpop.f32.mrf.mxu0
      %v685 = vadd.f32 %v596, %v684
      %686 = vmatmul.bf16.gmra.mxu0 %v516
      %v687 = vpop.f32.mrf.mxu0
      %v688 = vadd.f32 %v599, %v687
      %v689 = vpop.f32.mrf.mxu0
      %v690 = vadd.f32 %v601, %v689
      %691 = vmatmul.bf16.gmra.mxu0 %v519
      %v692 = vpop.f32.mrf.mxu0
      %v693 = vadd.f32 %v604, %v692
      %v694 = vpop.f32.mrf.mxu0
      %v695 = vadd.f32 %v606, %v694
      %696 = vmatmul.bf16.gmra.mxu0 %v522
      %v697 = vpop.f32.mrf.mxu0
      %v698 = vadd.f32 %v609, %v697
      %v699 = vpop.f32.mrf.mxu0
      %v700 = vadd.f32 %v611, %v699
      %701 = vmatmul.bf16.gmra.mxu0 %v525
      %v702 = vpop.f32.mrf.mxu0
      %v703 = vadd.f32 %v614, %v702
      %v704 = vpop.f32.mrf.mxu0
      %v705 = vadd.f32 %v616, %v704
      %706 = vmatmul.bf16.gmra.mxu0 %v528
      %v707 = vpop.f32.mrf.mxu0
      %v708 = vadd.f32 %v619, %v707
      %v709 = vpop.f32.mrf.mxu0
      %v710 = vadd.f32 %v621, %v709
      %711 = vdwg.mxu0
      %v712 = vld [vmem:[%s2] sm:$0x1]
      %v714 = vperm.slane %v712, 0
      %v716 = vmul.f32 %v633, %v714
      %v717 = vmul.f32 %v635, %v714
      %v718 = vmul.f32 %v638, %v714
      %v719 = vmul.f32 %v640, %v714
      %v720 = vmul.f32 %v643, %v714
      %v721 = vmul.f32 %v645, %v714
      %v722 = vmul.f32 %v648, %v714
      %v723 = vmul.f32 %v650, %v714
      %v724 = vmul.f32 %v653, %v714
      %v725 = vmul.f32 %v655, %v714
      %v726 = vmul.f32 %v658, %v714
      %v727 = vmul.f32 %v660, %v714
      %v728 = vmul.f32 %v663, %v714
      %v729 = vmul.f32 %v665, %v714
      %v730 = vmul.f32 %v668, %v714
      %v731 = vmul.f32 %v670, %v714
      %v732 = vmul.f32 %v673, %v714
      %v733 = vmul.f32 %v675, %v714
      %v734 = vmul.f32 %v678, %v714
      %v735 = vmul.f32 %v680, %v714
      %v736 = vmul.f32 %v683, %v714
      %v737 = vmul.f32 %v685, %v714
      %v738 = vmul.f32 %v688, %v714
      %v739 = vmul.f32 %v690, %v714
      %v740 = vmul.f32 %v693, %v714
      %v741 = vmul.f32 %v695, %v714
      %v742 = vmul.f32 %v698, %v714
      %v743 = vmul.f32 %v700, %v714
      %v744 = vmul.f32 %v703, %v714
      %v745 = vmul.f32 %v705, %v714
      %v746 = vmul.f32 %v708, %v714
      %v747 = vmul.f32 %v710, %v714
      %v748 = vld [vmem:[%s3] sm:$0x1]
      %v750 = vperm.slane %v748, 0
      %v752 = vadd.f32 %v716, %v750
      %v753 = vadd.f32 %v717, %v750
      %v754 = vadd.f32 %v718, %v750
      %v755 = vadd.f32 %v719, %v750
      %v756 = vadd.f32 %v720, %v750
      %v757 = vadd.f32 %v721, %v750
      %v758 = vadd.f32 %v722, %v750
      %v759 = vadd.f32 %v723, %v750
      %v760 = vadd.f32 %v724, %v750
      %v761 = vadd.f32 %v725, %v750
      %v762 = vadd.f32 %v726, %v750
      %v763 = vadd.f32 %v727, %v750
      %v764 = vadd.f32 %v728, %v750
      %v765 = vadd.f32 %v729, %v750
      %v766 = vadd.f32 %v730, %v750
      %v767 = vadd.f32 %v731, %v750
      %v768 = vadd.f32 %v732, %v750
      %v769 = vadd.f32 %v733, %v750
      %v770 = vadd.f32 %v734, %v750
      %v771 = vadd.f32 %v735, %v750
      %v772 = vadd.f32 %v736, %v750
      %v773 = vadd.f32 %v737, %v750
      %v774 = vadd.f32 %v738, %v750
      %v775 = vadd.f32 %v739, %v750
      %v776 = vadd.f32 %v740, %v750
      %v777 = vadd.f32 %v741, %v750
      %v778 = vadd.f32 %v742, %v750
      %v779 = vadd.f32 %v743, %v750
      %v780 = vadd.f32 %v744, %v750
      %v781 = vadd.f32 %v745, %v750
      %v782 = vadd.f32 %v746, %v750
      %v783 = vadd.f32 %v747, %v750
      %v784 = vmax.f32 %v752, 0.0
      %v785 = vmax.f32 %v753, 0.0
      %v786 = vmax.f32 %v754, 0.0
      %v787 = vmax.f32 %v755, 0.0
      %v788 = vmax.f32 %v756, 0.0
      %v789 = vmax.f32 %v757, 0.0
      %v790 = vmax.f32 %v758, 0.0
      %v791 = vmax.f32 %v759, 0.0
      %v792 = vmax.f32 %v760, 0.0
      %v793 = vmax.f32 %v761, 0.0
      %v794 = vmax.f32 %v762, 0.0
      %v795 = vmax.f32 %v763, 0.0
      %v796 = vmax.f32 %v764, 0.0
      %v797 = vmax.f32 %v765, 0.0
      %v798 = vmax.f32 %v766, 0.0
      %v799 = vmax.f32 %v767, 0.0
      %v800 = vmax.f32 %v768, 0.0
      %v801 = vmax.f32 %v769, 0.0
      %v802 = vmax.f32 %v770, 0.0
      %v803 = vmax.f32 %v771, 0.0
      %v804 = vmax.f32 %v772, 0.0
      %v805 = vmax.f32 %v773, 0.0
      %v806 = vmax.f32 %v774, 0.0
      %v807 = vmax.f32 %v775, 0.0
      %v808 = vmax.f32 %v776, 0.0
      %v809 = vmax.f32 %v777, 0.0
      %v810 = vmax.f32 %v778, 0.0
      %v811 = vmax.f32 %v779, 0.0
      %v812 = vmax.f32 %v780, 0.0
      %v813 = vmax.f32 %v781, 0.0
      %v814 = vmax.f32 %v782, 0.0
      %v815 = vmax.f32 %v783, 0.0
      %816 = vst [vmem:[%s202] sm:$0xff] %v784
      %817 = vst [vmem:[%s202 + $0x8] sm:$0xff] %v785
      %818 = vst [vmem:[%s202 + $0x10] sm:$0xff] %v786
      %819 = vst [vmem:[%s202 + $0x18] sm:$0xff] %v787
      %820 = vst [vmem:[%s202 + $0x20] sm:$0xff] %v788
      %821 = vst [vmem:[%s202 + $0x28] sm:$0xff] %v789
      %822 = vst [vmem:[%s202 + $0x30] sm:$0xff] %v790
      %823 = vst [vmem:[%s202 + $0x38] sm:$0xff] %v791
      %824 = vst [vmem:[%s202 + $0x40] sm:$0xff] %v792
      %825 = vst [vmem:[%s202 + $0x48] sm:$0xff] %v793
      %826 = vst [vmem:[%s202 + $0x50] sm:$0xff] %v794
      %827 = vst [vmem:[%s202 + $0x58] sm:$0xff] %v795
      %828 = vst [vmem:[%s202 + $0x60] sm:$0xff] %v796
      %829 = vst [vmem:[%s202 + $0x68] sm:$0xff] %v797
      %830 = vst [vmem:[%s202 + $0x70] sm:$0xff] %v798
      %831 = vst [vmem:[%s202 + $0x78] sm:$0xff] %v799
      %832 = vst [vmem:[%s202 + $0x80] sm:$0xff] %v800
      %833 = vst [vmem:[%s202 + $0x88] sm:$0xff] %v801
      %834 = vst [vmem:[%s202 + $0x90] sm:$0xff] %v802
      %835 = vst [vmem:[%s202 + $0x98] sm:$0xff] %v803
      %836 = vst [vmem:[%s202 + $0xa0] sm:$0xff] %v804
      %837 = vst [vmem:[%s202 + $0xa8] sm:$0xff] %v805
      %838 = vst [vmem:[%s202 + $0xb0] sm:$0xff] %v806
      %839 = vst [vmem:[%s202 + $0xb8] sm:$0xff] %v807
      %840 = vst [vmem:[%s202 + $0xc0] sm:$0xff] %v808
      %841 = vst [vmem:[%s202 + $0xc8] sm:$0xff] %v809
      %842 = vst [vmem:[%s202 + $0xd0] sm:$0xff] %v810
      %843 = vst [vmem:[%s202 + $0xd8] sm:$0xff] %v811
      %844 = vst [vmem:[%s202 + $0xe0] sm:$0xff] %v812
      %845 = vst [vmem:[%s202 + $0xe8] sm:$0xff] %v813
      %846 = vst [vmem:[%s202 + $0xf0] sm:$0xff] %v814
      %847 = vst [vmem:[%s202 + $0xf8] sm:$0xff] %v815
      %s848 = smul.u32 32, %s15
      %p849 = scmp.lt.s32.totalorder %s848, 63
      %s850 = scalar_select %p849, %s848, 63
      %s851 = smul.addr %s850, 8
      %s852 = scalar_lea.vmem %s4, %s851
      // Predicated region
      $region37: #{downsample_forward.7} parent=35 // pred_check
        %p853 = pneg %p122
      $region38: #{downsample_forward.7} parent=35 // pred_check_branch
        %855 = sbr.rel (%p853) target = $region40
      $region39: #{downsample_forward.7} parent=35 // pred_region
        %s856 = smul.u32 32, %s15
      $region40: #{downsample_forward.7} parent=35 // pred_fallthru
        _
    $region36: #{downsample_forward.7} parent=5 // pred_fallthru
      _
    %p857 = scmp.le.s32.totalorder 2, %s10
    // Predicated region
    $region41: #{downsample_forward.7} parent=5 // pred_check
      %p858 = pneg %p857
    $region42: #{downsample_forward.7} parent=5 // pred_check_branch
      %860 = sbr.rel (%p858) target = $region44
    $region43: #{downsample_forward.7} parent=5 // pred_region
      %s861 = ssub.s32 %s10, 2
      // Predicated region
      $region45: #{downsample_forward.7} parent=43 // pred_check
        %p862 = pneg %p128
      $region46: #{downsample_forward.7} parent=43 // pred_check_branch
        %864 = sbr.rel (%p862) target = $region48
      $region47: #{downsample_forward.7} parent=43 // pred_region
        %s865 = smul.u32 32, %s16
        %p866 = scmp.lt.s32.totalorder %s865, 63
        %s867 = scalar_select %p866, %s865, 63
        %s868 = smul.addr %s867, 8
        %s869 = scalar_lea.vmem %s4, %s868
      $region48: #{downsample_forward.7} parent=43 // pred_fallthru
        _
    $region44: #{downsample_forward.7} parent=5 // pred_fallthru
      _
  $region6: #{downsample_forward.7} parent=0 // loop_footer
    %s14 = sadd.s32 1, %s10
  $region7: #{downsample_forward.7} parent=0 // loop_footer_branch
    %9 = sbr.rel target = $region3
  $region8: #{downsample_forward.7} parent=0 // loop_exit
    _

// kernel: downsample_forward.8
$region0: #{downsample_forward.8}
  #allocation0 [shape = 'u32[]', space=smem, size = 0x4, offset = 0x4, fixed_abs, tag = 'smem constant byte address 0x4 - core index']
  #allocation1 [shape = 'u32[72,128]{1,0:T(1,128)}', space=vmem, size = 0x9000, scoped, tag = 'internal scratch']
  %s0 = inlined_call_operand.vmem [shape: bf16[128,72], index: 0, kind: input, shape index: {}]
  %s1 = inlined_call_operand.vmem [shape: bf16[72,128], index: 1, kind: input, shape index: {}]
  %s2 = inlined_call_operand.vmem [shape: f32[8,128], index: 2, kind: output, shape index: {}]
  %s3 = sld [smem:[#allocation0]]
  $region18: #{downsample_forward.8} parent=0
    _
  %s5 = ssub.s32 1, %s3
  %s6 = scalar_select 0, %s5, %s3
  // Predicated region
  $region2: #{downsample_forward.8} parent=0 // pred_check
    _
  $region3: #{downsample_forward.8} parent=0 // pred_check_branch
    %8 = sbr.rel (0) target = $region5
  $region4: #{downsample_forward.8} parent=0 // pred_region
    _
  $region5: #{downsample_forward.8} parent=0 // pred_fallthru
    _
  // Predicated region
  $region6: #{downsample_forward.8} parent=0 // pred_check
    _
  $region7: #{downsample_forward.8} parent=0 // pred_check_branch
    %10 = sbr.rel (0) target = $region9
  $region8: #{downsample_forward.8} parent=0 // pred_region
    _
  $region9: #{downsample_forward.8} parent=0 // pred_fallthru
    _
  %v12 = vld [vmem:[%s0] sm:$0xf]
  %v13 = vld [vmem:[%s0 + $0x4] sm:$0xf]
  %v14 = vld [vmem:[%s0 + $0x8] sm:$0xf]
  %v15 = vld [vmem:[%s0 + $0xc] sm:$0xf]
  %v16 = vld [vmem:[%s0 + $0x10] sm:$0xf]
  %v17 = vld [vmem:[%s0 + $0x14] sm:$0xf]
  %v18 = vld [vmem:[%s0 + $0x18] sm:$0xf]
  %v19 = vld [vmem:[%s0 + $0x1c] sm:$0xf]
  %v20 = vld [vmem:[%s0 + $0x20] sm:$0xf]
  %v21 = vld [vmem:[%s0 + $0x24] sm:$0xf]
  %v22 = vld [vmem:[%s0 + $0x28] sm:$0xf]
  %v23 = vld [vmem:[%s0 + $0x2c] sm:$0xf]
  %v24 = vld [vmem:[%s0 + $0x30] sm:$0xf]
  %v25 = vld [vmem:[%s0 + $0x34] sm:$0xf]
  %v26 = vld [vmem:[%s0 + $0x38] sm:$0xf]
  %v27 = vld [vmem:[%s0 + $0x3c] sm:$0xf]
  %v28 = vld [vmem:[%s1] sm:$0xf]
  %v29 = vld [vmem:[%s1 + $0x4] sm:$0xf]
  %v30 = vld [vmem:[%s1 + $0x8] sm:$0xf]
  %v31 = vld [vmem:[%s1 + $0xc] sm:$0xf]
  %v32 = vld [vmem:[%s1 + $0x10] sm:$0xf]
  %v33 = vld [vmem:[%s1 + $0x14] sm:$0xf]
  %v34 = vld [vmem:[%s1 + $0x18] sm:$0xf]
  %v35 = vld [vmem:[%s1 + $0x1c] sm:$0xf]
  %v36 = vld [vmem:[%s1 + $0x20] sm:$0xf]
  %v53 = vunpack.c.l.b16 %v12
  %v54 = vunpack.c.l.b16 %v13
  %v55 = vunpack.c.l.b16 %v14
  %v56 = vunpack.c.l.b16 %v15
  %v57 = vunpack.c.l.b16 %v16
  %v58 = vunpack.c.l.b16 %v17
  %v59 = vunpack.c.l.b16 %v18
  %v60 = vunpack.c.l.b16 %v19
  %v61 = vunpack.c.l.b16 %v20
  %v62 = vunpack.c.l.b16 %v21
  %v63 = vunpack.c.l.b16 %v22
  %v64 = vunpack.c.l.b16 %v23
  %v65 = vunpack.c.l.b16 %v24
  %v66 = vunpack.c.l.b16 %v25
  %v67 = vunpack.c.l.b16 %v26
  %v68 = vunpack.c.l.b16 %v27
  %v69 = vpack.c.b16 %v54, %v53
  %v70 = vpack.c.b16 %v56, %v55
  %v71 = vpack.c.b16 %v58, %v57
  %v72 = vpack.c.b16 %v60, %v59
  %v73 = vpack.c.b16 %v62, %v61
  %v74 = vpack.c.b16 %v64, %v63
  %v75 = vpack.c.b16 %v66, %v65
  %v76 = vpack.c.b16 %v68, %v67
  %v86 = vunpack.c.l.b16 %v28
  %v87 = vunpack.c.l.b16 %v29
  %v88 = vunpack.c.l.b16 %v30
  %v89 = vunpack.c.l.b16 %v31
  %v90 = vunpack.c.l.b16 %v32
  %v91 = vunpack.c.l.b16 %v33
  %v92 = vunpack.c.l.b16 %v34
  %v93 = vunpack.c.l.b16 %v35
  %v94 = vunpack.c.l.b16 %v36
  %v95 = vpack.c.b16 %v87, %v86
  %v96 = vpack.c.b16 %v89, %v88
  %v97 = vpack.c.b16 %v91, %v90
  %v98 = vpack.c.b16 %v93, %v92
  %v99 = vpack.c.b16 %v94, %v94
  %vm104 = vcmask 588800
  %v106 = vsel %vm104, %v69, 0
  %v109 = vsel %vm104, %v70, 0
  %v112 = vsel %vm104, %v71, 0
  %v115 = vsel %vm104, %v72, 0
  %v118 = vsel %vm104, %v73, 0
  %v121 = vsel %vm104, %v74, 0
  %v124 = vsel %vm104, %v75, 0
  %v127 = vsel %vm104, %v76, 0
  %vm129 = vcmask 1043456
  %v131 = vsel %vm129, %v99, 0
  %133 = vmatpush.bf16.msra.mxu0 0
  %134 = vmatpush.bf16.msra.mxu0 0
  %135 = vmatpush.bf16.msra.mxu0 0
  %136 = vmatpush.bf16.msra.mxu0 %v131
  %137 = vmatpush.bf16.msra.mxu0 %v98
  %138 = vmatpush.bf16.msra.mxu0 %v97
  %139 = vmatpush.bf16.msra.mxu0 %v96
  %140 = vmatpush.bf16.msra.mxu0 %v95
  %141 = vmatmul.bf16.gmra.mxu0 %v106
  %v142 = vpop.f32.mrf.mxu0
  %v143 = vadd.f32 0.0, %v142
  %v144 = vpop.f32.mrf.mxu0
  %v145 = vadd.f32 0.0, %v144
  %146 = vmatmul.bf16.gmra.mxu0 %v109
  %v147 = vpop.f32.mrf.mxu0
  %v148 = vadd.f32 0.0, %v147
  %v149 = vpop.f32.mrf.mxu0
  %v150 = vadd.f32 0.0, %v149
  %151 = vmatmul.bf16.gmra.mxu0 %v112
  %v152 = vpop.f32.mrf.mxu0
  %v153 = vadd.f32 0.0, %v152
  %v154 = vpop.f32.mrf.mxu0
  %v155 = vadd.f32 0.0, %v154
  %156 = vmatmul.bf16.gmra.mxu0 %v115
  %v157 = vpop.f32.mrf.mxu0
  %v158 = vadd.f32 0.0, %v157
  %v159 = vpop.f32.mrf.mxu0
  %v160 = vadd.f32 0.0, %v159
  %161 = vmatmul.bf16.gmra.mxu0 %v118
  %v162 = vpop.f32.mrf.mxu0
  %v163 = vadd.f32 0.0, %v162
  %v164 = vpop.f32.mrf.mxu0
  %v165 = vadd.f32 0.0, %v164
  %166 = vmatmul.bf16.gmra.mxu0 %v121
  %v167 = vpop.f32.mrf.mxu0
  %v168 = vadd.f32 0.0, %v167
  %v169 = vpop.f32.mrf.mxu0
  %v170 = vadd.f32 0.0, %v169
  %171 = vmatmul.bf16.gmra.mxu0 %v124
  %v172 = vpop.f32.mrf.mxu0
  %v173 = vadd.f32 0.0, %v172
  %v174 = vpop.f32.mrf.mxu0
  %v175 = vadd.f32 0.0, %v174
  %176 = vmatmul.bf16.gmra.mxu0 %v127
  %v177 = vpop.f32.mrf.mxu0
  %v178 = vadd.f32 0.0, %v177
  %v179 = vpop.f32.mrf.mxu0
  %v180 = vadd.f32 0.0, %v179
  %181 = vdwg.mxu0
  %s182 = smul.u32 0, 128
  %v183 = vlaneseq
  %v184 = vshrl.u32 %v183, 7
  %v185 = vadd.s32 %v184, 8
  %v186 = vadd.s32 %v184, 16
  %v187 = vadd.s32 %v184, 24
  %v188 = vadd.s32 %v184, 32
  %v189 = vadd.s32 %v184, 40
  %v190 = vadd.s32 %v184, 48
  %v191 = vadd.s32 %v184, 56
  %v192 = vadd.s32 %v184, 64
  %v193 = vadd.s32 %v184, 72
  %v194 = vadd.s32 %v184, 80
  %v195 = vadd.s32 %v184, 88
  %v196 = vadd.s32 %v184, 96
  %v197 = vadd.s32 %v184, 104
  %v198 = vadd.s32 %v184, 112
  %v199 = vadd.s32 %v184, 120
  %v200 = vstv %s182
  %v201 = vadd.s32 %v200, %v184
  %v202 = vadd.s32 %v200, %v185
  %v203 = vadd.s32 %v200, %v186
  %v204 = vadd.s32 %v200, %v187
  %v205 = vadd.s32 %v200, %v188
  %v206 = vadd.s32 %v200, %v189
  %v207 = vadd.s32 %v200, %v190
  %v208 = vadd.s32 %v200, %v191
  %v209 = vadd.s32 %v200, %v192
  %v210 = vadd.s32 %v200, %v193
  %v211 = vadd.s32 %v200, %v194
  %v212 = vadd.s32 %v200, %v195
  %v213 = vadd.s32 %v200, %v196
  %v214 = vadd.s32 %v200, %v197
  %v215 = vadd.s32 %v200, %v198
  %v216 = vadd.s32 %v200, %v199
  %vm217 = vcmp.lt.s32.totalorder %v201, 128
  %vm218 = vcmp.lt.s32.totalorder %v202, 128
  %vm219 = vcmp.lt.s32.totalorder %v203, 128
  %vm220 = vcmp.lt.s32.totalorder %v204, 128
  %vm221 = vcmp.lt.s32.totalorder %v205, 128
  %vm222 = vcmp.lt.s32.totalorder %v206, 128
  %vm223 = vcmp.lt.s32.totalorder %v207, 128
  %vm224 = vcmp.lt.s32.totalorder %v208, 128
  %vm225 = vcmp.lt.s32.totalorder %v209, 128
  %vm226 = vcmp.lt.s32.totalorder %v210, 128
  %vm227 = vcmp.lt.s32.totalorder %v211, 128
  %vm228 = vcmp.lt.s32.totalorder %v212, 128
  %vm229 = vcmp.lt.s32.totalorder %v213, 128
  %vm230 = vcmp.lt.s32.totalorder %v214, 128
  %vm231 = vcmp.lt.s32.totalorder %v215, 128
  %vm232 = vcmp.lt.s32.totalorder %v216, 128
  %v233 = vsel %vm217, 1, 0
  %v234 = vsel %vm218, 1, 0
  %v235 = vsel %vm219, 1, 0
  %v236 = vsel %vm220, 1, 0
  %v237 = vsel %vm221, 1, 0
  %v238 = vsel %vm222, 1, 0
  %v239 = vsel %vm223, 1, 0
  %v240 = vsel %vm224, 1, 0
  %v241 = vsel %vm225, 1, 0
  %v242 = vsel %vm226, 1, 0
  %v243 = vsel %vm227, 1, 0
  %v244 = vsel %vm228, 1, 0
  %v245 = vsel %vm229, 1, 0
  %v246 = vsel %vm230, 1, 0
  %v247 = vsel %vm231, 1, 0
  %v248 = vsel %vm232, 1, 0
  %v249 = vcvt.s32.f32 %v233
  %v250 = vcvt.s32.f32 %v234
  %v251 = vcvt.s32.f32 %v235
  %v252 = vcvt.s32.f32 %v236
  %v253 = vcvt.s32.f32 %v237
  %v254 = vcvt.s32.f32 %v238
  %v255 = vcvt.s32.f32 %v239
  %v256 = vcvt.s32.f32 %v240
  %v257 = vcvt.s32.f32 %v241
  %v258 = vcvt.s32.f32 %v242
  %v259 = vcvt.s32.f32 %v243
  %v260 = vcvt.s32.f32 %v244
  %v261 = vcvt.s32.f32 %v245
  %v262 = vcvt.s32.f32 %v246
  %v263 = vcvt.s32.f32 %v247
  %v264 = vcvt.s32.f32 %v248
  %s265 = ssub.s32 128, %s182
  %p266 = scmp.lt.s32.totalorder %s265, 128
  %s267 = scalar_select %p266, %s265, 128
  %s268 = scvt.s32.f32 %s267
  %v269 = vmul.f32 %v143, %v249
  %v270 = vmul.f32 %v145, %v250
  %v271 = vmul.f32 %v148, %v251
  %v272 = vmul.f32 %v150, %v252
  %v273 = vmul.f32 %v153, %v253
  %v274 = vmul.f32 %v155, %v254
  %v275 = vmul.f32 %v158, %v255
  %v276 = vmul.f32 %v160, %v256
  %v277 = vmul.f32 %v163, %v257
  %v278 = vmul.f32 %v165, %v258
  %v279 = vmul.f32 %v168, %v259
  %v280 = vmul.f32 %v170, %v260
  %v281 = vmul.f32 %v173, %v261
  %v282 = vmul.f32 %v175, %v262
  %v283 = vmul.f32 %v178, %v263
  %v284 = vmul.f32 %v180, %v264
  %v285 = vadd.f32 %v269, %v270
  %v286 = vadd.f32 %v285, %v271
  %v287 = vadd.f32 %v286, %v272
  %v288 = vadd.f32 %v287, %v273
  %v289 = vadd.f32 %v288, %v274
  %v290 = vadd.f32 %v289, %v275
  %v291 = vadd.f32 %v290, %v276
  %v292 = vadd.f32 %v291, %v277
  %v293 = vadd.f32 %v292, %v278
  %v294 = vadd.f32 %v293, %v279
  %v295 = vadd.f32 %v294, %v280
  %v296 = vadd.f32 %v295, %v281
  %v297 = vadd.f32 %v296, %v282
  %v298 = vadd.f32 %v297, %v283
  %v299 = vadd.f32 %v298, %v284
  %v300 = vrot.slane %v299, 4
  %v301 = vadd.f32 %v299, %v300
  %v302 = vrot.slane %v301, 2
  %v303 = vadd.f32 %v301, %v302
  %v304 = vrot.slane %v303, 1
  %v305 = vadd.f32 %v303, %v304
  %v306 = vstv %s268
  %v307 = vrcp.pop %v306
  %v308 = vmul.f32 %v306, %v307
  %v309 = vsub.f32 1.0, %v308
  %v310 = vmul.f32 %v307, %v309
  %v311 = vadd.f32 %v307, %v310
  %vm312 = vweird.f32 %v306
  %vm313 = vweird.f32 %v307
  %vm314 = vmor %vm312, %vm313
  %v315 = vsel %vm314, %v307, %v311
  %v316 = vand.u32 2147483647, %v306
  %vm317 = vcmp.eq.f32.partialorder %v316, 8.507059e+37
  %v318 = vand.u32 %v306, 2147483648
  %v319 = vor.u32 1.1754944e-38, %v318
  %v320 = vsel %vm317, %v319, %v315
  %v321 = vmul.f32 %v305, %v320
  %v322 = vsub.f32 %v143, %v321
  %v323 = vsub.f32 %v145, %v321
  %v324 = vsub.f32 %v148, %v321
  %v325 = vsub.f32 %v150, %v321
  %v326 = vsub.f32 %v153, %v321
  %v327 = vsub.f32 %v155, %v321
  %v328 = vsub.f32 %v158, %v321
  %v329 = vsub.f32 %v160, %v321
  %v330 = vsub.f32 %v163, %v321
  %v331 = vsub.f32 %v165, %v321
  %v332 = vsub.f32 %v168, %v321
  %v333 = vsub.f32 %v170, %v321
  %v334 = vsub.f32 %v173, %v321
  %v335 = vsub.f32 %v175, %v321
  %v336 = vsub.f32 %v178, %v321
  %v337 = vsub.f32 %v180, %v321
  %v338 = vmul.f32 %v322, %v249
  %v339 = vmul.f32 %v323, %v250
  %v340 = vmul.f32 %v324, %v251
  %v341 = vmul.f32 %v325, %v252
  %v342 = vmul.f32 %v326, %v253
  %v343 = vmul.f32 %v327, %v254
  %v344 = vmul.f32 %v328, %v255
  %v345 = vmul.f32 %v329, %v256
  %v346 = vmul.f32 %v330, %v257
  %v347 = vmul.f32 %v331, %v258
  %v348 = vmul.f32 %v332, %v259
  %v349 = vmul.f32 %v333, %v260
  %v350 = vmul.f32 %v334, %v261
  %v351 = vmul.f32 %v335, %v262
  %v352 = vmul.f32 %v336, %v263
  %v353 = vmul.f32 %v337, %v264
  %v354 = vmul.f32 %v338, %v338
  %v355 = vmul.f32 %v339, %v339
  %v356 = vmul.f32 %v340, %v340
  %v357 = vmul.f32 %v341, %v341
  %v358 = vmul.f32 %v342, %v342
  %v359 = vmul.f32 %v343, %v343
  %v360 = vmul.f32 %v344, %v344
  %v361 = vmul.f32 %v345, %v345
  %v362 = vmul.f32 %v346, %v346
  %v363 = vmul.f32 %v347, %v347
  %v364 = vmul.f32 %v348, %v348
  %v365 = vmul.f32 %v349, %v349
  %v366 = vmul.f32 %v350, %v350
  %v367 = vmul.f32 %v351, %v351
  %v368 = vmul.f32 %v352, %v352
  %v369 = vmul.f32 %v353, %v353
  %v370 = vadd.f32 %v354, %v355
  %v371 = vadd.f32 %v370, %v356
  %v372 = vadd.f32 %v371, %v357
  %v373 = vadd.f32 %v372, %v358
  %v374 = vadd.f32 %v373, %v359
  %v375 = vadd.f32 %v374, %v360
  %v376 = vadd.f32 %v375, %v361
  %v377 = vadd.f32 %v376, %v362
  %v378 = vadd.f32 %v377, %v363
  %v379 = vadd.f32 %v378, %v364
  %v380 = vadd.f32 %v379, %v365
  %v381 = vadd.f32 %v380, %v366
  %v382 = vadd.f32 %v381, %v367
  %v383 = vadd.f32 %v382, %v368
  %v384 = vadd.f32 %v383, %v369
  %v385 = vrot.slane %v384, 4
  %v386 = vadd.f32 %v384, %v385
  %v387 = vrot.slane %v386, 2
  %v388 = vadd.f32 %v386, %v387
  %v389 = vrot.slane %v388, 1
  %v390 = vadd.f32 %v388, %v389
  %vm391 = vcmask 1040384
  %v392 = vsel %vm391, %v305, %v390
  %vm393 = vcmask 1041408
  %v394 = vsel %vm393, %v392, %v306
  %vm395 = vcmask 1042432
  %v396 = vsel %vm395, %v394, 0.0
  %397 = vst [vmem:[%s2] sm:$0xff] %v396
  // Predicated region
  $region10: #{downsample_forward.8} parent=0 // pred_check
    _
  $region11: #{downsample_forward.8} parent=0 // pred_check_branch
    %399 = sbr.rel (0) target = $region13
  $region12: #{downsample_forward.8} parent=0 // pred_region
    _
  $region13: #{downsample_forward.8} parent=0 // pred_fallthru
    _
  // Predicated region
  $region14: #{downsample_forward.8} parent=0 // pred_check
    _
  $region15: #{downsample_forward.8} parent=0 // pred_check_branch
    %401 = sbr.rel (0) target = $region17
  $region16: #{downsample_forward.8} parent=0 // pred_region
    _
  $region17: #{downsample_forward.8} parent=0 // pred_fallthru
    _

// kernel: downsample_forward.9
$region0: #{downsample_forward.9}
  #allocation0 [shape = 'u32[]', space=smem, size = 0x4, offset = 0x4, fixed_abs, tag = 'smem constant byte address 0x4 - core index']
  #allocation1 [shape = 'u32[72,128]{1,0:T(1,128)}', space=vmem, size = 0x9000, scoped, tag = 'internal scratch']
  %s0 = inlined_call_operand.vmem [shape: bf16[128,72], index: 0, kind: input, shape index: {}]
  %s1 = inlined_call_operand.vmem [shape: bf16[72,128], index: 1, kind: input, shape index: {}]
  %s2 = inlined_call_operand.vmem [shape: f32[1,128], index: 2, kind: input, shape index: {}]
  %s3 = inlined_call_operand.vmem [shape: f32[1,128], index: 3, kind: input, shape index: {}]
  %s4 = inlined_call_operand.vmem [shape: f32[128,128], index: 4, kind: output, shape index: {}]
  %s5 = sld [smem:[#allocation0]]
  $region26: #{downsample_forward.9} parent=0
    _
  %s7 = ssub.s32 1, %s5
  %s8 = scalar_select 0, %s7, %s5
  // Predicated region
  $region2: #{downsample_forward.9} parent=0 // pred_check
    _
  $region3: #{downsample_forward.9} parent=0 // pred_check_branch
    %10 = sbr.rel (0) target = $region5
  $region4: #{downsample_forward.9} parent=0 // pred_region
    _
  $region5: #{downsample_forward.9} parent=0 // pred_fallthru
    _
  // Predicated region
  $region6: #{downsample_forward.9} parent=0 // pred_check
    _
  $region7: #{downsample_forward.9} parent=0 // pred_check_branch
    %12 = sbr.rel (0) target = $region9
  $region8: #{downsample_forward.9} parent=0 // pred_region
    _
  $region9: #{downsample_forward.9} parent=0 // pred_fallthru
    _
  // Predicated region
  $region10: #{downsample_forward.9} parent=0 // pred_check
    _
  $region11: #{downsample_forward.9} parent=0 // pred_check_branch
    %14 = sbr.rel (0) target = $region13
  $region12: #{downsample_forward.9} parent=0 // pred_region
    _
  $region13: #{downsample_forward.9} parent=0 // pred_fallthru
    _
  // Predicated region
  $region14: #{downsample_forward.9} parent=0 // pred_check
    _
  $region15: #{downsample_forward.9} parent=0 // pred_check_branch
    %16 = sbr.rel (0) target = $region17
  $region16: #{downsample_forward.9} parent=0 // pred_region
    _
  $region17: #{downsample_forward.9} parent=0 // pred_fallthru
    _
  %v18 = vld [vmem:[%s0] sm:$0xf]
  %v19 = vld [vmem:[%s0 + $0x4] sm:$0xf]
  %v20 = vld [vmem:[%s0 + $0x8] sm:$0xf]
  %v21 = vld [vmem:[%s0 + $0xc] sm:$0xf]
  %v22 = vld [vmem:[%s0 + $0x10] sm:$0xf]
  %v23 = vld [vmem:[%s0 + $0x14] sm:$0xf]
  %v24 = vld [vmem:[%s0 + $0x18] sm:$0xf]
  %v25 = vld [vmem:[%s0 + $0x1c] sm:$0xf]
  %v26 = vld [vmem:[%s0 + $0x20] sm:$0xf]
  %v27 = vld [vmem:[%s0 + $0x24] sm:$0xf]
  %v28 = vld [vmem:[%s0 + $0x28] sm:$0xf]
  %v29 = vld [vmem:[%s0 + $0x2c] sm:$0xf]
  %v30 = vld [vmem:[%s0 + $0x30] sm:$0xf]
  %v31 = vld [vmem:[%s0 + $0x34] sm:$0xf]
  %v32 = vld [vmem:[%s0 + $0x38] sm:$0xf]
  %v33 = vld [vmem:[%s0 + $0x3c] sm:$0xf]
  %v34 = vld [vmem:[%s1] sm:$0xf]
  %v35 = vld [vmem:[%s1 + $0x4] sm:$0xf]
  %v36 = vld [vmem:[%s1 + $0x8] sm:$0xf]
  %v37 = vld [vmem:[%s1 + $0xc] sm:$0xf]
  %v38 = vld [vmem:[%s1 + $0x10] sm:$0xf]
  %v39 = vld [vmem:[%s1 + $0x14] sm:$0xf]
  %v40 = vld [vmem:[%s1 + $0x18] sm:$0xf]
  %v41 = vld [vmem:[%s1 + $0x1c] sm:$0xf]
  %v42 = vld [vmem:[%s1 + $0x20] sm:$0xf]
  %v59 = vunpack.c.l.b16 %v18
  %v60 = vunpack.c.l.b16 %v19
  %v61 = vunpack.c.l.b16 %v20
  %v62 = vunpack.c.l.b16 %v21
  %v63 = vunpack.c.l.b16 %v22
  %v64 = vunpack.c.l.b16 %v23
  %v65 = vunpack.c.l.b16 %v24
  %v66 = vunpack.c.l.b16 %v25
  %v67 = vunpack.c.l.b16 %v26
  %v68 = vunpack.c.l.b16 %v27
  %v69 = vunpack.c.l.b16 %v28
  %v70 = vunpack.c.l.b16 %v29
  %v71 = vunpack.c.l.b16 %v30
  %v72 = vunpack.c.l.b16 %v31
  %v73 = vunpack.c.l.b16 %v32
  %v74 = vunpack.c.l.b16 %v33
  %v75 = vpack.c.b16 %v60, %v59
  %v76 = vpack.c.b16 %v62, %v61
  %v77 = vpack.c.b16 %v64, %v63
  %v78 = vpack.c.b16 %v66, %v65
  %v79 = vpack.c.b16 %v68, %v67
  %v80 = vpack.c.b16 %v70, %v69
  %v81 = vpack.c.b16 %v72, %v71
  %v82 = vpack.c.b16 %v74, %v73
  %v92 = vunpack.c.l.b16 %v34
  %v93 = vunpack.c.l.b16 %v35
  %v94 = vunpack.c.l.b16 %v36
  %v95 = vunpack.c.l.b16 %v37
  %v96 = vunpack.c.l.b16 %v38
  %v97 = vunpack.c.l.b16 %v39
  %v98 = vunpack.c.l.b16 %v40
  %v99 = vunpack.c.l.b16 %v41
  %v100 = vunpack.c.l.b16 %v42
  %v101 = vpack.c.b16 %v93, %v92
  %v102 = vpack.c.b16 %v95, %v94
  %v103 = vpack.c.b16 %v97, %v96
  %v104 = vpack.c.b16 %v99, %v98
  %v105 = vpack.c.b16 %v100, %v100
  %vm110 = vcmask 588800
  %v112 = vsel %vm110, %v75, 0
  %v115 = vsel %vm110, %v76, 0
  %v118 = vsel %vm110, %v77, 0
  %v121 = vsel %vm110, %v78, 0
  %v124 = vsel %vm110, %v79, 0
  %v127 = vsel %vm110, %v80, 0
  %v130 = vsel %vm110, %v81, 0
  %v133 = vsel %vm110, %v82, 0
  %vm135 = vcmask 1043456
  %v137 = vsel %vm135, %v105, 0
  %139 = vmatpush.bf16.msra.mxu0 0
  %140 = vmatpush.bf16.msra.mxu0 0
  %141 = vmatpush.bf16.msra.mxu0 0
  %142 = vmatpush.bf16.msra.mxu0 %v137
  %143 = vmatpush.bf16.msra.mxu0 %v104
  %144 = vmatpush.bf16.msra.mxu0 %v103
  %145 = vmatpush.bf16.msra.mxu0 %v102
  %146 = vmatpush.bf16.msra.mxu0 %v101
  %147 = vmatmul.bf16.gmra.mxu0 %v112
  %v148 = vpop.f32.mrf.mxu0
  %v149 = vadd.f32 0.0, %v148
  %v150 = vpop.f32.mrf.mxu0
  %v151 = vadd.f32 0.0, %v150
  %152 = vmatmul.bf16.gmra.mxu0 %v115
  %v153 = vpop.f32.mrf.mxu0
  %v154 = vadd.f32 0.0, %v153
  %v155 = vpop.f32.mrf.mxu0
  %v156 = vadd.f32 0.0, %v155
  %157 = vmatmul.bf16.gmra.mxu0 %v118
  %v158 = vpop.f32.mrf.mxu0
  %v159 = vadd.f32 0.0, %v158
  %v160 = vpop.f32.mrf.mxu0
  %v161 = vadd.f32 0.0, %v160
  %162 = vmatmul.bf16.gmra.mxu0 %v121
  %v163 = vpop.f32.mrf.mxu0
  %v164 = vadd.f32 0.0, %v163
  %v165 = vpop.f32.mrf.mxu0
  %v166 = vadd.f32 0.0, %v165
  %167 = vmatmul.bf16.gmra.mxu0 %v124
  %v168 = vpop.f32.mrf.mxu0
  %v169 = vadd.f32 0.0, %v168
  %v170 = vpop.f32.mrf.mxu0
  %v171 = vadd.f32 0.0, %v170
  %172 = vmatmul.bf16.gmra.mxu0 %v127
  %v173 = vpop.f32.mrf.mxu0
  %v174 = vadd.f32 0.0, %v173
  %v175 = vpop.f32.mrf.mxu0
  %v176 = vadd.f32 0.0, %v175
  %177 = vmatmul.bf16.gmra.mxu0 %v130
  %v178 = vpop.f32.mrf.mxu0
  %v179 = vadd.f32 0.0, %v178
  %v180 = vpop.f32.mrf.mxu0
  %v181 = vadd.f32 0.0, %v180
  %182 = vmatmul.bf16.gmra.mxu0 %v133
  %v183 = vpop.f32.mrf.mxu0
  %v184 = vadd.f32 0.0, %v183
  %v185 = vpop.f32.mrf.mxu0
  %v186 = vadd.f32 0.0, %v185
  %187 = vdwg.mxu0
  %v188 = vld [vmem:[%s2] sm:$0x1]
  %v190 = vperm.slane %v188, 0
  %v192 = vmul.f32 %v149, %v190
  %v193 = vmul.f32 %v151, %v190
  %v194 = vmul.f32 %v154, %v190
  %v195 = vmul.f32 %v156, %v190
  %v196 = vmul.f32 %v159, %v190
  %v197 = vmul.f32 %v161, %v190
  %v198 = vmul.f32 %v164, %v190
  %v199 = vmul.f32 %v166, %v190
  %v200 = vmul.f32 %v169, %v190
  %v201 = vmul.f32 %v171, %v190
  %v202 = vmul.f32 %v174, %v190
  %v203 = vmul.f32 %v176, %v190
  %v204 = vmul.f32 %v179, %v190
  %v205 = vmul.f32 %v181, %v190
  %v206 = vmul.f32 %v184, %v190
  %v207 = vmul.f32 %v186, %v190
  %v208 = vld [vmem:[%s3] sm:$0x1]
  %v210 = vperm.slane %v208, 0
  %v212 = vadd.f32 %v192, %v210
  %v213 = vadd.f32 %v193, %v210
  %v214 = vadd.f32 %v194, %v210
  %v215 = vadd.f32 %v195, %v210
  %v216 = vadd.f32 %v196, %v210
  %v217 = vadd.f32 %v197, %v210
  %v218 = vadd.f32 %v198, %v210
  %v219 = vadd.f32 %v199, %v210
  %v220 = vadd.f32 %v200, %v210
  %v221 = vadd.f32 %v201, %v210
  %v222 = vadd.f32 %v202, %v210
  %v223 = vadd.f32 %v203, %v210
  %v224 = vadd.f32 %v204, %v210
  %v225 = vadd.f32 %v205, %v210
  %v226 = vadd.f32 %v206, %v210
  %v227 = vadd.f32 %v207, %v210
  %v228 = vmax.f32 %v212, 0.0
  %v229 = vmax.f32 %v213, 0.0
  %v230 = vmax.f32 %v214, 0.0
  %v231 = vmax.f32 %v215, 0.0
  %v232 = vmax.f32 %v216, 0.0
  %v233 = vmax.f32 %v217, 0.0
  %v234 = vmax.f32 %v218, 0.0
  %v235 = vmax.f32 %v219, 0.0
  %v236 = vmax.f32 %v220, 0.0
  %v237 = vmax.f32 %v221, 0.0
  %v238 = vmax.f32 %v222, 0.0
  %v239 = vmax.f32 %v223, 0.0
  %v240 = vmax.f32 %v224, 0.0
  %v241 = vmax.f32 %v225, 0.0
  %v242 = vmax.f32 %v226, 0.0
  %v243 = vmax.f32 %v227, 0.0
  %244 = vst [vmem:[%s4] sm:$0xff] %v228
  %245 = vst [vmem:[%s4 + $0x8] sm:$0xff] %v229
  %246 = vst [vmem:[%s4 + $0x10] sm:$0xff] %v230
  %247 = vst [vmem:[%s4 + $0x18] sm:$0xff] %v231
  %248 = vst [vmem:[%s4 + $0x20] sm:$0xff] %v232
  %249 = vst [vmem:[%s4 + $0x28] sm:$0xff] %v233
  %250 = vst [vmem:[%s4 + $0x30] sm:$0xff] %v234
  %251 = vst [vmem:[%s4 + $0x38] sm:$0xff] %v235
  %252 = vst [vmem:[%s4 + $0x40] sm:$0xff] %v236
  %253 = vst [vmem:[%s4 + $0x48] sm:$0xff] %v237
  %254 = vst [vmem:[%s4 + $0x50] sm:$0xff] %v238
  %255 = vst [vmem:[%s4 + $0x58] sm:$0xff] %v239
  %256 = vst [vmem:[%s4 + $0x60] sm:$0xff] %v240
  %257 = vst [vmem:[%s4 + $0x68] sm:$0xff] %v241
  %258 = vst [vmem:[%s4 + $0x70] sm:$0xff] %v242
  %259 = vst [vmem:[%s4 + $0x78] sm:$0xff] %v243
  // Predicated region
  $region18: #{downsample_forward.9} parent=0 // pred_check
    _
  $region19: #{downsample_forward.9} parent=0 // pred_check_branch
    %261 = sbr.rel (0) target = $region21
  $region20: #{downsample_forward.9} parent=0 // pred_region
    _
  $region21: #{downsample_forward.9} parent=0 // pred_fallthru
    _
  // Predicated region
  $region22: #{downsample_forward.9} parent=0 // pred_check
    _
  $region23: #{downsample_forward.9} parent=0 // pred_check_branch
    %263 = sbr.rel (0) target = $region25
  $region24: #{downsample_forward.9} parent=0 // pred_region
    _
  $region25: #{downsample_forward.9} parent=0 // pred_fallthru
    _

// kernel: downsample_forward.11
$region0: #{downsample_forward.11}
  #allocation0 [shape = 'u32[]', space=smem, size = 0x4, offset = 0x4, fixed_abs, tag = 'smem constant byte address 0x4 - core index']
  #allocation1 [shape = 'u32[72,128]{1,0:T(1,128)}', space=vmem, size = 0x9000, scoped, tag = 'internal scratch']
  %s0 = inlined_call_operand.vmem [shape: bf16[32,144], index: 0, kind: input, shape index: {}]
  %s1 = inlined_call_operand.vmem [shape: bf16[144,128], index: 1, kind: input, shape index: {}]
  %s2 = inlined_call_operand.vmem [shape: f32[1,128], index: 2, kind: input, shape index: {}]
  %s3 = inlined_call_operand.vmem [shape: f32[1,128], index: 3, kind: input, shape index: {}]
  %s4 = inlined_call_operand.hbm [shape: f32[32,128], index: 4, kind: output, shape index: {}]
  %s5 = sld [smem:[#allocation0]]
  $region26: #{downsample_forward.11} parent=0
    _
  %s7 = ssub.s32 1, %s5
  %s8 = scalar_select 0, %s7, %s5
  $region1: #{downsample_forward.11} parent=0
    #allocation2 [shape = 'u8[16384]{0}', space=vmem, size = 0x4000, scoped, tag = 'output window, operand 0, single buffered']
    #allocation3 [shape = 's32[1]{0}', space=sflag, size = 0x4, scoped, tag = 'scoped memory for downsample_forward.11']
    %9 = vsyncpa [#allocation3], 0
    // Predicated region
    $region2: #{downsample_forward.11} parent=1 // pred_check
      _
    $region3: #{downsample_forward.11} parent=1 // pred_check_branch
      %11 = sbr.rel (0) target = $region5
    $region4: #{downsample_forward.11} parent=1 // pred_region
      _
    $region5: #{downsample_forward.11} parent=1 // pred_fallthru
      _
    // Predicated region
    $region6: #{downsample_forward.11} parent=1 // pred_check
      _
    $region7: #{downsample_forward.11} parent=1 // pred_check_branch
      %13 = sbr.rel (0) target = $region9
    $region8: #{downsample_forward.11} parent=1 // pred_region
      _
    $region9: #{downsample_forward.11} parent=1 // pred_fallthru
      _
    // Predicated region
    $region10: #{downsample_forward.11} parent=1 // pred_check
      _
    $region11: #{downsample_forward.11} parent=1 // pred_check_branch
      %15 = sbr.rel (0) target = $region13
    $region12: #{downsample_forward.11} parent=1 // pred_region
      _
    $region13: #{downsample_forward.11} parent=1 // pred_fallthru
      _
    // Predicated region
    $region14: #{downsample_forward.11} parent=1 // pred_check
      _
    $region15: #{downsample_forward.11} parent=1 // pred_check_branch
      %17 = sbr.rel (0) target = $region17
    $region16: #{downsample_forward.11} parent=1 // pred_region
      _
    $region17: #{downsample_forward.11} parent=1 // pred_fallthru
      _
    %v19 = vld [vmem:[%s0] sm:$0xff]
    %v20 = vld [vmem:[%s0 + $0x8] sm:$0xff]
    %v21 = vld [vmem:[%s0 + $0x10] sm:$0xff]
    %v22 = vld [vmem:[%s0 + $0x18] sm:$0xff]
    %v23 = vld [vmem:[%s1] sm:$0xf]
    %v24 = vld [vmem:[%s1 + $0x4] sm:$0xf]
    %v25 = vld [vmem:[%s1 + $0x8] sm:$0xf]
    %v26 = vld [vmem:[%s1 + $0xc] sm:$0xf]
    %v27 = vld [vmem:[%s1 + $0x10] sm:$0xf]
    %v28 = vld [vmem:[%s1 + $0x14] sm:$0xf]
    %v29 = vld [vmem:[%s1 + $0x18] sm:$0xf]
    %v30 = vld [vmem:[%s1 + $0x1c] sm:$0xf]
    %v31 = vld [vmem:[%s1 + $0x20] sm:$0xf]
    %v32 = vld [vmem:[%s1 + $0x24] sm:$0xf]
    %v33 = vld [vmem:[%s1 + $0x28] sm:$0xf]
    %v34 = vld [vmem:[%s1 + $0x2c] sm:$0xf]
    %v35 = vld [vmem:[%s1 + $0x30] sm:$0xf]
    %v36 = vld [vmem:[%s1 + $0x34] sm:$0xf]
    %v37 = vld [vmem:[%s1 + $0x38] sm:$0xf]
    %v38 = vld [vmem:[%s1 + $0x3c] sm:$0xf]
    %v39 = vld [vmem:[%s1 + $0x40] sm:$0xf]
    %v40 = vld [vmem:[%s1 + $0x44] sm:$0xf]
    %v45 = vunpack.c.l.b16 %v19
    %v46 = vunpack.c.h.b16 %v19
    %v47 = vunpack.c.l.b16 %v20
    %v48 = vunpack.c.h.b16 %v20
    %v49 = vunpack.c.l.b16 %v21
    %v50 = vunpack.c.h.b16 %v21
    %v51 = vunpack.c.l.b16 %v22
    %v52 = vunpack.c.h.b16 %v22
    %v53 = vpack.c.b16 %v47, %v45
    %v54 = vpack.c.b16 %v48, %v46
    %v55 = vpack.c.b16 %v51, %v49
    %v56 = vpack.c.b16 %v52, %v50
    %v77 = vunpack.c.l.b16 %v23
    %v78 = vunpack.c.l.b16 %v24
    %v79 = vunpack.c.l.b16 %v25
    %v80 = vunpack.c.l.b16 %v26
    %v81 = vunpack.c.l.b16 %v27
    %v82 = vunpack.c.l.b16 %v28
    %v83 = vunpack.c.l.b16 %v29
    %v84 = vunpack.c.l.b16 %v30
    %v85 = vunpack.c.l.b16 %v31
    %v86 = vunpack.c.l.b16 %v32
    %v87 = vunpack.c.l.b16 %v33
    %v88 = vunpack.c.l.b16 %v34
    %v89 = vunpack.c.l.b16 %v35
    %v90 = vunpack.c.l.b16 %v36
    %v91 = vunpack.c.l.b16 %v37
    %v92 = vunpack.c.l.b16 %v38
    %v93 = vunpack.c.l.b16 %v39
    %v94 = vunpack.c.l.b16 %v40
    %v95 = vpack.c.b16 %v78, %v77
    %v96 = vpack.c.b16 %v80, %v79
    %v97 = vpack.c.b16 %v82, %v81
    %v98 = vpack.c.b16 %v84, %v83
    %v99 = vpack.c.b16 %v86, %v85
    %v100 = vpack.c.b16 %v88, %v87
    %v101 = vpack.c.b16 %v90, %v89
    %v102 = vpack.c.b16 %v92, %v91
    %v103 = vpack.c.b16 %v94, %v93
    %vm113 = vcmask 130048
    %v115 = vsel %vm113, %v54, 0
    %v118 = vsel %vm113, %v56, 0
    %120 = vmatpush.bf16.msra.mxu0 %v102
    %121 = vmatpush.bf16.msra.mxu0 %v101
    %122 = vmatpush.bf16.msra.mxu0 %v100
    %123 = vmatpush.bf16.msra.mxu0 %v99
    %124 = vmatpush.bf16.msra.mxu0 %v98
    %125 = vmatpush.bf16.msra.mxu0 %v97
    %126 = vmatpush.bf16.msra.mxu0 %v96
    %127 = vmatpush.bf16.msra.mxu0 %v95
    %128 = vmatmul.bf16.gmra.mxu0 %v53
    %v129 = vpop.f32.mrf.mxu0
    %v130 = vadd.f32 0.0, %v129
    %v131 = vpop.f32.mrf.mxu0
    %v132 = vadd.f32 0.0, %v131
    %133 = vmatmul.bf16.gmra.mxu0 %v55
    %v134 = vpop.f32.mrf.mxu0
    %v135 = vadd.f32 0.0, %v134
    %v136 = vpop.f32.mrf.mxu0
    %v137 = vadd.f32 0.0, %v136
    %138 = vdwg.mxu0
    %139 = vmatpush.bf16.msra.mxu0 0
    %140 = vmatpush.bf16.msra.mxu0 0
    %141 = vmatpush.bf16.msra.mxu0 0
    %142 = vmatpush.bf16.msra.mxu0 0
    %143 = vmatpush.bf16.msra.mxu0 0
    %144 = vmatpush.bf16.msra.mxu0 0
    %145 = vmatpush.bf16.msra.mxu0 0
    %146 = vmatpush.bf16.msra.mxu0 %v103
    %147 = vmatmul.bf16.gmra.mxu0 %v115
    %v148 = vpop.f32.mrf.mxu0
    %v149 = vadd.f32 %v130, %v148
    %v150 = vpop.f32.mrf.mxu0
    %v151 = vadd.f32 %v132, %v150
    %152 = vmatmul.bf16.gmra.mxu0 %v118
    %v153 = vpop.f32.mrf.mxu0
    %v154 = vadd.f32 %v135, %v153
    %v155 = vpop.f32.mrf.mxu0
    %v156 = vadd.f32 %v137, %v155
    %157 = vdwg.mxu0
    %v158 = vld [vmem:[%s2] sm:$0x1]
    %v160 = vperm.slane %v158, 0
    %v162 = vmul.f32 %v149, %v160
    %v163 = vmul.f32 %v151, %v160
    %v164 = vmul.f32 %v154, %v160
    %v165 = vmul.f32 %v156, %v160
    %v166 = vld [vmem:[%s3] sm:$0x1]
    %v168 = vperm.slane %v166, 0
    %v170 = vadd.f32 %v162, %v168
    %v171 = vadd.f32 %v163, %v168
    %v172 = vadd.f32 %v164, %v168
    %v173 = vadd.f32 %v165, %v168
    %v174 = vmax.f32 %v170, 0.0
    %v175 = vmax.f32 %v171, 0.0
    %v176 = vmax.f32 %v172, 0.0
    %v177 = vmax.f32 %v173, 0.0
    %178 = vst [vmem:[#allocation2] sm:$0xff] %v174
    %179 = vst [vmem:[#allocation2 + $0x8] sm:$0xff] %v175
    %180 = vst [vmem:[#allocation2 + $0x10] sm:$0xff] %v176
    %181 = vst [vmem:[#allocation2 + $0x18] sm:$0xff] %v177
    // Predicated region
    $region18: #{downsample_forward.11} parent=1 // pred_check
      _
    $region19: #{downsample_forward.11} parent=1 // pred_check_branch
      %183 = sbr.rel (0) target = $region21
    $region20: #{downsample_forward.11} parent=1 // pred_region
      %185 = vsyncadd [#allocation3], 0
      %s186 = sshll.u32 [#allocation2], 4
      %s187 = int_to_ptr.vmem [resolvable:$true] %s186
      %s188 = sshll.u32 %s4, 4
      %s189 = int_to_ptr.hbm [resolvable:$true] %s188
      %194 = dma.vmem_to_hbm [thread:$0]  %s187, 512, %s189, [#allocation3], 128, 128, 8
    $region21: #{downsample_forward.11} parent=1 // pred_fallthru
      _
    // Predicated region
    $region22: #{downsample_forward.11} parent=1 // pred_check
      _
    $region23: #{downsample_forward.11} parent=1 // pred_check_branch
      %196 = sbr.rel (0) target = $region25
    $region24: #{downsample_forward.11} parent=1 // pred_region
      %198 = dma.done [#allocation3], 512
    $region25: #{downsample_forward.11} parent=1 // pred_fallthru
      _
    %199 = vsyncpa [#allocation3], 1

// kernel: downsample_forward.10
$region0: #{downsample_forward.10}
  #allocation0 [shape = 'u32[]', space=smem, size = 0x4, offset = 0x4, fixed_abs, tag = 'smem constant byte address 0x4 - core index']
  #allocation1 [shape = 'u32[72,128]{1,0:T(1,128)}', space=vmem, size = 0x9000, scoped, tag = 'internal scratch']
  %s0 = inlined_call_operand.vmem [shape: bf16[32,144], index: 0, kind: input, shape index: {}]
  %s1 = inlined_call_operand.vmem [shape: bf16[144,128], index: 1, kind: input, shape index: {}]
  %s2 = inlined_call_operand.vmem [shape: f32[8,128], index: 2, kind: output, shape index: {}]
  %s3 = sld [smem:[#allocation0]]
  $region18: #{downsample_forward.10} parent=0
    _
  %s5 = ssub.s32 1, %s3
  %s6 = scalar_select 0, %s5, %s3
  // Predicated region
  $region2: #{downsample_forward.10} parent=0 // pred_check
    _
  $region3: #{downsample_forward.10} parent=0 // pred_check_branch
    %8 = sbr.rel (0) target = $region5
  $region4: #{downsample_forward.10} parent=0 // pred_region
    _
  $region5: #{downsample_forward.10} parent=0 // pred_fallthru
    _
  // Predicated region
  $region6: #{downsample_forward.10} parent=0 // pred_check
    _
  $region7: #{downsample_forward.10} parent=0 // pred_check_branch
    %10 = sbr.rel (0) target = $region9
  $region8: #{downsample_forward.10} parent=0 // pred_region
    _
  $region9: #{downsample_forward.10} parent=0 // pred_fallthru
    _
  %v12 = vld [vmem:[%s0] sm:$0xff]
  %v13 = vld [vmem:[%s0 + $0x8] sm:$0xff]
  %v14 = vld [vmem:[%s0 + $0x10] sm:$0xff]
  %v15 = vld [vmem:[%s0 + $0x18] sm:$0xff]
  %v16 = vld [vmem:[%s1] sm:$0xf]
  %v17 = vld [vmem:[%s1 + $0x4] sm:$0xf]
  %v18 = vld [vmem:[%s1 + $0x8] sm:$0xf]
  %v19 = vld [vmem:[%s1 + $0xc] sm:$0xf]
  %v20 = vld [vmem:[%s1 + $0x10] sm:$0xf]
  %v21 = vld [vmem:[%s1 + $0x14] sm:$0xf]
  %v22 = vld [vmem:[%s1 + $0x18] sm:$0xf]
  %v23 = vld [vmem:[%s1 + $0x1c] sm:$0xf]
  %v24 = vld [vmem:[%s1 + $0x20] sm:$0xf]
  %v25 = vld [vmem:[%s1 + $0x24] sm:$0xf]
  %v26 = vld [vmem:[%s1 + $0x28] sm:$0xf]
  %v27 = vld [vmem:[%s1 + $0x2c] sm:$0xf]
  %v28 = vld [vmem:[%s1 + $0x30] sm:$0xf]
  %v29 = vld [vmem:[%s1 + $0x34] sm:$0xf]
  %v30 = vld [vmem:[%s1 + $0x38] sm:$0xf]
  %v31 = vld [vmem:[%s1 + $0x3c] sm:$0xf]
  %v32 = vld [vmem:[%s1 + $0x40] sm:$0xf]
  %v33 = vld [vmem:[%s1 + $0x44] sm:$0xf]
  %v38 = vunpack.c.l.b16 %v12
  %v39 = vunpack.c.h.b16 %v12
  %v40 = vunpack.c.l.b16 %v13
  %v41 = vunpack.c.h.b16 %v13
  %v42 = vunpack.c.l.b16 %v14
  %v43 = vunpack.c.h.b16 %v14
  %v44 = vunpack.c.l.b16 %v15
  %v45 = vunpack.c.h.b16 %v15
  %v46 = vpack.c.b16 %v40, %v38
  %v47 = vpack.c.b16 %v41, %v39
  %v48 = vpack.c.b16 %v44, %v42
  %v49 = vpack.c.b16 %v45, %v43
  %v70 = vunpack.c.l.b16 %v16
  %v71 = vunpack.c.l.b16 %v17
  %v72 = vunpack.c.l.b16 %v18
  %v73 = vunpack.c.l.b16 %v19
  %v74 = vunpack.c.l.b16 %v20
  %v75 = vunpack.c.l.b16 %v21
  %v76 = vunpack.c.l.b16 %v22
  %v77 = vunpack.c.l.b16 %v23
  %v78 = vunpack.c.l.b16 %v24
  %v79 = vunpack.c.l.b16 %v25
  %v80 = vunpack.c.l.b16 %v26
  %v81 = vunpack.c.l.b16 %v27
  %v82 = vunpack.c.l.b16 %v28
  %v83 = vunpack.c.l.b16 %v29
  %v84 = vunpack.c.l.b16 %v30
  %v85 = vunpack.c.l.b16 %v31
  %v86 = vunpack.c.l.b16 %v32
  %v87 = vunpack.c.l.b16 %v33
  %v88 = vpack.c.b16 %v71, %v70
  %v89 = vpack.c.b16 %v73, %v72
  %v90 = vpack.c.b16 %v75, %v74
  %v91 = vpack.c.b16 %v77, %v76
  %v92 = vpack.c.b16 %v79, %v78
  %v93 = vpack.c.b16 %v81, %v80
  %v94 = vpack.c.b16 %v83, %v82
  %v95 = vpack.c.b16 %v85, %v84
  %v96 = vpack.c.b16 %v87, %v86
  %vm106 = vcmask 130048
  %v108 = vsel %vm106, %v47, 0
  %v111 = vsel %vm106, %v49, 0
  %113 = vmatpush.bf16.msra.mxu0 %v95
  %114 = vmatpush.bf16.msra.mxu0 %v94
  %115 = vmatpush.bf16.msra.mxu0 %v93
  %116 = vmatpush.bf16.msra.mxu0 %v92
  %117 = vmatpush.bf16.msra.mxu0 %v91
  %118 = vmatpush.bf16.msra.mxu0 %v90
  %119 = vmatpush.bf16.msra.mxu0 %v89
  %120 = vmatpush.bf16.msra.mxu0 %v88
  %121 = vmatmul.bf16.gmra.mxu0 %v46
  %v122 = vpop.f32.mrf.mxu0
  %v123 = vadd.f32 0.0, %v122
  %v124 = vpop.f32.mrf.mxu0
  %v125 = vadd.f32 0.0, %v124
  %126 = vmatmul.bf16.gmra.mxu0 %v48
  %v127 = vpop.f32.mrf.mxu0
  %v128 = vadd.f32 0.0, %v127
  %v129 = vpop.f32.mrf.mxu0
  %v130 = vadd.f32 0.0, %v129
  %131 = vdwg.mxu0
  %132 = vmatpush.bf16.msra.mxu0 0
  %133 = vmatpush.bf16.msra.mxu0 0
  %134 = vmatpush.bf16.msra.mxu0 0
  %135 = vmatpush.bf16.msra.mxu0 0
  %136 = vmatpush.bf16.msra.mxu0 0
  %137 = vmatpush.bf16.msra.mxu0 0
  %138 = vmatpush.bf16.msra.mxu0 0
  %139 = vmatpush.bf16.msra.mxu0 %v96
  %140 = vmatmul.bf16.gmra.mxu0 %v108
  %v141 = vpop.f32.mrf.mxu0
  %v142 = vadd.f32 %v123, %v141
  %v143 = vpop.f32.mrf.mxu0
  %v144 = vadd.f32 %v125, %v143
  %145 = vmatmul.bf16.gmra.mxu0 %v111
  %v146 = vpop.f32.mrf.mxu0
  %v147 = vadd.f32 %v128, %v146
  %v148 = vpop.f32.mrf.mxu0
  %v149 = vadd.f32 %v130, %v148
  %150 = vdwg.mxu0
  %s151 = smul.u32 0, 32
  %v152 = vlaneseq
  %v153 = vshrl.u32 %v152, 7
  %v154 = vadd.s32 %v153, 8
  %v155 = vadd.s32 %v153, 16
  %v156 = vadd.s32 %v153, 24
  %v157 = vstv %s151
  %v158 = vadd.s32 %v157, %v153
  %v159 = vadd.s32 %v157, %v154
  %v160 = vadd.s32 %v157, %v155
  %v161 = vadd.s32 %v157, %v156
  %vm162 = vcmp.lt.s32.totalorder %v158, 32
  %vm163 = vcmp.lt.s32.totalorder %v159, 32
  %vm164 = vcmp.lt.s32.totalorder %v160, 32
  %vm165 = vcmp.lt.s32.totalorder %v161, 32
  %v166 = vsel %vm162, 1, 0
  %v167 = vsel %vm163, 1, 0
  %v168 = vsel %vm164, 1, 0
  %v169 = vsel %vm165, 1, 0
  %v170 = vcvt.s32.f32 %v166
  %v171 = vcvt.s32.f32 %v167
  %v172 = vcvt.s32.f32 %v168
  %v173 = vcvt.s32.f32 %v169
  %s174 = ssub.s32 32, %s151
  %p175 = scmp.lt.s32.totalorder %s174, 32
  %s176 = scalar_select %p175, %s174, 32
  %s177 = scvt.s32.f32 %s176
  %v178 = vmul.f32 %v142, %v170
  %v179 = vmul.f32 %v144, %v171
  %v180 = vmul.f32 %v147, %v172
  %v181 = vmul.f32 %v149, %v173
  %v182 = vadd.f32 %v178, %v179
  %v183 = vadd.f32 %v182, %v180
  %v184 = vadd.f32 %v183, %v181
  %v185 = vrot.slane %v184, 4
  %v186 = vadd.f32 %v184, %v185
  %v187 = vrot.slane %v186, 2
  %v188 = vadd.f32 %v186, %v187
  %v189 = vrot.slane %v188, 1
  %v190 = vadd.f32 %v188, %v189
  %v191 = vstv %s177
  %v192 = vrcp.pop %v191
  %v193 = vmul.f32 %v191, %v192
  %v194 = vsub.f32 1.0, %v193
  %v195 = vmul.f32 %v192, %v194
  %v196 = vadd.f32 %v192, %v195
  %vm197 = vweird.f32 %v191
  %vm198 = vweird.f32 %v192
  %vm199 = vmor %vm197, %vm198
  %v200 = vsel %vm199, %v192, %v196
  %v201 = vand.u32 2147483647, %v191
  %vm202 = vcmp.eq.f32.partialorder %v201, 8.507059e+37
  %v203 = vand.u32 %v191, 2147483648
  %v204 = vor.u32 1.1754944e-38, %v203
  %v205 = vsel %vm202, %v204, %v200
  %v206 = vmul.f32 %v190, %v205
  %v207 = vsub.f32 %v142, %v206
  %v208 = vsub.f32 %v144, %v206
  %v209 = vsub.f32 %v147, %v206
  %v210 = vsub.f32 %v149, %v206
  %v211 = vmul.f32 %v207, %v170
  %v212 = vmul.f32 %v208, %v171
  %v213 = vmul.f32 %v209, %v172
  %v214 = vmul.f32 %v210, %v173
  %v215 = vmul.f32 %v211, %v211
  %v216 = vmul.f32 %v212, %v212
  %v217 = vmul.f32 %v213, %v213
  %v218 = vmul.f32 %v214, %v214
  %v219 = vadd.f32 %v215, %v216
  %v220 = vadd.f32 %v219, %v217
  %v221 = vadd.f32 %v220, %v218
  %v222 = vrot.slane %v221, 4
  %v223 = vadd.f32 %v221, %v222
  %v224 = vrot.slane %v223, 2
  %v225 = vadd.f32 %v223, %v224
  %v226 = vrot.slane %v225, 1
  %v227 = vadd.f32 %v225, %v226
  %vm228 = vcmask 1040384
  %v229 = vsel %vm228, %v190, %v227
  %vm230 = vcmask 1041408
  %v231 = vsel %vm230, %v229, %v191
  %vm232 = vcmask 1042432
  %v233 = vsel %vm232, %v231, 0.0
  %234 = vst [vmem:[%s2] sm:$0xff] %v233
  // Predicated region
  $region10: #{downsample_forward.10} parent=0 // pred_check
    _
  $region11: #{downsample_forward.10} parent=0 // pred_check_branch
    %236 = sbr.rel (0) target = $region13
  $region12: #{downsample_forward.10} parent=0 // pred_region
    _
  $region13: #{downsample_forward.10} parent=0 // pred_fallthru
    _
  // Predicated region
  $region14: #{downsample_forward.10} parent=0 // pred_check
    _
  $region15: #{downsample_forward.10} parent=0 // pred_check_branch
    %238 = sbr.rel (0) target = $region17
  $region16: #{downsample_forward.10} parent=0 // pred_region
    _
  $region17: #{downsample_forward.10} parent=0 // pred_fallthru
    _

</llo_original>
